<compile_context>
chip_gen: v7x
topology: tpu7x:2x2x1
jax: 0.10.0
libtpu: 0.0.40
codegen_flags: <defaults>
</compile_context>

<pallas_src>
import numpy as np
import jax
import jax.numpy as jnp
from jax.experimental import pallas as pl
from jax.experimental.pallas import tpu as pltpu

DOWNSAMP = 5
HIDDEN = 16
C_IN = 2


def _pool_matrix(n_in: int, k: int) -> np.ndarray:
    """Row-averaging matrix: (n_in//k, n_in) with 1/k in each pooling window."""
    n_out = n_in // k
    m = np.zeros((n_out, n_in), dtype=np.float32)
    for i in range(n_out):
        m[i, i * k:(i + 1) * k] = 1.0 / k
    return m


def _bilinear_upsample_matrix(n_in: int, scale: int) -> np.ndarray:
    """Matches torch F.interpolate(mode='bilinear', align_corners=False) along one axis."""
    n_out = n_in * scale
    m = np.zeros((n_out, n_in), dtype=np.float32)
    for o in range(n_out):
        src = (o + 0.5) / scale - 0.5
        if src < 0.0:
            src = 0.0
        i0 = min(int(np.floor(src)), n_in - 1)
        i1 = min(i0 + 1, n_in - 1)
        frac = src - i0
        m[o, i0] += 1.0 - frac
        m[o, i1] += frac
    return m


def _choose_bt(B: int, cap: int = 256) -> int:
    """Largest sublane-aligned batch tile <= cap that divides B (or B itself)."""
    if B <= cap:
        return B
    best = cap                       # fallback: partial last block (Pallas masks it)
    for bt in range(8, cap + 1, 8):
        if B % bt == 0:
            best = bt
    return best


def _weightmod_kernel(x_ref, kbd_ref, u_ref, w1_ref, b1_ref, w2_ref, b2_ref, o_ref):
    # x_ref:   (bt, C*HW)   native-layout batch tile
    # kbd_ref: (C*HW, C*P)  block-diagonal pooling Kronecker matrix
    # u_ref:   (P, HW)      bilinear upsample Kronecker matrix
    # o_ref:   (bt, HW)
    P = u_ref.shape[0]

    # ---- both channels pooled with ONE MXU matmul (128-lane output tile) ----
    p = jnp.dot(x_ref[...], kbd_ref[...], preferred_element_type=jnp.float32)  # (bt, 2P)
    p0 = p[:, :P]      # pooled channel 0, (bt, P)
    p1 = p[:, P:]      # pooled channel 1, (bt, P)

    # ---- 1x1-conv MLP: 2 -> 16 -> ReLU -> 1 ----
    # Scalar weights from SMEM, unrolled FMAs on lane-dense tiles (VPU).
    y = jnp.full(p0.shape, b2_ref[0], dtype=jnp.float32)
    for h in range(HIDDEN):
        hid = p0 * w1_ref[2 * h] + p1 * w1_ref[2 * h + 1] + b1_ref[h]
        hid = jnp.maximum(hid, 0.0)
        y = y + hid * w2_ref[h]

    # ---- x5 bilinear upsample as one Kronecker matmul; lane-dense store ----
    out = jnp.dot(y, u_ref[...], preferred_element_type=jnp.float32)           # (bt, HW)
    o_ref[...] = out.astype(o_ref.dtype)


def weightmod_forward(x, w1, b1, w2, b2, *, bt=None):
    B, C, H, W = x.shape
    assert C == C_IN and H % DOWNSAMP == 0 and W % DOWNSAMP == 0
    lat, lon = H // DOWNSAMP, W // DOWNSAMP
    P = lat * lon
    HW = H * W

    # --- host-side constants ---
    pr = _pool_matrix(H, DOWNSAMP)                    # (lat, H)
    pc = _pool_matrix(W, DOWNSAMP)                    # (lon, W)
    ur = _bilinear_upsample_matrix(lat, DOWNSAMP)     # (H, lat)
    uc = _bilinear_upsample_matrix(lon, DOWNSAMP)     # (W, lon)

    kmat = np.einsum('lh,mw->hwlm', pr, pc).reshape(HW, P)          # pooling, (HW, P)
    kbd = np.zeros((C * HW, C * P), dtype=np.float32)               # block-diagonal
    for c in range(C):
        kbd[c * HW:(c + 1) * HW, c * P:(c + 1) * P] = kmat
    kbd = jnp.asarray(kbd)
    umat = jnp.asarray(np.einsum('Hl,Wm->lmHW', ur, uc).reshape(P, HW))  # upsample

    # --- batch tiling ---
    if bt is None:
        bt = _choose_bt(B)
    n_blocks = pl.cdiv(B, bt)

    # Layout plumbing: free reshape of NCHW (no transpose, no extra HBM pass).
    x_flat = x.reshape(B, C * HW)
    w1_flat = w1.reshape(-1)       # (HIDDEN*C,) 1-D SMEM (avoids 2-D SMEM padding)

    smem = pl.BlockSpec(memory_space=pltpu.MemorySpace.SMEM)

    def make_call(buffered_consts: bool):
        const_mode = dict(pipeline_mode=pl.Buffered(1)) if buffered_consts else {}
        return pl.pallas_call(
            _weightmod_kernel,
            out_shape=jax.ShapeDtypeStruct((B, HW), jnp.float32),
            grid=(n_blocks,),
            in_specs=[
                pl.BlockSpec((bt, C * HW), lambda g: (g, 0)),                   # x tile
                pl.BlockSpec((C * HW, C * P), lambda g: (0, 0), **const_mode),  # pool K (resident)
                pl.BlockSpec((P, HW), lambda g: (0, 0), **const_mode),          # upsample U (resident)
                smem,   # w1 flat (HIDDEN*C,)
                smem,   # b1 (HIDDEN,)
                smem,   # w2 (HIDDEN,)
                smem,   # b2 (1,)
            ],
            out_specs=pl.BlockSpec((bt, HW), lambda g: (g, 0)),
            compiler_params=pltpu.CompilerParams(
                dimension_semantics=("parallel",),
                vmem_limit_bytes=32 * 1024 * 1024,
            ),
        )

    args = (x_flat, kbd, umat, w1_flat, b1, w2, b2)
    try:
        out_flat = make_call(True)(*args)
    except Exception:
        # Fallback if this jax version rejects single-buffered constant operands.
        out_flat = make_call(False)(*args)

    return out_flat.reshape(B, 1, H, W)


def weightmod_reference(x, w1, b1, w2, b2):
    """Pure-JAX reference (same semantics) for validation."""
    B, C, H, W = x.shape
    lat, lon = H // DOWNSAMP, W // DOWNSAMP
    pooled = x.reshape(B, C, lat, DOWNSAMP, lon, DOWNSAMP).mean(axis=(3, 5))
    h = jnp.einsum('bchw,oc->bohw', pooled, w1) + b1[None, :, None, None]
    h = jnp.maximum(h, 0.0)
    y = jnp.einsum('bohw,o->bhw', h, w2)[:, None, :, :] + b2
    ur = jnp.asarray(_bilinear_upsample_matrix(lat, DOWNSAMP))
    uc = jnp.asarray(_bilinear_upsample_matrix(lon, DOWNSAMP))
    return jnp.einsum('Hh,bohw,Ww->boHW', ur, y, uc)


if __name__ == "__main__":
    key = jax.random.PRNGKey(0)
    kx, k1, k2, k3, k4, kx2 = jax.random.split(key, 6)

    H = W = 40

    # Conv2d(2, 16, 1): weight (16, 2, 1, 1) -> (16, 2), bias (16,)
    w1 = jax.random.normal(k1, (HIDDEN, C_IN), dtype=jnp.float32) * 0.5
    b1 = jax.random.normal(k2, (HIDDEN,), dtype=jnp.float32) * 0.1
    # Conv2d(16, 1, 1): weight (1, 16, 1, 1) -> (16,), bias (1,)
    w2 = jax.random.normal(k3, (HIDDEN,), dtype=jnp.float32) * 0.5
    b2 = jax.random.normal(k4, (1,), dtype=jnp.float32) * 0.1

    # Case 1: small batch -> single grid step (block == full batch dim).
    x_small = jax.random.normal(kx, (2, C_IN, H, W), dtype=jnp.float32)
    out_small = jax.block_until_ready(weightmod_forward(x_small, w1, b1, w2, b2))
    ref_small = weightmod_reference(x_small, w1, b1, w2, b2)
    assert out_small.shape == (2, 1, H, W), out_small.shape
    assert jnp.allclose(out_small, ref_small, atol=1e-4, rtol=1e-4), \
        float(jnp.max(jnp.abs(out_small - ref_small)))

    # Case 2: larger batch -> multi-step pipelined grid (bt=8, grid=(4,)).
    x_big = jax.random.normal(kx2, (32, C_IN, H, W), dtype=jnp.float32)
    out_big = jax.block_until_ready(weightmod_forward(x_big, w1, b1, w2, b2, bt=8))
    ref_big = weightmod_reference(x_big, w1, b1, w2, b2)
    assert out_big.shape == (32, 1, H, W), out_big.shape
    assert jnp.allclose(out_big, ref_big, atol=1e-4, rtol=1e-4), \
        float(jnp.max(jnp.abs(out_big - ref_big)))

    print("KERNEL_OK")
</pallas_src>

<mosaic_0001>
module attributes {stable_mosaic.version = 11 : i64} {
  func.func @_weightmod_kernel(%arg0: i32, %arg1: memref<2x3200xf32, #tpu.memory_space<vmem>>, %arg2: memref<3200x128xf32, #tpu.memory_space<vmem>>, %arg3: memref<64x1600xf32, #tpu.memory_space<vmem>>, %arg4: memref<32xf32, #tpu.memory_space<smem>>, %arg5: memref<16xf32, #tpu.memory_space<smem>>, %arg6: memref<16xf32, #tpu.memory_space<smem>>, %arg7: memref<1xf32, #tpu.memory_space<smem>>, %arg8: memref<2x1600xf32, #tpu.memory_space<vmem>>) attributes {dimension_semantics = [#tpu.dimension_semantics<parallel>], iteration_bounds = array<i64: 1>, scalar_prefetch = 0 : i64, scratch_operands = 0 : i64, tpu.core_type = #tpu.core_type<tc>, window_params = [{transform_indices = @transform_0, window_bounds = array<i64: 2, 3200>}, {pipeline_mode = #tpu.pipeline_mode<synchronous>, transform_indices = @transform_1, window_bounds = array<i64: 3200, 128>}, {pipeline_mode = #tpu.pipeline_mode<synchronous>, transform_indices = @transform_2, window_bounds = array<i64: 64, 1600>}, {transform_indices = @transform_3, window_bounds = array<i64: 32>}, {transform_indices = @transform_4, window_bounds = array<i64: 16>}, {transform_indices = @transform_5, window_bounds = array<i64: 16>}, {transform_indices = @transform_6, window_bounds = array<i64: 1>}, {transform_indices = @transform_7, window_bounds = array<i64: 2, 1600>}]} {
    %c0 = arith.constant 0 : index
    %c0_0 = arith.constant 0 : index
    %0 = vector.load %arg1[%c0, %c0_0] : memref<2x3200xf32, #tpu.memory_space<vmem>>, vector<2x3200xf32>
    %c0_1 = arith.constant 0 : index
    %c0_2 = arith.constant 0 : index
    %1 = vector.load %arg2[%c0_1, %c0_2] : memref<3200x128xf32, #tpu.memory_space<vmem>>, vector<3200x128xf32>
    %cst = arith.constant dense<0.000000e+00> : vector<2x128xf32>
    %2 = tpu.matmul %0, %1, %cst {dimension_numbers = #tpu.dot_dimension_numbers<[1], [0], [0], [1], [0, 0, 1, 1], [], []>} : vector<2x3200xf32>, vector<3200x128xf32>, vector<2x128xf32> -> vector<2x128xf32>
    %3 = vector.extract_strided_slice %2 {offsets = [0, 0], sizes = [2, 64], strides = [1, 1]} : vector<2x128xf32> to vector<2x64xf32>
    %4 = vector.extract_strided_slice %2 {offsets = [0, 64], sizes = [2, 64], strides = [1, 1]} : vector<2x128xf32> to vector<2x64xf32>
    %c0_3 = arith.constant 0 : index
    %5 = memref.load %arg7[%c0_3] : memref<1xf32, #tpu.memory_space<smem>>
    %6 = vector.broadcast %5 : f32 to vector<2x64xf32>
    %c0_4 = arith.constant 0 : index
    %7 = memref.load %arg4[%c0_4] : memref<32xf32, #tpu.memory_space<smem>>
    %8 = vector.broadcast %7 : f32 to vector<2x64xf32>
    %9 = arith.mulf %3, %8 : vector<2x64xf32>
    %c1 = arith.constant 1 : index
    %10 = memref.load %arg4[%c1] : memref<32xf32, #tpu.memory_space<smem>>
    %11 = vector.broadcast %10 : f32 to vector<2x64xf32>
    %12 = arith.mulf %4, %11 : vector<2x64xf32>
    %13 = arith.addf %9, %12 : vector<2x64xf32>
    %c0_5 = arith.constant 0 : index
    %14 = memref.load %arg5[%c0_5] : memref<16xf32, #tpu.memory_space<smem>>
    %15 = vector.broadcast %14 : f32 to vector<2x64xf32>
    %16 = arith.addf %13, %15 : vector<2x64xf32>
    %cst_6 = arith.constant 0.000000e+00 : f32
    %17 = vector.broadcast %cst_6 : f32 to vector<2x64xf32>
    %18 = arith.maximumf %16, %17 : vector<2x64xf32>
    %c0_7 = arith.constant 0 : index
    %19 = memref.load %arg6[%c0_7] : memref<16xf32, #tpu.memory_space<smem>>
    %20 = vector.broadcast %19 : f32 to vector<2x64xf32>
    %21 = arith.mulf %18, %20 : vector<2x64xf32>
    %22 = arith.addf %6, %21 : vector<2x64xf32>
    %c2 = arith.constant 2 : index
    %23 = memref.load %arg4[%c2] : memref<32xf32, #tpu.memory_space<smem>>
    %24 = vector.broadcast %23 : f32 to vector<2x64xf32>
    %25 = arith.mulf %3, %24 : vector<2x64xf32>
    %c3 = arith.constant 3 : index
    %26 = memref.load %arg4[%c3] : memref<32xf32, #tpu.memory_space<smem>>
    %27 = vector.broadcast %26 : f32 to vector<2x64xf32>
    %28 = arith.mulf %4, %27 : vector<2x64xf32>
    %29 = arith.addf %25, %28 : vector<2x64xf32>
    %c1_8 = arith.constant 1 : index
    %30 = memref.load %arg5[%c1_8] : memref<16xf32, #tpu.memory_space<smem>>
    %31 = vector.broadcast %30 : f32 to vector<2x64xf32>
    %32 = arith.addf %29, %31 : vector<2x64xf32>
    %cst_9 = arith.constant 0.000000e+00 : f32
    %33 = vector.broadcast %cst_9 : f32 to vector<2x64xf32>
    %34 = arith.maximumf %32, %33 : vector<2x64xf32>
    %c1_10 = arith.constant 1 : index
    %35 = memref.load %arg6[%c1_10] : memref<16xf32, #tpu.memory_space<smem>>
    %36 = vector.broadcast %35 : f32 to vector<2x64xf32>
    %37 = arith.mulf %34, %36 : vector<2x64xf32>
    %38 = arith.addf %22, %37 : vector<2x64xf32>
    %c4 = arith.constant 4 : index
    %39 = memref.load %arg4[%c4] : memref<32xf32, #tpu.memory_space<smem>>
    %40 = vector.broadcast %39 : f32 to vector<2x64xf32>
    %41 = arith.mulf %3, %40 : vector<2x64xf32>
    %c5 = arith.constant 5 : index
    %42 = memref.load %arg4[%c5] : memref<32xf32, #tpu.memory_space<smem>>
    %43 = vector.broadcast %42 : f32 to vector<2x64xf32>
    %44 = arith.mulf %4, %43 : vector<2x64xf32>
    %45 = arith.addf %41, %44 : vector<2x64xf32>
    %c2_11 = arith.constant 2 : index
    %46 = memref.load %arg5[%c2_11] : memref<16xf32, #tpu.memory_space<smem>>
    %47 = vector.broadcast %46 : f32 to vector<2x64xf32>
    %48 = arith.addf %45, %47 : vector<2x64xf32>
    %cst_12 = arith.constant 0.000000e+00 : f32
    %49 = vector.broadcast %cst_12 : f32 to vector<2x64xf32>
    %50 = arith.maximumf %48, %49 : vector<2x64xf32>
    %c2_13 = arith.constant 2 : index
    %51 = memref.load %arg6[%c2_13] : memref<16xf32, #tpu.memory_space<smem>>
    %52 = vector.broadcast %51 : f32 to vector<2x64xf32>
    %53 = arith.mulf %50, %52 : vector<2x64xf32>
    %54 = arith.addf %38, %53 : vector<2x64xf32>
    %c6 = arith.constant 6 : index
    %55 = memref.load %arg4[%c6] : memref<32xf32, #tpu.memory_space<smem>>
    %56 = vector.broadcast %55 : f32 to vector<2x64xf32>
    %57 = arith.mulf %3, %56 : vector<2x64xf32>
    %c7 = arith.constant 7 : index
    %58 = memref.load %arg4[%c7] : memref<32xf32, #tpu.memory_space<smem>>
    %59 = vector.broadcast %58 : f32 to vector<2x64xf32>
    %60 = arith.mulf %4, %59 : vector<2x64xf32>
    %61 = arith.addf %57, %60 : vector<2x64xf32>
    %c3_14 = arith.constant 3 : index
    %62 = memref.load %arg5[%c3_14] : memref<16xf32, #tpu.memory_space<smem>>
    %63 = vector.broadcast %62 : f32 to vector<2x64xf32>
    %64 = arith.addf %61, %63 : vector<2x64xf32>
    %cst_15 = arith.constant 0.000000e+00 : f32
    %65 = vector.broadcast %cst_15 : f32 to vector<2x64xf32>
    %66 = arith.maximumf %64, %65 : vector<2x64xf32>
    %c3_16 = arith.constant 3 : index
    %67 = memref.load %arg6[%c3_16] : memref<16xf32, #tpu.memory_space<smem>>
    %68 = vector.broadcast %67 : f32 to vector<2x64xf32>
    %69 = arith.mulf %66, %68 : vector<2x64xf32>
    %70 = arith.addf %54, %69 : vector<2x64xf32>
    %c8 = arith.constant 8 : index
    %71 = memref.load %arg4[%c8] : memref<32xf32, #tpu.memory_space<smem>>
    %72 = vector.broadcast %71 : f32 to vector<2x64xf32>
    %73 = arith.mulf %3, %72 : vector<2x64xf32>
    %c9 = arith.constant 9 : index
    %74 = memref.load %arg4[%c9] : memref<32xf32, #tpu.memory_space<smem>>
    %75 = vector.broadcast %74 : f32 to vector<2x64xf32>
    %76 = arith.mulf %4, %75 : vector<2x64xf32>
    %77 = arith.addf %73, %76 : vector<2x64xf32>
    %c4_17 = arith.constant 4 : index
    %78 = memref.load %arg5[%c4_17] : memref<16xf32, #tpu.memory_space<smem>>
    %79 = vector.broadcast %78 : f32 to vector<2x64xf32>
    %80 = arith.addf %77, %79 : vector<2x64xf32>
    %cst_18 = arith.constant 0.000000e+00 : f32
    %81 = vector.broadcast %cst_18 : f32 to vector<2x64xf32>
    %82 = arith.maximumf %80, %81 : vector<2x64xf32>
    %c4_19 = arith.constant 4 : index
    %83 = memref.load %arg6[%c4_19] : memref<16xf32, #tpu.memory_space<smem>>
    %84 = vector.broadcast %83 : f32 to vector<2x64xf32>
    %85 = arith.mulf %82, %84 : vector<2x64xf32>
    %86 = arith.addf %70, %85 : vector<2x64xf32>
    %c10 = arith.constant 10 : index
    %87 = memref.load %arg4[%c10] : memref<32xf32, #tpu.memory_space<smem>>
    %88 = vector.broadcast %87 : f32 to vector<2x64xf32>
    %89 = arith.mulf %3, %88 : vector<2x64xf32>
    %c11 = arith.constant 11 : index
    %90 = memref.load %arg4[%c11] : memref<32xf32, #tpu.memory_space<smem>>
    %91 = vector.broadcast %90 : f32 to vector<2x64xf32>
    %92 = arith.mulf %4, %91 : vector<2x64xf32>
    %93 = arith.addf %89, %92 : vector<2x64xf32>
    %c5_20 = arith.constant 5 : index
    %94 = memref.load %arg5[%c5_20] : memref<16xf32, #tpu.memory_space<smem>>
    %95 = vector.broadcast %94 : f32 to vector<2x64xf32>
    %96 = arith.addf %93, %95 : vector<2x64xf32>
    %cst_21 = arith.constant 0.000000e+00 : f32
    %97 = vector.broadcast %cst_21 : f32 to vector<2x64xf32>
    %98 = arith.maximumf %96, %97 : vector<2x64xf32>
    %c5_22 = arith.constant 5 : index
    %99 = memref.load %arg6[%c5_22] : memref<16xf32, #tpu.memory_space<smem>>
    %100 = vector.broadcast %99 : f32 to vector<2x64xf32>
    %101 = arith.mulf %98, %100 : vector<2x64xf32>
    %102 = arith.addf %86, %101 : vector<2x64xf32>
    %c12 = arith.constant 12 : index
    %103 = memref.load %arg4[%c12] : memref<32xf32, #tpu.memory_space<smem>>
    %104 = vector.broadcast %103 : f32 to vector<2x64xf32>
    %105 = arith.mulf %3, %104 : vector<2x64xf32>
    %c13 = arith.constant 13 : index
    %106 = memref.load %arg4[%c13] : memref<32xf32, #tpu.memory_space<smem>>
    %107 = vector.broadcast %106 : f32 to vector<2x64xf32>
    %108 = arith.mulf %4, %107 : vector<2x64xf32>
    %109 = arith.addf %105, %108 : vector<2x64xf32>
    %c6_23 = arith.constant 6 : index
    %110 = memref.load %arg5[%c6_23] : memref<16xf32, #tpu.memory_space<smem>>
    %111 = vector.broadcast %110 : f32 to vector<2x64xf32>
    %112 = arith.addf %109, %111 : vector<2x64xf32>
    %cst_24 = arith.constant 0.000000e+00 : f32
    %113 = vector.broadcast %cst_24 : f32 to vector<2x64xf32>
    %114 = arith.maximumf %112, %113 : vector<2x64xf32>
    %c6_25 = arith.constant 6 : index
    %115 = memref.load %arg6[%c6_25] : memref<16xf32, #tpu.memory_space<smem>>
    %116 = vector.broadcast %115 : f32 to vector<2x64xf32>
    %117 = arith.mulf %114, %116 : vector<2x64xf32>
    %118 = arith.addf %102, %117 : vector<2x64xf32>
    %c14 = arith.constant 14 : index
    %119 = memref.load %arg4[%c14] : memref<32xf32, #tpu.memory_space<smem>>
    %120 = vector.broadcast %119 : f32 to vector<2x64xf32>
    %121 = arith.mulf %3, %120 : vector<2x64xf32>
    %c15 = arith.constant 15 : index
    %122 = memref.load %arg4[%c15] : memref<32xf32, #tpu.memory_space<smem>>
    %123 = vector.broadcast %122 : f32 to vector<2x64xf32>
    %124 = arith.mulf %4, %123 : vector<2x64xf32>
    %125 = arith.addf %121, %124 : vector<2x64xf32>
    %c7_26 = arith.constant 7 : index
    %126 = memref.load %arg5[%c7_26] : memref<16xf32, #tpu.memory_space<smem>>
    %127 = vector.broadcast %126 : f32 to vector<2x64xf32>
    %128 = arith.addf %125, %127 : vector<2x64xf32>
    %cst_27 = arith.constant 0.000000e+00 : f32
    %129 = vector.broadcast %cst_27 : f32 to vector<2x64xf32>
    %130 = arith.maximumf %128, %129 : vector<2x64xf32>
    %c7_28 = arith.constant 7 : index
    %131 = memref.load %arg6[%c7_28] : memref<16xf32, #tpu.memory_space<smem>>
    %132 = vector.broadcast %131 : f32 to vector<2x64xf32>
    %133 = arith.mulf %130, %132 : vector<2x64xf32>
    %134 = arith.addf %118, %133 : vector<2x64xf32>
    %c16 = arith.constant 16 : index
    %135 = memref.load %arg4[%c16] : memref<32xf32, #tpu.memory_space<smem>>
    %136 = vector.broadcast %135 : f32 to vector<2x64xf32>
    %137 = arith.mulf %3, %136 : vector<2x64xf32>
    %c17 = arith.constant 17 : index
    %138 = memref.load %arg4[%c17] : memref<32xf32, #tpu.memory_space<smem>>
    %139 = vector.broadcast %138 : f32 to vector<2x64xf32>
    %140 = arith.mulf %4, %139 : vector<2x64xf32>
    %141 = arith.addf %137, %140 : vector<2x64xf32>
    %c8_29 = arith.constant 8 : index
    %142 = memref.load %arg5[%c8_29] : memref<16xf32, #tpu.memory_space<smem>>
    %143 = vector.broadcast %142 : f32 to vector<2x64xf32>
    %144 = arith.addf %141, %143 : vector<2x64xf32>
    %cst_30 = arith.constant 0.000000e+00 : f32
    %145 = vector.broadcast %cst_30 : f32 to vector<2x64xf32>
    %146 = arith.maximumf %144, %145 : vector<2x64xf32>
    %c8_31 = arith.constant 8 : index
    %147 = memref.load %arg6[%c8_31] : memref<16xf32, #tpu.memory_space<smem>>
    %148 = vector.broadcast %147 : f32 to vector<2x64xf32>
    %149 = arith.mulf %146, %148 : vector<2x64xf32>
    %150 = arith.addf %134, %149 : vector<2x64xf32>
    %c18 = arith.constant 18 : index
    %151 = memref.load %arg4[%c18] : memref<32xf32, #tpu.memory_space<smem>>
    %152 = vector.broadcast %151 : f32 to vector<2x64xf32>
    %153 = arith.mulf %3, %152 : vector<2x64xf32>
    %c19 = arith.constant 19 : index
    %154 = memref.load %arg4[%c19] : memref<32xf32, #tpu.memory_space<smem>>
    %155 = vector.broadcast %154 : f32 to vector<2x64xf32>
    %156 = arith.mulf %4, %155 : vector<2x64xf32>
    %157 = arith.addf %153, %156 : vector<2x64xf32>
    %c9_32 = arith.constant 9 : index
    %158 = memref.load %arg5[%c9_32] : memref<16xf32, #tpu.memory_space<smem>>
    %159 = vector.broadcast %158 : f32 to vector<2x64xf32>
    %160 = arith.addf %157, %159 : vector<2x64xf32>
    %cst_33 = arith.constant 0.000000e+00 : f32
    %161 = vector.broadcast %cst_33 : f32 to vector<2x64xf32>
    %162 = arith.maximumf %160, %161 : vector<2x64xf32>
    %c9_34 = arith.constant 9 : index
    %163 = memref.load %arg6[%c9_34] : memref<16xf32, #tpu.memory_space<smem>>
    %164 = vector.broadcast %163 : f32 to vector<2x64xf32>
    %165 = arith.mulf %162, %164 : vector<2x64xf32>
    %166 = arith.addf %150, %165 : vector<2x64xf32>
    %c20 = arith.constant 20 : index
    %167 = memref.load %arg4[%c20] : memref<32xf32, #tpu.memory_space<smem>>
    %168 = vector.broadcast %167 : f32 to vector<2x64xf32>
    %169 = arith.mulf %3, %168 : vector<2x64xf32>
    %c21 = arith.constant 21 : index
    %170 = memref.load %arg4[%c21] : memref<32xf32, #tpu.memory_space<smem>>
    %171 = vector.broadcast %170 : f32 to vector<2x64xf32>
    %172 = arith.mulf %4, %171 : vector<2x64xf32>
    %173 = arith.addf %169, %172 : vector<2x64xf32>
    %c10_35 = arith.constant 10 : index
    %174 = memref.load %arg5[%c10_35] : memref<16xf32, #tpu.memory_space<smem>>
    %175 = vector.broadcast %174 : f32 to vector<2x64xf32>
    %176 = arith.addf %173, %175 : vector<2x64xf32>
    %cst_36 = arith.constant 0.000000e+00 : f32
    %177 = vector.broadcast %cst_36 : f32 to vector<2x64xf32>
    %178 = arith.maximumf %176, %177 : vector<2x64xf32>
    %c10_37 = arith.constant 10 : index
    %179 = memref.load %arg6[%c10_37] : memref<16xf32, #tpu.memory_space<smem>>
    %180 = vector.broadcast %179 : f32 to vector<2x64xf32>
    %181 = arith.mulf %178, %180 : vector<2x64xf32>
    %182 = arith.addf %166, %181 : vector<2x64xf32>
    %c22 = arith.constant 22 : index
    %183 = memref.load %arg4[%c22] : memref<32xf32, #tpu.memory_space<smem>>
    %184 = vector.broadcast %183 : f32 to vector<2x64xf32>
    %185 = arith.mulf %3, %184 : vector<2x64xf32>
    %c23 = arith.constant 23 : index
    %186 = memref.load %arg4[%c23] : memref<32xf32, #tpu.memory_space<smem>>
    %187 = vector.broadcast %186 : f32 to vector<2x64xf32>
    %188 = arith.mulf %4, %187 : vector<2x64xf32>
    %189 = arith.addf %185, %188 : vector<2x64xf32>
    %c11_38 = arith.constant 11 : index
    %190 = memref.load %arg5[%c11_38] : memref<16xf32, #tpu.memory_space<smem>>
    %191 = vector.broadcast %190 : f32 to vector<2x64xf32>
    %192 = arith.addf %189, %191 : vector<2x64xf32>
    %cst_39 = arith.constant 0.000000e+00 : f32
    %193 = vector.broadcast %cst_39 : f32 to vector<2x64xf32>
    %194 = arith.maximumf %192, %193 : vector<2x64xf32>
    %c11_40 = arith.constant 11 : index
    %195 = memref.load %arg6[%c11_40] : memref<16xf32, #tpu.memory_space<smem>>
    %196 = vector.broadcast %195 : f32 to vector<2x64xf32>
    %197 = arith.mulf %194, %196 : vector<2x64xf32>
    %198 = arith.addf %182, %197 : vector<2x64xf32>
    %c24 = arith.constant 24 : index
    %199 = memref.load %arg4[%c24] : memref<32xf32, #tpu.memory_space<smem>>
    %200 = vector.broadcast %199 : f32 to vector<2x64xf32>
    %201 = arith.mulf %3, %200 : vector<2x64xf32>
    %c25 = arith.constant 25 : index
    %202 = memref.load %arg4[%c25] : memref<32xf32, #tpu.memory_space<smem>>
    %203 = vector.broadcast %202 : f32 to vector<2x64xf32>
    %204 = arith.mulf %4, %203 : vector<2x64xf32>
    %205 = arith.addf %201, %204 : vector<2x64xf32>
    %c12_41 = arith.constant 12 : index
    %206 = memref.load %arg5[%c12_41] : memref<16xf32, #tpu.memory_space<smem>>
    %207 = vector.broadcast %206 : f32 to vector<2x64xf32>
    %208 = arith.addf %205, %207 : vector<2x64xf32>
    %cst_42 = arith.constant 0.000000e+00 : f32
    %209 = vector.broadcast %cst_42 : f32 to vector<2x64xf32>
    %210 = arith.maximumf %208, %209 : vector<2x64xf32>
    %c12_43 = arith.constant 12 : index
    %211 = memref.load %arg6[%c12_43] : memref<16xf32, #tpu.memory_space<smem>>
    %212 = vector.broadcast %211 : f32 to vector<2x64xf32>
    %213 = arith.mulf %210, %212 : vector<2x64xf32>
    %214 = arith.addf %198, %213 : vector<2x64xf32>
    %c26 = arith.constant 26 : index
    %215 = memref.load %arg4[%c26] : memref<32xf32, #tpu.memory_space<smem>>
    %216 = vector.broadcast %215 : f32 to vector<2x64xf32>
    %217 = arith.mulf %3, %216 : vector<2x64xf32>
    %c27 = arith.constant 27 : index
    %218 = memref.load %arg4[%c27] : memref<32xf32, #tpu.memory_space<smem>>
    %219 = vector.broadcast %218 : f32 to vector<2x64xf32>
    %220 = arith.mulf %4, %219 : vector<2x64xf32>
    %221 = arith.addf %217, %220 : vector<2x64xf32>
    %c13_44 = arith.constant 13 : index
    %222 = memref.load %arg5[%c13_44] : memref<16xf32, #tpu.memory_space<smem>>
    %223 = vector.broadcast %222 : f32 to vector<2x64xf32>
    %224 = arith.addf %221, %223 : vector<2x64xf32>
    %cst_45 = arith.constant 0.000000e+00 : f32
    %225 = vector.broadcast %cst_45 : f32 to vector<2x64xf32>
    %226 = arith.maximumf %224, %225 : vector<2x64xf32>
    %c13_46 = arith.constant 13 : index
    %227 = memref.load %arg6[%c13_46] : memref<16xf32, #tpu.memory_space<smem>>
    %228 = vector.broadcast %227 : f32 to vector<2x64xf32>
    %229 = arith.mulf %226, %228 : vector<2x64xf32>
    %230 = arith.addf %214, %229 : vector<2x64xf32>
    %c28 = arith.constant 28 : index
    %231 = memref.load %arg4[%c28] : memref<32xf32, #tpu.memory_space<smem>>
    %232 = vector.broadcast %231 : f32 to vector<2x64xf32>
    %233 = arith.mulf %3, %232 : vector<2x64xf32>
    %c29 = arith.constant 29 : index
    %234 = memref.load %arg4[%c29] : memref<32xf32, #tpu.memory_space<smem>>
    %235 = vector.broadcast %234 : f32 to vector<2x64xf32>
    %236 = arith.mulf %4, %235 : vector<2x64xf32>
    %237 = arith.addf %233, %236 : vector<2x64xf32>
    %c14_47 = arith.constant 14 : index
    %238 = memref.load %arg5[%c14_47] : memref<16xf32, #tpu.memory_space<smem>>
    %239 = vector.broadcast %238 : f32 to vector<2x64xf32>
    %240 = arith.addf %237, %239 : vector<2x64xf32>
    %cst_48 = arith.constant 0.000000e+00 : f32
    %241 = vector.broadcast %cst_48 : f32 to vector<2x64xf32>
    %242 = arith.maximumf %240, %241 : vector<2x64xf32>
    %c14_49 = arith.constant 14 : index
    %243 = memref.load %arg6[%c14_49] : memref<16xf32, #tpu.memory_space<smem>>
    %244 = vector.broadcast %243 : f32 to vector<2x64xf32>
    %245 = arith.mulf %242, %244 : vector<2x64xf32>
    %246 = arith.addf %230, %245 : vector<2x64xf32>
    %c30 = arith.constant 30 : index
    %247 = memref.load %arg4[%c30] : memref<32xf32, #tpu.memory_space<smem>>
    %248 = vector.broadcast %247 : f32 to vector<2x64xf32>
    %249 = arith.mulf %3, %248 : vector<2x64xf32>
    %c31 = arith.constant 31 : index
    %250 = memref.load %arg4[%c31] : memref<32xf32, #tpu.memory_space<smem>>
    %251 = vector.broadcast %250 : f32 to vector<2x64xf32>
    %252 = arith.mulf %4, %251 : vector<2x64xf32>
    %253 = arith.addf %249, %252 : vector<2x64xf32>
    %c15_50 = arith.constant 15 : index
    %254 = memref.load %arg5[%c15_50] : memref<16xf32, #tpu.memory_space<smem>>
    %255 = vector.broadcast %254 : f32 to vector<2x64xf32>
    %256 = arith.addf %253, %255 : vector<2x64xf32>
    %cst_51 = arith.constant 0.000000e+00 : f32
    %257 = vector.broadcast %cst_51 : f32 to vector<2x64xf32>
    %258 = arith.maximumf %256, %257 : vector<2x64xf32>
    %c15_52 = arith.constant 15 : index
    %259 = memref.load %arg6[%c15_52] : memref<16xf32, #tpu.memory_space<smem>>
    %260 = vector.broadcast %259 : f32 to vector<2x64xf32>
    %261 = arith.mulf %258, %260 : vector<2x64xf32>
    %262 = arith.addf %246, %261 : vector<2x64xf32>
    %c0_53 = arith.constant 0 : index
    %c0_54 = arith.constant 0 : index
    %263 = vector.load %arg3[%c0_53, %c0_54] : memref<64x1600xf32, #tpu.memory_space<vmem>>, vector<64x1600xf32>
    %cst_55 = arith.constant dense<0.000000e+00> : vector<2x1600xf32>
    %264 = tpu.matmul %262, %263, %cst_55 {dimension_numbers = #tpu.dot_dimension_numbers<[1], [0], [0], [1], [0, 0, 1, 1], [], []>} : vector<2x64xf32>, vector<64x1600xf32>, vector<2x1600xf32> -> vector<2x1600xf32>
    %c0_56 = arith.constant 0 : index
    %c0_57 = arith.constant 0 : index
    %265 = vector.load %arg8[%c0_56, %c0_57] : memref<2x1600xf32, #tpu.memory_space<vmem>>, vector<2x1600xf32>
    tpu.vector_store %arg8[%c0_56, %c0_57], %264 {strides = array<i32>} : memref<2x1600xf32, #tpu.memory_space<vmem>>, vector<2x1600xf32>,
    return
  }
  func.func @transform_0(%arg0: i32) -> (i32, i32) {
    %c0_i32 = arith.constant 0 : i32
    %c0_i32_0 = arith.constant 0 : i32
    return %arg0, %c0_i32 : i32, i32
  }
  func.func @transform_1(%arg0: i32) -> (i32, i32) {
    %c0_i32 = arith.constant 0 : i32
    %c0_i32_0 = arith.constant 0 : i32
    %c0_i32_1 = arith.constant 0 : i32
    return %c0_i32, %c0_i32_0 : i32, i32
  }
  func.func @transform_2(%arg0: i32) -> (i32, i32) {
    %c0_i32 = arith.constant 0 : i32
    %c0_i32_0 = arith.constant 0 : i32
    %c0_i32_1 = arith.constant 0 : i32
    return %c0_i32, %c0_i32_0 : i32, i32
  }
  func.func @transform_3(%arg0: i32) -> i32 {
    %c0_i32 = arith.constant 0 : i32
    %c0_i32_0 = arith.constant 0 : i32
    return %c0_i32 : i32
  }
  func.func @transform_4(%arg0: i32) -> i32 {
    %c0_i32 = arith.constant 0 : i32
    %c0_i32_0 = arith.constant 0 : i32
    return %c0_i32 : i32
  }
  func.func @transform_5(%arg0: i32) -> i32 {
    %c0_i32 = arith.constant 0 : i32
    %c0_i32_0 = arith.constant 0 : i32
    return %c0_i32 : i32
  }
  func.func @transform_6(%arg0: i32) -> i32 {
    %c0_i32 = arith.constant 0 : i32
    %c0_i32_0 = arith.constant 0 : i32
    return %c0_i32 : i32
  }
  func.func @transform_7(%arg0: i32) -> (i32, i32) {
    %c0_i32 = arith.constant 0 : i32
    %c0_i32_0 = arith.constant 0 : i32
    return %arg0, %c0_i32 : i32, i32
  }
}

module attributes {stable_mosaic.version = 11 : i64} {
  func.func @_weightmod_kernel(%arg0: i32, %arg1: memref<2x3200xf32, #tpu.memory_space<vmem>>, %arg2: memref<3200x128xf32, #tpu.memory_space<vmem>>, %arg3: memref<64x1600xf32, #tpu.memory_space<vmem>>, %arg4: memref<32xf32, #tpu.memory_space<smem>>, %arg5: memref<16xf32, #tpu.memory_space<smem>>, %arg6: memref<16xf32, #tpu.memory_space<smem>>, %arg7: memref<1xf32, #tpu.memory_space<smem>>, %arg8: memref<2x1600xf32, #tpu.memory_space<vmem>>) attributes {dimension_semantics = [#tpu.dimension_semantics<parallel>], iteration_bounds = array<i64: 1>, scalar_prefetch = 0 : i64, scratch_operands = 0 : i64, tpu.core_type = #tpu.core_type<tc>, window_params = [{transform_indices = @transform_0, window_bounds = array<i64: 2, 3200>}, {pipeline_mode = #tpu.pipeline_mode<synchronous>, transform_indices = @transform_1, window_bounds = array<i64: 3200, 128>}, {pipeline_mode = #tpu.pipeline_mode<synchronous>, transform_indices = @transform_2, window_bounds = array<i64: 64, 1600>}, {transform_indices = @transform_3, window_bounds = array<i64: 32>}, {transform_indices = @transform_4, window_bounds = array<i64: 16>}, {transform_indices = @transform_5, window_bounds = array<i64: 16>}, {transform_indices = @transform_6, window_bounds = array<i64: 1>}, {transform_indices = @transform_7, window_bounds = array<i64: 2, 1600>}]} {
    %c0 = arith.constant 0 : index
    %c0_0 = arith.constant 0 : index
    %0 = vector.load %arg1[%c0, %c0_0] : memref<2x3200xf32, #tpu.memory_space<vmem>>, vector<2x3200xf32>
    %c0_1 = arith.constant 0 : index
    %c0_2 = arith.constant 0 : index
    %1 = vector.load %arg2[%c0_1, %c0_2] : memref<3200x128xf32, #tpu.memory_space<vmem>>, vector<3200x128xf32>
    %cst = arith.constant dense<0.000000e+00> : vector<2x128xf32>
    %2 = tpu.matmul %0, %1, %cst {dimension_numbers = #tpu.dot_dimension_numbers<[1], [0], [0], [1], [0, 0, 1, 1], [], []>} : vector<2x3200xf32>, vector<3200x128xf32>, vector<2x128xf32> -> vector<2x128xf32>
    %3 = vector.extract_strided_slice %2 {offsets = [0, 0], sizes = [2, 64], strides = [1, 1]} : vector<2x128xf32> to vector<2x64xf32>
    %4 = vector.extract_strided_slice %2 {offsets = [0, 64], sizes = [2, 64], strides = [1, 1]} : vector<2x128xf32> to vector<2x64xf32>
    %c0_3 = arith.constant 0 : index
    %5 = memref.load %arg7[%c0_3] : memref<1xf32, #tpu.memory_space<smem>>
    %6 = vector.broadcast %5 : f32 to vector<2x64xf32>
    %c0_4 = arith.constant 0 : index
    %7 = memref.load %arg4[%c0_4] : memref<32xf32, #tpu.memory_space<smem>>
    %8 = vector.broadcast %7 : f32 to vector<2x64xf32>
    %9 = arith.mulf %3, %8 : vector<2x64xf32>
    %c1 = arith.constant 1 : index
    %10 = memref.load %arg4[%c1] : memref<32xf32, #tpu.memory_space<smem>>
    %11 = vector.broadcast %10 : f32 to vector<2x64xf32>
    %12 = arith.mulf %4, %11 : vector<2x64xf32>
    %13 = arith.addf %9, %12 : vector<2x64xf32>
    %c0_5 = arith.constant 0 : index
    %14 = memref.load %arg5[%c0_5] : memref<16xf32, #tpu.memory_space<smem>>
    %15 = vector.broadcast %14 : f32 to vector<2x64xf32>
    %16 = arith.addf %13, %15 : vector<2x64xf32>
    %cst_6 = arith.constant 0.000000e+00 : f32
    %17 = vector.broadcast %cst_6 : f32 to vector<2x64xf32>
    %18 = arith.maximumf %16, %17 : vector<2x64xf32>
    %c0_7 = arith.constant 0 : index
    %19 = memref.load %arg6[%c0_7] : memref<16xf32, #tpu.memory_space<smem>>
    %20 = vector.broadcast %19 : f32 to vector<2x64xf32>
    %21 = arith.mulf %18, %20 : vector<2x64xf32>
    %22 = arith.addf %6, %21 : vector<2x64xf32>
    %c2 = arith.constant 2 : index
    %23 = memref.load %arg4[%c2] : memref<32xf32, #tpu.memory_space<smem>>
    %24 = vector.broadcast %23 : f32 to vector<2x64xf32>
    %25 = arith.mulf %3, %24 : vector<2x64xf32>
    %c3 = arith.constant 3 : index
    %26 = memref.load %arg4[%c3] : memref<32xf32, #tpu.memory_space<smem>>
    %27 = vector.broadcast %26 : f32 to vector<2x64xf32>
    %28 = arith.mulf %4, %27 : vector<2x64xf32>
    %29 = arith.addf %25, %28 : vector<2x64xf32>
    %c1_8 = arith.constant 1 : index
    %30 = memref.load %arg5[%c1_8] : memref<16xf32, #tpu.memory_space<smem>>
    %31 = vector.broadcast %30 : f32 to vector<2x64xf32>
    %32 = arith.addf %29, %31 : vector<2x64xf32>
    %cst_9 = arith.constant 0.000000e+00 : f32
    %33 = vector.broadcast %cst_9 : f32 to vector<2x64xf32>
    %34 = arith.maximumf %32, %33 : vector<2x64xf32>
    %c1_10 = arith.constant 1 : index
    %35 = memref.load %arg6[%c1_10] : memref<16xf32, #tpu.memory_space<smem>>
    %36 = vector.broadcast %35 : f32 to vector<2x64xf32>
    %37 = arith.mulf %34, %36 : vector<2x64xf32>
    %38 = arith.addf %22, %37 : vector<2x64xf32>
    %c4 = arith.constant 4 : index
    %39 = memref.load %arg4[%c4] : memref<32xf32, #tpu.memory_space<smem>>
    %40 = vector.broadcast %39 : f32 to vector<2x64xf32>
    %41 = arith.mulf %3, %40 : vector<2x64xf32>
    %c5 = arith.constant 5 : index
    %42 = memref.load %arg4[%c5] : memref<32xf32, #tpu.memory_space<smem>>
    %43 = vector.broadcast %42 : f32 to vector<2x64xf32>
    %44 = arith.mulf %4, %43 : vector<2x64xf32>
    %45 = arith.addf %41, %44 : vector<2x64xf32>
    %c2_11 = arith.constant 2 : index
    %46 = memref.load %arg5[%c2_11] : memref<16xf32, #tpu.memory_space<smem>>
    %47 = vector.broadcast %46 : f32 to vector<2x64xf32>
    %48 = arith.addf %45, %47 : vector<2x64xf32>
    %cst_12 = arith.constant 0.000000e+00 : f32
    %49 = vector.broadcast %cst_12 : f32 to vector<2x64xf32>
    %50 = arith.maximumf %48, %49 : vector<2x64xf32>
    %c2_13 = arith.constant 2 : index
    %51 = memref.load %arg6[%c2_13] : memref<16xf32, #tpu.memory_space<smem>>
    %52 = vector.broadcast %51 : f32 to vector<2x64xf32>
    %53 = arith.mulf %50, %52 : vector<2x64xf32>
    %54 = arith.addf %38, %53 : vector<2x64xf32>
    %c6 = arith.constant 6 : index
    %55 = memref.load %arg4[%c6] : memref<32xf32, #tpu.memory_space<smem>>
    %56 = vector.broadcast %55 : f32 to vector<2x64xf32>
    %57 = arith.mulf %3, %56 : vector<2x64xf32>
    %c7 = arith.constant 7 : index
    %58 = memref.load %arg4[%c7] : memref<32xf32, #tpu.memory_space<smem>>
    %59 = vector.broadcast %58 : f32 to vector<2x64xf32>
    %60 = arith.mulf %4, %59 : vector<2x64xf32>
    %61 = arith.addf %57, %60 : vector<2x64xf32>
    %c3_14 = arith.constant 3 : index
    %62 = memref.load %arg5[%c3_14] : memref<16xf32, #tpu.memory_space<smem>>
    %63 = vector.broadcast %62 : f32 to vector<2x64xf32>
    %64 = arith.addf %61, %63 : vector<2x64xf32>
    %cst_15 = arith.constant 0.000000e+00 : f32
    %65 = vector.broadcast %cst_15 : f32 to vector<2x64xf32>
    %66 = arith.maximumf %64, %65 : vector<2x64xf32>
    %c3_16 = arith.constant 3 : index
    %67 = memref.load %arg6[%c3_16] : memref<16xf32, #tpu.memory_space<smem>>
    %68 = vector.broadcast %67 : f32 to vector<2x64xf32>
    %69 = arith.mulf %66, %68 : vector<2x64xf32>
    %70 = arith.addf %54, %69 : vector<2x64xf32>
    %c8 = arith.constant 8 : index
    %71 = memref.load %arg4[%c8] : memref<32xf32, #tpu.memory_space<smem>>
    %72 = vector.broadcast %71 : f32 to vector<2x64xf32>
    %73 = arith.mulf %3, %72 : vector<2x64xf32>
    %c9 = arith.constant 9 : index
    %74 = memref.load %arg4[%c9] : memref<32xf32, #tpu.memory_space<smem>>
    %75 = vector.broadcast %74 : f32 to vector<2x64xf32>
    %76 = arith.mulf %4, %75 : vector<2x64xf32>
    %77 = arith.addf %73, %76 : vector<2x64xf32>
    %c4_17 = arith.constant 4 : index
    %78 = memref.load %arg5[%c4_17] : memref<16xf32, #tpu.memory_space<smem>>
    %79 = vector.broadcast %78 : f32 to vector<2x64xf32>
    %80 = arith.addf %77, %79 : vector<2x64xf32>
    %cst_18 = arith.constant 0.000000e+00 : f32
    %81 = vector.broadcast %cst_18 : f32 to vector<2x64xf32>
    %82 = arith.maximumf %80, %81 : vector<2x64xf32>
    %c4_19 = arith.constant 4 : index
    %83 = memref.load %arg6[%c4_19] : memref<16xf32, #tpu.memory_space<smem>>
    %84 = vector.broadcast %83 : f32 to vector<2x64xf32>
    %85 = arith.mulf %82, %84 : vector<2x64xf32>
    %86 = arith.addf %70, %85 : vector<2x64xf32>
    %c10 = arith.constant 10 : index
    %87 = memref.load %arg4[%c10] : memref<32xf32, #tpu.memory_space<smem>>
    %88 = vector.broadcast %87 : f32 to vector<2x64xf32>
    %89 = arith.mulf %3, %88 : vector<2x64xf32>
    %c11 = arith.constant 11 : index
    %90 = memref.load %arg4[%c11] : memref<32xf32, #tpu.memory_space<smem>>
    %91 = vector.broadcast %90 : f32 to vector<2x64xf32>
    %92 = arith.mulf %4, %91 : vector<2x64xf32>
    %93 = arith.addf %89, %92 : vector<2x64xf32>
    %c5_20 = arith.constant 5 : index
    %94 = memref.load %arg5[%c5_20] : memref<16xf32, #tpu.memory_space<smem>>
    %95 = vector.broadcast %94 : f32 to vector<2x64xf32>
    %96 = arith.addf %93, %95 : vector<2x64xf32>
    %cst_21 = arith.constant 0.000000e+00 : f32
    %97 = vector.broadcast %cst_21 : f32 to vector<2x64xf32>
    %98 = arith.maximumf %96, %97 : vector<2x64xf32>
    %c5_22 = arith.constant 5 : index
    %99 = memref.load %arg6[%c5_22] : memref<16xf32, #tpu.memory_space<smem>>
    %100 = vector.broadcast %99 : f32 to vector<2x64xf32>
    %101 = arith.mulf %98, %100 : vector<2x64xf32>
    %102 = arith.addf %86, %101 : vector<2x64xf32>
    %c12 = arith.constant 12 : index
    %103 = memref.load %arg4[%c12] : memref<32xf32, #tpu.memory_space<smem>>
    %104 = vector.broadcast %103 : f32 to vector<2x64xf32>
    %105 = arith.mulf %3, %104 : vector<2x64xf32>
    %c13 = arith.constant 13 : index
    %106 = memref.load %arg4[%c13] : memref<32xf32, #tpu.memory_space<smem>>
    %107 = vector.broadcast %106 : f32 to vector<2x64xf32>
    %108 = arith.mulf %4, %107 : vector<2x64xf32>
    %109 = arith.addf %105, %108 : vector<2x64xf32>
    %c6_23 = arith.constant 6 : index
    %110 = memref.load %arg5[%c6_23] : memref<16xf32, #tpu.memory_space<smem>>
    %111 = vector.broadcast %110 : f32 to vector<2x64xf32>
    %112 = arith.addf %109, %111 : vector<2x64xf32>
    %cst_24 = arith.constant 0.000000e+00 : f32
    %113 = vector.broadcast %cst_24 : f32 to vector<2x64xf32>
    %114 = arith.maximumf %112, %113 : vector<2x64xf32>
    %c6_25 = arith.constant 6 : index
    %115 = memref.load %arg6[%c6_25] : memref<16xf32, #tpu.memory_space<smem>>
    %116 = vector.broadcast %115 : f32 to vector<2x64xf32>
    %117 = arith.mulf %114, %116 : vector<2x64xf32>
    %118 = arith.addf %102, %117 : vector<2x64xf32>
    %c14 = arith.constant 14 : index
    %119 = memref.load %arg4[%c14] : memref<32xf32, #tpu.memory_space<smem>>
    %120 = vector.broadcast %119 : f32 to vector<2x64xf32>
    %121 = arith.mulf %3, %120 : vector<2x64xf32>
    %c15 = arith.constant 15 : index
    %122 = memref.load %arg4[%c15] : memref<32xf32, #tpu.memory_space<smem>>
    %123 = vector.broadcast %122 : f32 to vector<2x64xf32>
    %124 = arith.mulf %4, %123 : vector<2x64xf32>
    %125 = arith.addf %121, %124 : vector<2x64xf32>
    %c7_26 = arith.constant 7 : index
    %126 = memref.load %arg5[%c7_26] : memref<16xf32, #tpu.memory_space<smem>>
    %127 = vector.broadcast %126 : f32 to vector<2x64xf32>
    %128 = arith.addf %125, %127 : vector<2x64xf32>
    %cst_27 = arith.constant 0.000000e+00 : f32
    %129 = vector.broadcast %cst_27 : f32 to vector<2x64xf32>
    %130 = arith.maximumf %128, %129 : vector<2x64xf32>
    %c7_28 = arith.constant 7 : index
    %131 = memref.load %arg6[%c7_28] : memref<16xf32, #tpu.memory_space<smem>>
    %132 = vector.broadcast %131 : f32 to vector<2x64xf32>
    %133 = arith.mulf %130, %132 : vector<2x64xf32>
    %134 = arith.addf %118, %133 : vector<2x64xf32>
    %c16 = arith.constant 16 : index
    %135 = memref.load %arg4[%c16] : memref<32xf32, #tpu.memory_space<smem>>
    %136 = vector.broadcast %135 : f32 to vector<2x64xf32>
    %137 = arith.mulf %3, %136 : vector<2x64xf32>
    %c17 = arith.constant 17 : index
    %138 = memref.load %arg4[%c17] : memref<32xf32, #tpu.memory_space<smem>>
    %139 = vector.broadcast %138 : f32 to vector<2x64xf32>
    %140 = arith.mulf %4, %139 : vector<2x64xf32>
    %141 = arith.addf %137, %140 : vector<2x64xf32>
    %c8_29 = arith.constant 8 : index
    %142 = memref.load %arg5[%c8_29] : memref<16xf32, #tpu.memory_space<smem>>
    %143 = vector.broadcast %142 : f32 to vector<2x64xf32>
    %144 = arith.addf %141, %143 : vector<2x64xf32>
    %cst_30 = arith.constant 0.000000e+00 : f32
    %145 = vector.broadcast %cst_30 : f32 to vector<2x64xf32>
    %146 = arith.maximumf %144, %145 : vector<2x64xf32>
    %c8_31 = arith.constant 8 : index
    %147 = memref.load %arg6[%c8_31] : memref<16xf32, #tpu.memory_space<smem>>
    %148 = vector.broadcast %147 : f32 to vector<2x64xf32>
    %149 = arith.mulf %146, %148 : vector<2x64xf32>
    %150 = arith.addf %134, %149 : vector<2x64xf32>
    %c18 = arith.constant 18 : index
    %151 = memref.load %arg4[%c18] : memref<32xf32, #tpu.memory_space<smem>>
    %152 = vector.broadcast %151 : f32 to vector<2x64xf32>
    %153 = arith.mulf %3, %152 : vector<2x64xf32>
    %c19 = arith.constant 19 : index
    %154 = memref.load %arg4[%c19] : memref<32xf32, #tpu.memory_space<smem>>
    %155 = vector.broadcast %154 : f32 to vector<2x64xf32>
    %156 = arith.mulf %4, %155 : vector<2x64xf32>
    %157 = arith.addf %153, %156 : vector<2x64xf32>
    %c9_32 = arith.constant 9 : index
    %158 = memref.load %arg5[%c9_32] : memref<16xf32, #tpu.memory_space<smem>>
    %159 = vector.broadcast %158 : f32 to vector<2x64xf32>
    %160 = arith.addf %157, %159 : vector<2x64xf32>
    %cst_33 = arith.constant 0.000000e+00 : f32
    %161 = vector.broadcast %cst_33 : f32 to vector<2x64xf32>
    %162 = arith.maximumf %160, %161 : vector<2x64xf32>
    %c9_34 = arith.constant 9 : index
    %163 = memref.load %arg6[%c9_34] : memref<16xf32, #tpu.memory_space<smem>>
    %164 = vector.broadcast %163 : f32 to vector<2x64xf32>
    %165 = arith.mulf %162, %164 : vector<2x64xf32>
    %166 = arith.addf %150, %165 : vector<2x64xf32>
    %c20 = arith.constant 20 : index
    %167 = memref.load %arg4[%c20] : memref<32xf32, #tpu.memory_space<smem>>
    %168 = vector.broadcast %167 : f32 to vector<2x64xf32>
    %169 = arith.mulf %3, %168 : vector<2x64xf32>
    %c21 = arith.constant 21 : index
    %170 = memref.load %arg4[%c21] : memref<32xf32, #tpu.memory_space<smem>>
    %171 = vector.broadcast %170 : f32 to vector<2x64xf32>
    %172 = arith.mulf %4, %171 : vector<2x64xf32>
    %173 = arith.addf %169, %172 : vector<2x64xf32>
    %c10_35 = arith.constant 10 : index
    %174 = memref.load %arg5[%c10_35] : memref<16xf32, #tpu.memory_space<smem>>
    %175 = vector.broadcast %174 : f32 to vector<2x64xf32>
    %176 = arith.addf %173, %175 : vector<2x64xf32>
    %cst_36 = arith.constant 0.000000e+00 : f32
    %177 = vector.broadcast %cst_36 : f32 to vector<2x64xf32>
    %178 = arith.maximumf %176, %177 : vector<2x64xf32>
    %c10_37 = arith.constant 10 : index
    %179 = memref.load %arg6[%c10_37] : memref<16xf32, #tpu.memory_space<smem>>
    %180 = vector.broadcast %179 : f32 to vector<2x64xf32>
    %181 = arith.mulf %178, %180 : vector<2x64xf32>
    %182 = arith.addf %166, %181 : vector<2x64xf32>
    %c22 = arith.constant 22 : index
    %183 = memref.load %arg4[%c22] : memref<32xf32, #tpu.memory_space<smem>>
    %184 = vector.broadcast %183 : f32 to vector<2x64xf32>
    %185 = arith.mulf %3, %184 : vector<2x64xf32>
    %c23 = arith.constant 23 : index
    %186 = memref.load %arg4[%c23] : memref<32xf32, #tpu.memory_space<smem>>
    %187 = vector.broadcast %186 : f32 to vector<2x64xf32>
    %188 = arith.mulf %4, %187 : vector<2x64xf32>
    %189 = arith.addf %185, %188 : vector<2x64xf32>
    %c11_38 = arith.constant 11 : index
    %190 = memref.load %arg5[%c11_38] : memref<16xf32, #tpu.memory_space<smem>>
    %191 = vector.broadcast %190 : f32 to vector<2x64xf32>
    %192 = arith.addf %189, %191 : vector<2x64xf32>
    %cst_39 = arith.constant 0.000000e+00 : f32
    %193 = vector.broadcast %cst_39 : f32 to vector<2x64xf32>
    %194 = arith.maximumf %192, %193 : vector<2x64xf32>
    %c11_40 = arith.constant 11 : index
    %195 = memref.load %arg6[%c11_40] : memref<16xf32, #tpu.memory_space<smem>>
    %196 = vector.broadcast %195 : f32 to vector<2x64xf32>
    %197 = arith.mulf %194, %196 : vector<2x64xf32>
    %198 = arith.addf %182, %197 : vector<2x64xf32>
    %c24 = arith.constant 24 : index
    %199 = memref.load %arg4[%c24] : memref<32xf32, #tpu.memory_space<smem>>
    %200 = vector.broadcast %199 : f32 to vector<2x64xf32>
    %201 = arith.mulf %3, %200 : vector<2x64xf32>
    %c25 = arith.constant 25 : index
    %202 = memref.load %arg4[%c25] : memref<32xf32, #tpu.memory_space<smem>>
    %203 = vector.broadcast %202 : f32 to vector<2x64xf32>
    %204 = arith.mulf %4, %203 : vector<2x64xf32>
    %205 = arith.addf %201, %204 : vector<2x64xf32>
    %c12_41 = arith.constant 12 : index
    %206 = memref.load %arg5[%c12_41] : memref<16xf32, #tpu.memory_space<smem>>
    %207 = vector.broadcast %206 : f32 to vector<2x64xf32>
    %208 = arith.addf %205, %207 : vector<2x64xf32>
    %cst_42 = arith.constant 0.000000e+00 : f32
    %209 = vector.broadcast %cst_42 : f32 to vector<2x64xf32>
    %210 = arith.maximumf %208, %209 : vector<2x64xf32>
    %c12_43 = arith.constant 12 : index
    %211 = memref.load %arg6[%c12_43] : memref<16xf32, #tpu.memory_space<smem>>
    %212 = vector.broadcast %211 : f32 to vector<2x64xf32>
    %213 = arith.mulf %210, %212 : vector<2x64xf32>
    %214 = arith.addf %198, %213 : vector<2x64xf32>
    %c26 = arith.constant 26 : index
    %215 = memref.load %arg4[%c26] : memref<32xf32, #tpu.memory_space<smem>>
    %216 = vector.broadcast %215 : f32 to vector<2x64xf32>
    %217 = arith.mulf %3, %216 : vector<2x64xf32>
    %c27 = arith.constant 27 : index
    %218 = memref.load %arg4[%c27] : memref<32xf32, #tpu.memory_space<smem>>
    %219 = vector.broadcast %218 : f32 to vector<2x64xf32>
    %220 = arith.mulf %4, %219 : vector<2x64xf32>
    %221 = arith.addf %217, %220 : vector<2x64xf32>
    %c13_44 = arith.constant 13 : index
    %222 = memref.load %arg5[%c13_44] : memref<16xf32, #tpu.memory_space<smem>>
    %223 = vector.broadcast %222 : f32 to vector<2x64xf32>
    %224 = arith.addf %221, %223 : vector<2x64xf32>
    %cst_45 = arith.constant 0.000000e+00 : f32
    %225 = vector.broadcast %cst_45 : f32 to vector<2x64xf32>
    %226 = arith.maximumf %224, %225 : vector<2x64xf32>
    %c13_46 = arith.constant 13 : index
    %227 = memref.load %arg6[%c13_46] : memref<16xf32, #tpu.memory_space<smem>>
    %228 = vector.broadcast %227 : f32 to vector<2x64xf32>
    %229 = arith.mulf %226, %228 : vector<2x64xf32>
    %230 = arith.addf %214, %229 : vector<2x64xf32>
    %c28 = arith.constant 28 : index
    %231 = memref.load %arg4[%c28] : memref<32xf32, #tpu.memory_space<smem>>
    %232 = vector.broadcast %231 : f32 to vector<2x64xf32>
    %233 = arith.mulf %3, %232 : vector<2x64xf32>
    %c29 = arith.constant 29 : index
    %234 = memref.load %arg4[%c29] : memref<32xf32, #tpu.memory_space<smem>>
    %235 = vector.broadcast %234 : f32 to vector<2x64xf32>
    %236 = arith.mulf %4, %235 : vector<2x64xf32>
    %237 = arith.addf %233, %236 : vector<2x64xf32>
    %c14_47 = arith.constant 14 : index
    %238 = memref.load %arg5[%c14_47] : memref<16xf32, #tpu.memory_space<smem>>
    %239 = vector.broadcast %238 : f32 to vector<2x64xf32>
    %240 = arith.addf %237, %239 : vector<2x64xf32>
    %cst_48 = arith.constant 0.000000e+00 : f32
    %241 = vector.broadcast %cst_48 : f32 to vector<2x64xf32>
    %242 = arith.maximumf %240, %241 : vector<2x64xf32>
    %c14_49 = arith.constant 14 : index
    %243 = memref.load %arg6[%c14_49] : memref<16xf32, #tpu.memory_space<smem>>
    %244 = vector.broadcast %243 : f32 to vector<2x64xf32>
    %245 = arith.mulf %242, %244 : vector<2x64xf32>
    %246 = arith.addf %230, %245 : vector<2x64xf32>
    %c30 = arith.constant 30 : index
    %247 = memref.load %arg4[%c30] : memref<32xf32, #tpu.memory_space<smem>>
    %248 = vector.broadcast %247 : f32 to vector<2x64xf32>
    %249 = arith.mulf %3, %248 : vector<2x64xf32>
    %c31 = arith.constant 31 : index
    %250 = memref.load %arg4[%c31] : memref<32xf32, #tpu.memory_space<smem>>
    %251 = vector.broadcast %250 : f32 to vector<2x64xf32>
    %252 = arith.mulf %4, %251 : vector<2x64xf32>
    %253 = arith.addf %249, %252 : vector<2x64xf32>
    %c15_50 = arith.constant 15 : index
    %254 = memref.load %arg5[%c15_50] : memref<16xf32, #tpu.memory_space<smem>>
    %255 = vector.broadcast %254 : f32 to vector<2x64xf32>
    %256 = arith.addf %253, %255 : vector<2x64xf32>
    %cst_51 = arith.constant 0.000000e+00 : f32
    %257 = vector.broadcast %cst_51 : f32 to vector<2x64xf32>
    %258 = arith.maximumf %256, %257 : vector<2x64xf32>
    %c15_52 = arith.constant 15 : index
    %259 = memref.load %arg6[%c15_52] : memref<16xf32, #tpu.memory_space<smem>>
    %260 = vector.broadcast %259 : f32 to vector<2x64xf32>
    %261 = arith.mulf %258, %260 : vector<2x64xf32>
    %262 = arith.addf %246, %261 : vector<2x64xf32>
    %c0_53 = arith.constant 0 : index
    %c0_54 = arith.constant 0 : index
    %263 = vector.load %arg3[%c0_53, %c0_54] : memref<64x1600xf32, #tpu.memory_space<vmem>>, vector<64x1600xf32>
    %cst_55 = arith.constant dense<0.000000e+00> : vector<2x1600xf32>
    %264 = tpu.matmul %262, %263, %cst_55 {dimension_numbers = #tpu.dot_dimension_numbers<[1], [0], [0], [1], [0, 0, 1, 1], [], []>} : vector<2x64xf32>, vector<64x1600xf32>, vector<2x1600xf32> -> vector<2x1600xf32>
    %c0_56 = arith.constant 0 : index
    %c0_57 = arith.constant 0 : index
    %265 = vector.load %arg8[%c0_56, %c0_57] : memref<2x1600xf32, #tpu.memory_space<vmem>>, vector<2x1600xf32>
    tpu.vector_store %arg8[%c0_56, %c0_57], %264 {strides = array<i32>} : memref<2x1600xf32, #tpu.memory_space<vmem>>, vector<2x1600xf32>,
    return
  }
  func.func @transform_0(%arg0: i32) -> (i32, i32) {
    %c0_i32 = arith.constant 0 : i32
    %c0_i32_0 = arith.constant 0 : i32
    return %arg0, %c0_i32 : i32, i32
  }
  func.func @transform_1(%arg0: i32) -> (i32, i32) {
    %c0_i32 = arith.constant 0 : i32
    %c0_i32_0 = arith.constant 0 : i32
    %c0_i32_1 = arith.constant 0 : i32
    return %c0_i32, %c0_i32_0 : i32, i32
  }
  func.func @transform_2(%arg0: i32) -> (i32, i32) {
    %c0_i32 = arith.constant 0 : i32
    %c0_i32_0 = arith.constant 0 : i32
    %c0_i32_1 = arith.constant 0 : i32
    return %c0_i32, %c0_i32_0 : i32, i32
  }
  func.func @transform_3(%arg0: i32) -> i32 {
    %c0_i32 = arith.constant 0 : i32
    %c0_i32_0 = arith.constant 0 : i32
    return %c0_i32 : i32
  }
  func.func @transform_4(%arg0: i32) -> i32 {
    %c0_i32 = arith.constant 0 : i32
    %c0_i32_0 = arith.constant 0 : i32
    return %c0_i32 : i32
  }
  func.func @transform_5(%arg0: i32) -> i32 {
    %c0_i32 = arith.constant 0 : i32
    %c0_i32_0 = arith.constant 0 : i32
    return %c0_i32 : i32
  }
  func.func @transform_6(%arg0: i32) -> i32 {
    %c0_i32 = arith.constant 0 : i32
    %c0_i32_0 = arith.constant 0 : i32
    return %c0_i32 : i32
  }
  func.func @transform_7(%arg0: i32) -> (i32, i32) {
    %c0_i32 = arith.constant 0 : i32
    %c0_i32_0 = arith.constant 0 : i32
    return %arg0, %c0_i32 : i32, i32
  }
}

</mosaic_0001>

<llo_original>
// kernel: tpu_custom_call.1
$region0: #{tpu_custom_call.1}
  #allocation0 [shape = 'u32[]', space=smem, size = 0x4, offset = 0x4, fixed_abs, tag = 'smem constant byte address 0x4 - core index']
  #allocation1 [shape = 'u32[144,128]{1,0:T(1,128)}', space=vmem, size = 0x12000, scoped, tag = 'internal scratch']
  #allocation2 [shape = 'f32[1]{0:T(128)S(6)}', space=smem, size = 0x200, scoped, tag = 'scoped memory for tpu_custom_call.1']
  %s0 = inlined_call_operand.hbm [shape: f32[2,3200], index: 0, kind: input, shape index: {}]
  %s1 = inlined_call_operand.hbm [shape: f32[3200,128], index: 1, kind: input, shape index: {}]
  %s2 = inlined_call_operand.hbm [shape: f32[64,1600], index: 2, kind: input, shape index: {}]
  %s3 = inlined_call_operand.hbm [shape: f32[32], index: 3, kind: input, shape index: {}]
  %s4 = inlined_call_operand.hbm [shape: f32[16], index: 4, kind: input, shape index: {}]
  %s5 = inlined_call_operand.hbm [shape: f32[16], index: 5, kind: input, shape index: {}]
  %s6 = inlined_call_operand.<no memory space> [shape: f32[1], index: 6, kind: input, shape index: {}]
  %s7 = inlined_call_operand.hbm [shape: f32[2,1600], index: 7, kind: output, shape index: {}]
  %s8 = sld [smem:[#allocation0]]
  $region62: #{tpu_custom_call.1} parent=0
    _
  %s10 = ssub.s32 1, %s8
  %s11 = scalar_select 0, %s10, %s8
  %12 = sst [smem:[#allocation2]] %s6
  $region1: #{tpu_custom_call.1} parent=0
    #allocation3 [shape = 'u8[25600]{0}', space=vmem, size = 0x6400, scoped, tag = 'input window, operand 0, single buffered']
    #allocation4 [shape = 's32[1]{0}', space=sflag, size = 0x4, scoped, tag = 'scoped memory for tpu_custom_call.1']
    #allocation5 [shape = 's32[1]{0}', space=sflag, size = 0x4, scoped, tag = 'scoped memory for tpu_custom_call.1']
    #allocation6 [shape = 's32[1]{0}', space=sflag, size = 0x4, scoped, tag = 'scoped memory for tpu_custom_call.1']
    #allocation7 [shape = 'u8[1638400]{0}', space=vmem, size = 0x190000, scoped, tag = 'input window, operand 1, single buffered']
    #allocation8 [shape = 's32[1]{0}', space=sflag, size = 0x4, scoped, tag = 'scoped memory for tpu_custom_call.1']
    #allocation9 [shape = 'u8[425984]{0}', space=vmem, size = 0x68000, scoped, tag = 'input window, operand 2, single buffered']
    #allocation10 [shape = 'u8[512]{0}', space=smem, size = 0x200, scoped, tag = 'input window, operand 3, single buffered']
    #allocation11 [shape = 'u8[512]{0}', space=smem, size = 0x200, scoped, tag = 'input window, operand 4, single buffered']
    #allocation12 [shape = 's32[1]{0}', space=sflag, size = 0x4, scoped, tag = 'scoped memory for tpu_custom_call.1']
    #allocation13 [shape = 'u8[512]{0}', space=smem, size = 0x200, scoped, tag = 'input window, operand 5, single buffered']
    #allocation14 [shape = 'u8[13312]{0}', space=vmem, size = 0x3400, scoped, tag = 'output window, operand 0, single buffered']
    %13 = vsyncpa [#allocation4], 0
    %14 = vsyncpa [#allocation8], 0
    %15 = vsyncpa [#allocation6], 0
    %16 = vsyncpa [#allocation12], 0
    %17 = vsyncpa [#allocation5], 0
    // Predicated region
    $region2: #{tpu_custom_call.1} parent=1 // pred_check
      _
    $region3: #{tpu_custom_call.1} parent=1 // pred_check_branch
      %19 = sbr.rel (0) target = $region5
    $region4: #{tpu_custom_call.1} parent=1 // pred_region
      %s21 = ssub.s32 800, 800
      %22 = vsyncadd [#allocation4], %s21
      %s24 = sshll.u32 [#allocation3], 4
      %s25 = int_to_ptr.vmem [resolvable:$true] %s24
      %27 = dma.hbm_to_vmem [thread:$0]  %s0, 800, %s25, [#allocation4]
    $region5: #{tpu_custom_call.1} parent=1 // pred_fallthru
      _
    // Predicated region
    $region6: #{tpu_custom_call.1} parent=1 // pred_check
      _
    $region7: #{tpu_custom_call.1} parent=1 // pred_check_branch
      %29 = sbr.rel (0) target = $region9
    $region8: #{tpu_custom_call.1} parent=1 // pred_region
      %s31 = ssub.s32 51200, 51200
      %32 = vsyncadd [#allocation8], %s31
      %s33 = sshll.u32 [#allocation7], 4
      %s34 = int_to_ptr.vmem [resolvable:$true] %s33
      %39 = dma.hbm_to_vmem [thread:$0]  %s1, 51200, %s34, [#allocation8], 128, 128, 8
    $region9: #{tpu_custom_call.1} parent=1 // pred_fallthru
      _
    // Predicated region
    $region10: #{tpu_custom_call.1} parent=1 // pred_check
      _
    $region11: #{tpu_custom_call.1} parent=1 // pred_check_branch
      %41 = sbr.rel (0) target = $region13
    $region12: #{tpu_custom_call.1} parent=1 // pred_region
      %s43 = ssub.s32 13312, 13312
      %44 = vsyncadd [#allocation8], %s43
      %s45 = sshll.u32 [#allocation9], 4
      %s46 = int_to_ptr.vmem [resolvable:$true] %s45
      %51 = dma.hbm_to_vmem [thread:$0]  %s2, 13312, %s46, [#allocation8], 1664, 1664, 104
    $region13: #{tpu_custom_call.1} parent=1 // pred_fallthru
      _
    // Predicated region
    $region14: #{tpu_custom_call.1} parent=1 // pred_check
      _
    $region15: #{tpu_custom_call.1} parent=1 // pred_check_branch
      %53 = sbr.rel (0) target = $region17
    $region16: #{tpu_custom_call.1} parent=1 // pred_region
      %s55 = ssub.s32 16, 16
      %56 = vsyncadd [#allocation6], %s55
      %59 = dma.hbm_to_smem %s3, 16, [#allocation10], [#allocation6]
    $region17: #{tpu_custom_call.1} parent=1 // pred_fallthru
      _
    // Predicated region
    $region18: #{tpu_custom_call.1} parent=1 // pred_check
      _
    $region19: #{tpu_custom_call.1} parent=1 // pred_check_branch
      %61 = sbr.rel (0) target = $region21
    $region20: #{tpu_custom_call.1} parent=1 // pred_region
      %s63 = ssub.s32 16, 16
      %64 = vsyncadd [#allocation12], %s63
      %67 = dma.hbm_to_smem %s4, 16, [#allocation11], [#allocation12]
    $region21: #{tpu_custom_call.1} parent=1 // pred_fallthru
      _
    // Predicated region
    $region22: #{tpu_custom_call.1} parent=1 // pred_check
      _
    $region23: #{tpu_custom_call.1} parent=1 // pred_check_branch
      %69 = sbr.rel (0) target = $region25
    $region24: #{tpu_custom_call.1} parent=1 // pred_region
      %s71 = ssub.s32 16, 16
      %72 = vsyncadd [#allocation12], %s71
      %75 = dma.hbm_to_smem %s5, 16, [#allocation13], [#allocation12]
    $region25: #{tpu_custom_call.1} parent=1 // pred_fallthru
      _
    // Predicated region
    $region26: #{tpu_custom_call.1} parent=1 // pred_check
      _
    $region27: #{tpu_custom_call.1} parent=1 // pred_check_branch
      %77 = sbr.rel (0) target = $region29
    $region28: #{tpu_custom_call.1} parent=1 // pred_region
      _
    $region29: #{tpu_custom_call.1} parent=1 // pred_fallthru
      _
    // Predicated region
    $region30: #{tpu_custom_call.1} parent=1 // pred_check
      _
    $region31: #{tpu_custom_call.1} parent=1 // pred_check_branch
      %79 = sbr.rel (0) target = $region33
    $region32: #{tpu_custom_call.1} parent=1 // pred_region
      %80 = dma.done [#allocation4], 800
    $region33: #{tpu_custom_call.1} parent=1 // pred_fallthru
      _
    // Predicated region
    $region34: #{tpu_custom_call.1} parent=1 // pred_check
      _
    $region35: #{tpu_custom_call.1} parent=1 // pred_check_branch
      %82 = sbr.rel (0) target = $region37
    $region36: #{tpu_custom_call.1} parent=1 // pred_region
      %83 = dma.done [#allocation8], 51200
    $region37: #{tpu_custom_call.1} parent=1 // pred_fallthru
      _
    // Predicated region
    $region38: #{tpu_custom_call.1} parent=1 // pred_check
      _
    $region39: #{tpu_custom_call.1} parent=1 // pred_check_branch
      %85 = sbr.rel (0) target = $region41
    $region40: #{tpu_custom_call.1} parent=1 // pred_region
      %86 = dma.done [#allocation8], 13312
    $region41: #{tpu_custom_call.1} parent=1 // pred_fallthru
      _
    // Predicated region
    $region42: #{tpu_custom_call.1} parent=1 // pred_check
      _
    $region43: #{tpu_custom_call.1} parent=1 // pred_check_branch
      %88 = sbr.rel (0) target = $region45
    $region44: #{tpu_custom_call.1} parent=1 // pred_region
      %89 = dma.done [#allocation6], 16
    $region45: #{tpu_custom_call.1} parent=1 // pred_fallthru
      _
    // Predicated region
    $region46: #{tpu_custom_call.1} parent=1 // pred_check
      _
    $region47: #{tpu_custom_call.1} parent=1 // pred_check_branch
      %91 = sbr.rel (0) target = $region49
    $region48: #{tpu_custom_call.1} parent=1 // pred_region
      %92 = dma.done [#allocation12], 16
    $region49: #{tpu_custom_call.1} parent=1 // pred_fallthru
      _
    // Predicated region
    $region50: #{tpu_custom_call.1} parent=1 // pred_check
      _
    $region51: #{tpu_custom_call.1} parent=1 // pred_check_branch
      %94 = sbr.rel (0) target = $region53
    $region52: #{tpu_custom_call.1} parent=1 // pred_region
      %95 = dma.done [#allocation12], 16
    $region53: #{tpu_custom_call.1} parent=1 // pred_fallthru
      _
    %96 = sfence
    %v97 = vld [vmem:[#allocation3] sm:$0xff]
    %v98 = vld [vmem:[#allocation3 + $0x8] sm:$0xff]
    %v99 = vld [vmem:[#allocation3 + $0x10] sm:$0xff]
    %v100 = vld [vmem:[#allocation3 + $0x18] sm:$0xff]
    %v101 = vld [vmem:[#allocation3 + $0x20] sm:$0xff]
    %v102 = vld [vmem:[#allocation3 + $0x28] sm:$0xff]
    %v103 = vld [vmem:[#allocation3 + $0x30] sm:$0x3]
    %v104 = vld [vmem:[#allocation7] sm:$0xff]
    %v105 = vld [vmem:[#allocation7 + $0x8] sm:$0xff]
    %v106 = vld [vmem:[#allocation7 + $0x10] sm:$0xff]
    %v107 = vld [vmem:[#allocation7 + $0x18] sm:$0xff]
    %v108 = vld [vmem:[#allocation7 + $0x20] sm:$0xff]
    %v109 = vld [vmem:[#allocation7 + $0x28] sm:$0xff]
    %v110 = vld [vmem:[#allocation7 + $0x30] sm:$0xff]
    %v111 = vld [vmem:[#allocation7 + $0x38] sm:$0xff]
    %v112 = vld [vmem:[#allocation7 + $0x40] sm:$0xff]
    %v113 = vld [vmem:[#allocation7 + $0x48] sm:$0xff]
    %v114 = vld [vmem:[#allocation7 + $0x50] sm:$0xff]
    %v115 = vld [vmem:[#allocation7 + $0x58] sm:$0xff]
    %v116 = vld [vmem:[#allocation7 + $0x60] sm:$0xff]
    %v117 = vld [vmem:[#allocation7 + $0x68] sm:$0xff]
    %v118 = vld [vmem:[#allocation7 + $0x70] sm:$0xff]
    %v119 = vld [vmem:[#allocation7 + $0x78] sm:$0xff]
    %v120 = vld [vmem:[#allocation7 + $0x80] sm:$0xff]
    %v121 = vld [vmem:[#allocation7 + $0x88] sm:$0xff]
    %v122 = vld [vmem:[#allocation7 + $0x90] sm:$0xff]
    %v123 = vld [vmem:[#allocation7 + $0x98] sm:$0xff]
    %v124 = vld [vmem:[#allocation7 + $0xa0] sm:$0xff]
    %v125 = vld [vmem:[#allocation7 + $0xa8] sm:$0xff]
    %v126 = vld [vmem:[#allocation7 + $0xb0] sm:$0xff]
    %v127 = vld [vmem:[#allocation7 + $0xb8] sm:$0xff]
    %v128 = vld [vmem:[#allocation7 + $0xc0] sm:$0xff]
    %v129 = vld [vmem:[#allocation7 + $0xc8] sm:$0xff]
    %v130 = vld [vmem:[#allocation7 + $0xd0] sm:$0xff]
    %v131 = vld [vmem:[#allocation7 + $0xd8] sm:$0xff]
    %v132 = vld [vmem:[#allocation7 + $0xe0] sm:$0xff]
    %v133 = vld [vmem:[#allocation7 + $0xe8] sm:$0xff]
    %v134 = vld [vmem:[#allocation7 + $0xf0] sm:$0xff]
    %v135 = vld [vmem:[#allocation7 + $0xf8] sm:$0xff]
    %v136 = vld [vmem:[#allocation7 + $0x100] sm:$0xff]
    %v137 = vld [vmem:[#allocation7 + $0x108] sm:$0xff]
    %v138 = vld [vmem:[#allocation7 + $0x110] sm:$0xff]
    %v139 = vld [vmem:[#allocation7 + $0x118] sm:$0xff]
    %v140 = vld [vmem:[#allocation7 + $0x120] sm:$0xff]
    %v141 = vld [vmem:[#allocation7 + $0x128] sm:$0xff]
    %v142 = vld [vmem:[#allocation7 + $0x130] sm:$0xff]
    %v143 = vld [vmem:[#allocation7 + $0x138] sm:$0xff]
    %v144 = vld [vmem:[#allocation7 + $0x140] sm:$0xff]
    %v145 = vld [vmem:[#allocation7 + $0x148] sm:$0xff]
    %v146 = vld [vmem:[#allocation7 + $0x150] sm:$0xff]
    %v147 = vld [vmem:[#allocation7 + $0x158] sm:$0xff]
    %v148 = vld [vmem:[#allocation7 + $0x160] sm:$0xff]
    %v149 = vld [vmem:[#allocation7 + $0x168] sm:$0xff]
    %v150 = vld [vmem:[#allocation7 + $0x170] sm:$0xff]
    %v151 = vld [vmem:[#allocation7 + $0x178] sm:$0xff]
    %v152 = vld [vmem:[#allocation7 + $0x180] sm:$0xff]
    %v153 = vld [vmem:[#allocation7 + $0x188] sm:$0xff]
    %v154 = vld [vmem:[#allocation7 + $0x190] sm:$0xff]
    %v155 = vld [vmem:[#allocation7 + $0x198] sm:$0xff]
    %v156 = vld [vmem:[#allocation7 + $0x1a0] sm:$0xff]
    %v157 = vld [vmem:[#allocation7 + $0x1a8] sm:$0xff]
    %v158 = vld [vmem:[#allocation7 + $0x1b0] sm:$0xff]
    %v159 = vld [vmem:[#allocation7 + $0x1b8] sm:$0xff]
    %v160 = vld [vmem:[#allocation7 + $0x1c0] sm:$0xff]
    %v161 = vld [vmem:[#allocation7 + $0x1c8] sm:$0xff]
    %v162 = vld [vmem:[#allocation7 + $0x1d0] sm:$0xff]
    %v163 = vld [vmem:[#allocation7 + $0x1d8] sm:$0xff]
    %v164 = vld [vmem:[#allocation7 + $0x1e0] sm:$0xff]
    %v165 = vld [vmem:[#allocation7 + $0x1e8] sm:$0xff]
    %v166 = vld [vmem:[#allocation7 + $0x1f0] sm:$0xff]
    %v167 = vld [vmem:[#allocation7 + $0x1f8] sm:$0xff]
    %v168 = vld [vmem:[#allocation7 + $0x200] sm:$0xff]
    %v169 = vld [vmem:[#allocation7 + $0x208] sm:$0xff]
    %v170 = vld [vmem:[#allocation7 + $0x210] sm:$0xff]
    %v171 = vld [vmem:[#allocation7 + $0x218] sm:$0xff]
    %v172 = vld [vmem:[#allocation7 + $0x220] sm:$0xff]
    %v173 = vld [vmem:[#allocation7 + $0x228] sm:$0xff]
    %v174 = vld [vmem:[#allocation7 + $0x230] sm:$0xff]
    %v175 = vld [vmem:[#allocation7 + $0x238] sm:$0xff]
    %v176 = vld [vmem:[#allocation7 + $0x240] sm:$0xff]
    %v177 = vld [vmem:[#allocation7 + $0x248] sm:$0xff]
    %v178 = vld [vmem:[#allocation7 + $0x250] sm:$0xff]
    %v179 = vld [vmem:[#allocation7 + $0x258] sm:$0xff]
    %v180 = vld [vmem:[#allocation7 + $0x260] sm:$0xff]
    %v181 = vld [vmem:[#allocation7 + $0x268] sm:$0xff]
    %v182 = vld [vmem:[#allocation7 + $0x270] sm:$0xff]
    %v183 = vld [vmem:[#allocation7 + $0x278] sm:$0xff]
    %v184 = vld [vmem:[#allocation7 + $0x280] sm:$0xff]
    %v185 = vld [vmem:[#allocation7 + $0x288] sm:$0xff]
    %v186 = vld [vmem:[#allocation7 + $0x290] sm:$0xff]
    %v187 = vld [vmem:[#allocation7 + $0x298] sm:$0xff]
    %v188 = vld [vmem:[#allocation7 + $0x2a0] sm:$0xff]
    %v189 = vld [vmem:[#allocation7 + $0x2a8] sm:$0xff]
    %v190 = vld [vmem:[#allocation7 + $0x2b0] sm:$0xff]
    %v191 = vld [vmem:[#allocation7 + $0x2b8] sm:$0xff]
    %v192 = vld [vmem:[#allocation7 + $0x2c0] sm:$0xff]
    %v193 = vld [vmem:[#allocation7 + $0x2c8] sm:$0xff]
    %v194 = vld [vmem:[#allocation7 + $0x2d0] sm:$0xff]
    %v195 = vld [vmem:[#allocation7 + $0x2d8] sm:$0xff]
    %v196 = vld [vmem:[#allocation7 + $0x2e0] sm:$0xff]
    %v197 = vld [vmem:[#allocation7 + $0x2e8] sm:$0xff]
    %v198 = vld [vmem:[#allocation7 + $0x2f0] sm:$0xff]
    %v199 = vld [vmem:[#allocation7 + $0x2f8] sm:$0xff]
    %v200 = vld [vmem:[#allocation7 + $0x300] sm:$0xff]
    %v201 = vld [vmem:[#allocation7 + $0x308] sm:$0xff]
    %v202 = vld [vmem:[#allocation7 + $0x310] sm:$0xff]
    %v203 = vld [vmem:[#allocation7 + $0x318] sm:$0xff]
    %v204 = vld [vmem:[#allocation7 + $0x320] sm:$0xff]
    %v205 = vld [vmem:[#allocation7 + $0x328] sm:$0xff]
    %v206 = vld [vmem:[#allocation7 + $0x330] sm:$0xff]
    %v207 = vld [vmem:[#allocation7 + $0x338] sm:$0xff]
    %v208 = vld [vmem:[#allocation7 + $0x340] sm:$0xff]
    %v209 = vld [vmem:[#allocation7 + $0x348] sm:$0xff]
    %v210 = vld [vmem:[#allocation7 + $0x350] sm:$0xff]
    %v211 = vld [vmem:[#allocation7 + $0x358] sm:$0xff]
    %v212 = vld [vmem:[#allocation7 + $0x360] sm:$0xff]
    %v213 = vld [vmem:[#allocation7 + $0x368] sm:$0xff]
    %v214 = vld [vmem:[#allocation7 + $0x370] sm:$0xff]
    %v215 = vld [vmem:[#allocation7 + $0x378] sm:$0xff]
    %v216 = vld [vmem:[#allocation7 + $0x380] sm:$0xff]
    %v217 = vld [vmem:[#allocation7 + $0x388] sm:$0xff]
    %v218 = vld [vmem:[#allocation7 + $0x390] sm:$0xff]
    %v219 = vld [vmem:[#allocation7 + $0x398] sm:$0xff]
    %v220 = vld [vmem:[#allocation7 + $0x3a0] sm:$0xff]
    %v221 = vld [vmem:[#allocation7 + $0x3a8] sm:$0xff]
    %v222 = vld [vmem:[#allocation7 + $0x3b0] sm:$0xff]
    %v223 = vld [vmem:[#allocation7 + $0x3b8] sm:$0xff]
    %v224 = vld [vmem:[#allocation7 + $0x3c0] sm:$0xff]
    %v225 = vld [vmem:[#allocation7 + $0x3c8] sm:$0xff]
    %v226 = vld [vmem:[#allocation7 + $0x3d0] sm:$0xff]
    %v227 = vld [vmem:[#allocation7 + $0x3d8] sm:$0xff]
    %v228 = vld [vmem:[#allocation7 + $0x3e0] sm:$0xff]
    %v229 = vld [vmem:[#allocation7 + $0x3e8] sm:$0xff]
    %v230 = vld [vmem:[#allocation7 + $0x3f0] sm:$0xff]
    %v231 = vld [vmem:[#allocation7 + $0x3f8] sm:$0xff]
    %v232 = vld [vmem:[#allocation7 + $0x400] sm:$0xff]
    %v233 = vld [vmem:[#allocation7 + $0x408] sm:$0xff]
    %v234 = vld [vmem:[#allocation7 + $0x410] sm:$0xff]
    %v235 = vld [vmem:[#allocation7 + $0x418] sm:$0xff]
    %v236 = vld [vmem:[#allocation7 + $0x420] sm:$0xff]
    %v237 = vld [vmem:[#allocation7 + $0x428] sm:$0xff]
    %v238 = vld [vmem:[#allocation7 + $0x430] sm:$0xff]
    %v239 = vld [vmem:[#allocation7 + $0x438] sm:$0xff]
    %v240 = vld [vmem:[#allocation7 + $0x440] sm:$0xff]
    %v241 = vld [vmem:[#allocation7 + $0x448] sm:$0xff]
    %v242 = vld [vmem:[#allocation7 + $0x450] sm:$0xff]
    %v243 = vld [vmem:[#allocation7 + $0x458] sm:$0xff]
    %v244 = vld [vmem:[#allocation7 + $0x460] sm:$0xff]
    %v245 = vld [vmem:[#allocation7 + $0x468] sm:$0xff]
    %v246 = vld [vmem:[#allocation7 + $0x470] sm:$0xff]
    %v247 = vld [vmem:[#allocation7 + $0x478] sm:$0xff]
    %v248 = vld [vmem:[#allocation7 + $0x480] sm:$0xff]
    %v249 = vld [vmem:[#allocation7 + $0x488] sm:$0xff]
    %v250 = vld [vmem:[#allocation7 + $0x490] sm:$0xff]
    %v251 = vld [vmem:[#allocation7 + $0x498] sm:$0xff]
    %v252 = vld [vmem:[#allocation7 + $0x4a0] sm:$0xff]
    %v253 = vld [vmem:[#allocation7 + $0x4a8] sm:$0xff]
    %v254 = vld [vmem:[#allocation7 + $0x4b0] sm:$0xff]
    %v255 = vld [vmem:[#allocation7 + $0x4b8] sm:$0xff]
    %v256 = vld [vmem:[#allocation7 + $0x4c0] sm:$0xff]
    %v257 = vld [vmem:[#allocation7 + $0x4c8] sm:$0xff]
    %v258 = vld [vmem:[#allocation7 + $0x4d0] sm:$0xff]
    %v259 = vld [vmem:[#allocation7 + $0x4d8] sm:$0xff]
    %v260 = vld [vmem:[#allocation7 + $0x4e0] sm:$0xff]
    %v261 = vld [vmem:[#allocation7 + $0x4e8] sm:$0xff]
    %v262 = vld [vmem:[#allocation7 + $0x4f0] sm:$0xff]
    %v263 = vld [vmem:[#allocation7 + $0x4f8] sm:$0xff]
    %v264 = vld [vmem:[#allocation7 + $0x500] sm:$0xff]
    %v265 = vld [vmem:[#allocation7 + $0x508] sm:$0xff]
    %v266 = vld [vmem:[#allocation7 + $0x510] sm:$0xff]
    %v267 = vld [vmem:[#allocation7 + $0x518] sm:$0xff]
    %v268 = vld [vmem:[#allocation7 + $0x520] sm:$0xff]
    %v269 = vld [vmem:[#allocation7 + $0x528] sm:$0xff]
    %v270 = vld [vmem:[#allocation7 + $0x530] sm:$0xff]
    %v271 = vld [vmem:[#allocation7 + $0x538] sm:$0xff]
    %v272 = vld [vmem:[#allocation7 + $0x540] sm:$0xff]
    %v273 = vld [vmem:[#allocation7 + $0x548] sm:$0xff]
    %v274 = vld [vmem:[#allocation7 + $0x550] sm:$0xff]
    %v275 = vld [vmem:[#allocation7 + $0x558] sm:$0xff]
    %v276 = vld [vmem:[#allocation7 + $0x560] sm:$0xff]
    %v277 = vld [vmem:[#allocation7 + $0x568] sm:$0xff]
    %v278 = vld [vmem:[#allocation7 + $0x570] sm:$0xff]
    %v279 = vld [vmem:[#allocation7 + $0x578] sm:$0xff]
    %v280 = vld [vmem:[#allocation7 + $0x580] sm:$0xff]
    %v281 = vld [vmem:[#allocation7 + $0x588] sm:$0xff]
    %v282 = vld [vmem:[#allocation7 + $0x590] sm:$0xff]
    %v283 = vld [vmem:[#allocation7 + $0x598] sm:$0xff]
    %v284 = vld [vmem:[#allocation7 + $0x5a0] sm:$0xff]
    %v285 = vld [vmem:[#allocation7 + $0x5a8] sm:$0xff]
    %v286 = vld [vmem:[#allocation7 + $0x5b0] sm:$0xff]
    %v287 = vld [vmem:[#allocation7 + $0x5b8] sm:$0xff]
    %v288 = vld [vmem:[#allocation7 + $0x5c0] sm:$0xff]
    %v289 = vld [vmem:[#allocation7 + $0x5c8] sm:$0xff]
    %v290 = vld [vmem:[#allocation7 + $0x5d0] sm:$0xff]
    %v291 = vld [vmem:[#allocation7 + $0x5d8] sm:$0xff]
    %v292 = vld [vmem:[#allocation7 + $0x5e0] sm:$0xff]
    %v293 = vld [vmem:[#allocation7 + $0x5e8] sm:$0xff]
    %v294 = vld [vmem:[#allocation7 + $0x5f0] sm:$0xff]
    %v295 = vld [vmem:[#allocation7 + $0x5f8] sm:$0xff]
    %v296 = vld [vmem:[#allocation7 + $0x600] sm:$0xff]
    %v297 = vld [vmem:[#allocation7 + $0x608] sm:$0xff]
    %v298 = vld [vmem:[#allocation7 + $0x610] sm:$0xff]
    %v299 = vld [vmem:[#allocation7 + $0x618] sm:$0xff]
    %v300 = vld [vmem:[#allocation7 + $0x620] sm:$0xff]
    %v301 = vld [vmem:[#allocation7 + $0x628] sm:$0xff]
    %v302 = vld [vmem:[#allocation7 + $0x630] sm:$0xff]
    %v303 = vld [vmem:[#allocation7 + $0x638] sm:$0xff]
    %v304 = vld [vmem:[#allocation7 + $0x640] sm:$0xff]
    %v305 = vld [vmem:[#allocation7 + $0x648] sm:$0xff]
    %v306 = vld [vmem:[#allocation7 + $0x650] sm:$0xff]
    %v307 = vld [vmem:[#allocation7 + $0x658] sm:$0xff]
    %v308 = vld [vmem:[#allocation7 + $0x660] sm:$0xff]
    %v309 = vld [vmem:[#allocation7 + $0x668] sm:$0xff]
    %v310 = vld [vmem:[#allocation7 + $0x670] sm:$0xff]
    %v311 = vld [vmem:[#allocation7 + $0x678] sm:$0xff]
    %v312 = vld [vmem:[#allocation7 + $0x680] sm:$0xff]
    %v313 = vld [vmem:[#allocation7 + $0x688] sm:$0xff]
    %v314 = vld [vmem:[#allocation7 + $0x690] sm:$0xff]
    %v315 = vld [vmem:[#allocation7 + $0x698] sm:$0xff]
    %v316 = vld [vmem:[#allocation7 + $0x6a0] sm:$0xff]
    %v317 = vld [vmem:[#allocation7 + $0x6a8] sm:$0xff]
    %v318 = vld [vmem:[#allocation7 + $0x6b0] sm:$0xff]
    %v319 = vld [vmem:[#allocation7 + $0x6b8] sm:$0xff]
    %v320 = vld [vmem:[#allocation7 + $0x6c0] sm:$0xff]
    %v321 = vld [vmem:[#allocation7 + $0x6c8] sm:$0xff]
    %v322 = vld [vmem:[#allocation7 + $0x6d0] sm:$0xff]
    %v323 = vld [vmem:[#allocation7 + $0x6d8] sm:$0xff]
    %v324 = vld [vmem:[#allocation7 + $0x6e0] sm:$0xff]
    %v325 = vld [vmem:[#allocation7 + $0x6e8] sm:$0xff]
    %v326 = vld [vmem:[#allocation7 + $0x6f0] sm:$0xff]
    %v327 = vld [vmem:[#allocation7 + $0x6f8] sm:$0xff]
    %v328 = vld [vmem:[#allocation7 + $0x700] sm:$0xff]
    %v329 = vld [vmem:[#allocation7 + $0x708] sm:$0xff]
    %v330 = vld [vmem:[#allocation7 + $0x710] sm:$0xff]
    %v331 = vld [vmem:[#allocation7 + $0x718] sm:$0xff]
    %v332 = vld [vmem:[#allocation7 + $0x720] sm:$0xff]
    %v333 = vld [vmem:[#allocation7 + $0x728] sm:$0xff]
    %v334 = vld [vmem:[#allocation7 + $0x730] sm:$0xff]
    %v335 = vld [vmem:[#allocation7 + $0x738] sm:$0xff]
    %v336 = vld [vmem:[#allocation7 + $0x740] sm:$0xff]
    %v337 = vld [vmem:[#allocation7 + $0x748] sm:$0xff]
    %v338 = vld [vmem:[#allocation7 + $0x750] sm:$0xff]
    %v339 = vld [vmem:[#allocation7 + $0x758] sm:$0xff]
    %v340 = vld [vmem:[#allocation7 + $0x760] sm:$0xff]
    %v341 = vld [vmem:[#allocation7 + $0x768] sm:$0xff]
    %v342 = vld [vmem:[#allocation7 + $0x770] sm:$0xff]
    %v343 = vld [vmem:[#allocation7 + $0x778] sm:$0xff]
    %v344 = vld [vmem:[#allocation7 + $0x780] sm:$0xff]
    %v345 = vld [vmem:[#allocation7 + $0x788] sm:$0xff]
    %v346 = vld [vmem:[#allocation7 + $0x790] sm:$0xff]
    %v347 = vld [vmem:[#allocation7 + $0x798] sm:$0xff]
    %v348 = vld [vmem:[#allocation7 + $0x7a0] sm:$0xff]
    %v349 = vld [vmem:[#allocation7 + $0x7a8] sm:$0xff]
    %v350 = vld [vmem:[#allocation7 + $0x7b0] sm:$0xff]
    %v351 = vld [vmem:[#allocation7 + $0x7b8] sm:$0xff]
    %v352 = vld [vmem:[#allocation7 + $0x7c0] sm:$0xff]
    %v353 = vld [vmem:[#allocation7 + $0x7c8] sm:$0xff]
    %v354 = vld [vmem:[#allocation7 + $0x7d0] sm:$0xff]
    %v355 = vld [vmem:[#allocation7 + $0x7d8] sm:$0xff]
    %v356 = vld [vmem:[#allocation7 + $0x7e0] sm:$0xff]
    %v357 = vld [vmem:[#allocation7 + $0x7e8] sm:$0xff]
    %v358 = vld [vmem:[#allocation7 + $0x7f0] sm:$0xff]
    %v359 = vld [vmem:[#allocation7 + $0x7f8] sm:$0xff]
    %v360 = vld [vmem:[#allocation7 + $0x800] sm:$0xff]
    %v361 = vld [vmem:[#allocation7 + $0x808] sm:$0xff]
    %v362 = vld [vmem:[#allocation7 + $0x810] sm:$0xff]
    %v363 = vld [vmem:[#allocation7 + $0x818] sm:$0xff]
    %v364 = vld [vmem:[#allocation7 + $0x820] sm:$0xff]
    %v365 = vld [vmem:[#allocation7 + $0x828] sm:$0xff]
    %v366 = vld [vmem:[#allocation7 + $0x830] sm:$0xff]
    %v367 = vld [vmem:[#allocation7 + $0x838] sm:$0xff]
    %v368 = vld [vmem:[#allocation7 + $0x840] sm:$0xff]
    %v369 = vld [vmem:[#allocation7 + $0x848] sm:$0xff]
    %v370 = vld [vmem:[#allocation7 + $0x850] sm:$0xff]
    %v371 = vld [vmem:[#allocation7 + $0x858] sm:$0xff]
    %v372 = vld [vmem:[#allocation7 + $0x860] sm:$0xff]
    %v373 = vld [vmem:[#allocation7 + $0x868] sm:$0xff]
    %v374 = vld [vmem:[#allocation7 + $0x870] sm:$0xff]
    %v375 = vld [vmem:[#allocation7 + $0x878] sm:$0xff]
    %v376 = vld [vmem:[#allocation7 + $0x880] sm:$0xff]
    %v377 = vld [vmem:[#allocation7 + $0x888] sm:$0xff]
    %v378 = vld [vmem:[#allocation7 + $0x890] sm:$0xff]
    %v379 = vld [vmem:[#allocation7 + $0x898] sm:$0xff]
    %v380 = vld [vmem:[#allocation7 + $0x8a0] sm:$0xff]
    %v381 = vld [vmem:[#allocation7 + $0x8a8] sm:$0xff]
    %v382 = vld [vmem:[#allocation7 + $0x8b0] sm:$0xff]
    %v383 = vld [vmem:[#allocation7 + $0x8b8] sm:$0xff]
    %v384 = vld [vmem:[#allocation7 + $0x8c0] sm:$0xff]
    %v385 = vld [vmem:[#allocation7 + $0x8c8] sm:$0xff]
    %v386 = vld [vmem:[#allocation7 + $0x8d0] sm:$0xff]
    %v387 = vld [vmem:[#allocation7 + $0x8d8] sm:$0xff]
    %v388 = vld [vmem:[#allocation7 + $0x8e0] sm:$0xff]
    %v389 = vld [vmem:[#allocation7 + $0x8e8] sm:$0xff]
    %v390 = vld [vmem:[#allocation7 + $0x8f0] sm:$0xff]
    %v391 = vld [vmem:[#allocation7 + $0x8f8] sm:$0xff]
    %v392 = vld [vmem:[#allocation7 + $0x900] sm:$0xff]
    %v393 = vld [vmem:[#allocation7 + $0x908] sm:$0xff]
    %v394 = vld [vmem:[#allocation7 + $0x910] sm:$0xff]
    %v395 = vld [vmem:[#allocation7 + $0x918] sm:$0xff]
    %v396 = vld [vmem:[#allocation7 + $0x920] sm:$0xff]
    %v397 = vld [vmem:[#allocation7 + $0x928] sm:$0xff]
    %v398 = vld [vmem:[#allocation7 + $0x930] sm:$0xff]
    %v399 = vld [vmem:[#allocation7 + $0x938] sm:$0xff]
    %v400 = vld [vmem:[#allocation7 + $0x940] sm:$0xff]
    %v401 = vld [vmem:[#allocation7 + $0x948] sm:$0xff]
    %v402 = vld [vmem:[#allocation7 + $0x950] sm:$0xff]
    %v403 = vld [vmem:[#allocation7 + $0x958] sm:$0xff]
    %v404 = vld [vmem:[#allocation7 + $0x960] sm:$0xff]
    %v405 = vld [vmem:[#allocation7 + $0x968] sm:$0xff]
    %v406 = vld [vmem:[#allocation7 + $0x970] sm:$0xff]
    %v407 = vld [vmem:[#allocation7 + $0x978] sm:$0xff]
    %v408 = vld [vmem:[#allocation7 + $0x980] sm:$0xff]
    %v409 = vld [vmem:[#allocation7 + $0x988] sm:$0xff]
    %v410 = vld [vmem:[#allocation7 + $0x990] sm:$0xff]
    %v411 = vld [vmem:[#allocation7 + $0x998] sm:$0xff]
    %v412 = vld [vmem:[#allocation7 + $0x9a0] sm:$0xff]
    %v413 = vld [vmem:[#allocation7 + $0x9a8] sm:$0xff]
    %v414 = vld [vmem:[#allocation7 + $0x9b0] sm:$0xff]
    %v415 = vld [vmem:[#allocation7 + $0x9b8] sm:$0xff]
    %v416 = vld [vmem:[#allocation7 + $0x9c0] sm:$0xff]
    %v417 = vld [vmem:[#allocation7 + $0x9c8] sm:$0xff]
    %v418 = vld [vmem:[#allocation7 + $0x9d0] sm:$0xff]
    %v419 = vld [vmem:[#allocation7 + $0x9d8] sm:$0xff]
    %v420 = vld [vmem:[#allocation7 + $0x9e0] sm:$0xff]
    %v421 = vld [vmem:[#allocation7 + $0x9e8] sm:$0xff]
    %v422 = vld [vmem:[#allocation7 + $0x9f0] sm:$0xff]
    %v423 = vld [vmem:[#allocation7 + $0x9f8] sm:$0xff]
    %v424 = vld [vmem:[#allocation7 + $0xa00] sm:$0xff]
    %v425 = vld [vmem:[#allocation7 + $0xa08] sm:$0xff]
    %v426 = vld [vmem:[#allocation7 + $0xa10] sm:$0xff]
    %v427 = vld [vmem:[#allocation7 + $0xa18] sm:$0xff]
    %v428 = vld [vmem:[#allocation7 + $0xa20] sm:$0xff]
    %v429 = vld [vmem:[#allocation7 + $0xa28] sm:$0xff]
    %v430 = vld [vmem:[#allocation7 + $0xa30] sm:$0xff]
    %v431 = vld [vmem:[#allocation7 + $0xa38] sm:$0xff]
    %v432 = vld [vmem:[#allocation7 + $0xa40] sm:$0xff]
    %v433 = vld [vmem:[#allocation7 + $0xa48] sm:$0xff]
    %v434 = vld [vmem:[#allocation7 + $0xa50] sm:$0xff]
    %v435 = vld [vmem:[#allocation7 + $0xa58] sm:$0xff]
    %v436 = vld [vmem:[#allocation7 + $0xa60] sm:$0xff]
    %v437 = vld [vmem:[#allocation7 + $0xa68] sm:$0xff]
    %v438 = vld [vmem:[#allocation7 + $0xa70] sm:$0xff]
    %v439 = vld [vmem:[#allocation7 + $0xa78] sm:$0xff]
    %v440 = vld [vmem:[#allocation7 + $0xa80] sm:$0xff]
    %v441 = vld [vmem:[#allocation7 + $0xa88] sm:$0xff]
    %v442 = vld [vmem:[#allocation7 + $0xa90] sm:$0xff]
    %v443 = vld [vmem:[#allocation7 + $0xa98] sm:$0xff]
    %v444 = vld [vmem:[#allocation7 + $0xaa0] sm:$0xff]
    %v445 = vld [vmem:[#allocation7 + $0xaa8] sm:$0xff]
    %v446 = vld [vmem:[#allocation7 + $0xab0] sm:$0xff]
    %v447 = vld [vmem:[#allocation7 + $0xab8] sm:$0xff]
    %v448 = vld [vmem:[#allocation7 + $0xac0] sm:$0xff]
    %v449 = vld [vmem:[#allocation7 + $0xac8] sm:$0xff]
    %v450 = vld [vmem:[#allocation7 + $0xad0] sm:$0xff]
    %v451 = vld [vmem:[#allocation7 + $0xad8] sm:$0xff]
    %v452 = vld [vmem:[#allocation7 + $0xae0] sm:$0xff]
    %v453 = vld [vmem:[#allocation7 + $0xae8] sm:$0xff]
    %v454 = vld [vmem:[#allocation7 + $0xaf0] sm:$0xff]
    %v455 = vld [vmem:[#allocation7 + $0xaf8] sm:$0xff]
    %v456 = vld [vmem:[#allocation7 + $0xb00] sm:$0xff]
    %v457 = vld [vmem:[#allocation7 + $0xb08] sm:$0xff]
    %v458 = vld [vmem:[#allocation7 + $0xb10] sm:$0xff]
    %v459 = vld [vmem:[#allocation7 + $0xb18] sm:$0xff]
    %v460 = vld [vmem:[#allocation7 + $0xb20] sm:$0xff]
    %v461 = vld [vmem:[#allocation7 + $0xb28] sm:$0xff]
    %v462 = vld [vmem:[#allocation7 + $0xb30] sm:$0xff]
    %v463 = vld [vmem:[#allocation7 + $0xb38] sm:$0xff]
    %v464 = vld [vmem:[#allocation7 + $0xb40] sm:$0xff]
    %v465 = vld [vmem:[#allocation7 + $0xb48] sm:$0xff]
    %v466 = vld [vmem:[#allocation7 + $0xb50] sm:$0xff]
    %v467 = vld [vmem:[#allocation7 + $0xb58] sm:$0xff]
    %v468 = vld [vmem:[#allocation7 + $0xb60] sm:$0xff]
    %v469 = vld [vmem:[#allocation7 + $0xb68] sm:$0xff]
    %v470 = vld [vmem:[#allocation7 + $0xb70] sm:$0xff]
    %v471 = vld [vmem:[#allocation7 + $0xb78] sm:$0xff]
    %v472 = vld [vmem:[#allocation7 + $0xb80] sm:$0xff]
    %v473 = vld [vmem:[#allocation7 + $0xb88] sm:$0xff]
    %v474 = vld [vmem:[#allocation7 + $0xb90] sm:$0xff]
    %v475 = vld [vmem:[#allocation7 + $0xb98] sm:$0xff]
    %v476 = vld [vmem:[#allocation7 + $0xba0] sm:$0xff]
    %v477 = vld [vmem:[#allocation7 + $0xba8] sm:$0xff]
    %v478 = vld [vmem:[#allocation7 + $0xbb0] sm:$0xff]
    %v479 = vld [vmem:[#allocation7 + $0xbb8] sm:$0xff]
    %v480 = vld [vmem:[#allocation7 + $0xbc0] sm:$0xff]
    %v481 = vld [vmem:[#allocation7 + $0xbc8] sm:$0xff]
    %v482 = vld [vmem:[#allocation7 + $0xbd0] sm:$0xff]
    %v483 = vld [vmem:[#allocation7 + $0xbd8] sm:$0xff]
    %v484 = vld [vmem:[#allocation7 + $0xbe0] sm:$0xff]
    %v485 = vld [vmem:[#allocation7 + $0xbe8] sm:$0xff]
    %v486 = vld [vmem:[#allocation7 + $0xbf0] sm:$0xff]
    %v487 = vld [vmem:[#allocation7 + $0xbf8] sm:$0xff]
    %v488 = vld [vmem:[#allocation7 + $0xc00] sm:$0xff]
    %v489 = vld [vmem:[#allocation7 + $0xc08] sm:$0xff]
    %v490 = vld [vmem:[#allocation7 + $0xc10] sm:$0xff]
    %v491 = vld [vmem:[#allocation7 + $0xc18] sm:$0xff]
    %v492 = vld [vmem:[#allocation7 + $0xc20] sm:$0xff]
    %v493 = vld [vmem:[#allocation7 + $0xc28] sm:$0xff]
    %v494 = vld [vmem:[#allocation7 + $0xc30] sm:$0xff]
    %v495 = vld [vmem:[#allocation7 + $0xc38] sm:$0xff]
    %v496 = vld [vmem:[#allocation7 + $0xc40] sm:$0xff]
    %v497 = vld [vmem:[#allocation7 + $0xc48] sm:$0xff]
    %v498 = vld [vmem:[#allocation7 + $0xc50] sm:$0xff]
    %v499 = vld [vmem:[#allocation7 + $0xc58] sm:$0xff]
    %v500 = vld [vmem:[#allocation7 + $0xc60] sm:$0xff]
    %v501 = vld [vmem:[#allocation7 + $0xc68] sm:$0xff]
    %v502 = vld [vmem:[#allocation7 + $0xc70] sm:$0xff]
    %v503 = vld [vmem:[#allocation7 + $0xc78] sm:$0xff]
    %v511 = vcombine.high %v97, %v97
    %v513 = vunpack.c.l.s4 1983009808
    %v514 = vunpack.c.0.s8 %v513
    %v515 = vlaneseq
    %v516 = vshrl.u32 %v515, 7
    %v517 = vsub.s32 %v514, %v516
    %v518 = vrot.slane %v97, %v517
    %v520 = vunpack.c.l.s4 1983009808
    %v521 = vunpack.c.0.s8 %v520
    %v522 = vlaneseq
    %v523 = vshrl.u32 %v522, 7
    %v524 = vsub.s32 %v521, %v523
    %v525 = vrot.slane %v511, %v524
    %v526 = vcombine.high %v518, %v518
    %v527 = vcombine.high %v525, %v525
    %v528 = vcombine.high %v98, %v98
    %v530 = vunpack.c.l.s4 1983009808
    %v531 = vunpack.c.0.s8 %v530
    %v532 = vlaneseq
    %v533 = vshrl.u32 %v532, 7
    %v534 = vsub.s32 %v531, %v533
    %v535 = vrot.slane %v98, %v534
    %v537 = vunpack.c.l.s4 1983009808
    %v538 = vunpack.c.0.s8 %v537
    %v539 = vlaneseq
    %v540 = vshrl.u32 %v539, 7
    %v541 = vsub.s32 %v538, %v540
    %v542 = vrot.slane %v528, %v541
    %v543 = vcombine.high %v535, %v535
    %v544 = vcombine.high %v542, %v542
    %v545 = vcombine.high %v99, %v99
    %v547 = vunpack.c.l.s4 1983009808
    %v548 = vunpack.c.0.s8 %v547
    %v549 = vlaneseq
    %v550 = vshrl.u32 %v549, 7
    %v551 = vsub.s32 %v548, %v550
    %v552 = vrot.slane %v99, %v551
    %v554 = vunpack.c.l.s4 1983009808
    %v555 = vunpack.c.0.s8 %v554
    %v556 = vlaneseq
    %v557 = vshrl.u32 %v556, 7
    %v558 = vsub.s32 %v555, %v557
    %v559 = vrot.slane %v545, %v558
    %v560 = vcombine.high %v552, %v552
    %v561 = vcombine.high %v559, %v559
    %v562 = vcombine.high %v100, %v100
    %v564 = vunpack.c.l.s4 1983009808
    %v565 = vunpack.c.0.s8 %v564
    %v566 = vlaneseq
    %v567 = vshrl.u32 %v566, 7
    %v568 = vsub.s32 %v565, %v567
    %v569 = vrot.slane %v100, %v568
    %v571 = vunpack.c.l.s4 1983009808
    %v572 = vunpack.c.0.s8 %v571
    %v573 = vlaneseq
    %v574 = vshrl.u32 %v573, 7
    %v575 = vsub.s32 %v572, %v574
    %v576 = vrot.slane %v562, %v575
    %v577 = vcombine.high %v569, %v569
    %v578 = vcombine.high %v576, %v576
    %v579 = vcombine.high %v101, %v101
    %v581 = vunpack.c.l.s4 1983009808
    %v582 = vunpack.c.0.s8 %v581
    %v583 = vlaneseq
    %v584 = vshrl.u32 %v583, 7
    %v585 = vsub.s32 %v582, %v584
    %v586 = vrot.slane %v101, %v585
    %v588 = vunpack.c.l.s4 1983009808
    %v589 = vunpack.c.0.s8 %v588
    %v590 = vlaneseq
    %v591 = vshrl.u32 %v590, 7
    %v592 = vsub.s32 %v589, %v591
    %v593 = vrot.slane %v579, %v592
    %v594 = vcombine.high %v586, %v586
    %v595 = vcombine.high %v593, %v593
    %v596 = vcombine.high %v102, %v102
    %v598 = vunpack.c.l.s4 1983009808
    %v599 = vunpack.c.0.s8 %v598
    %v600 = vlaneseq
    %v601 = vshrl.u32 %v600, 7
    %v602 = vsub.s32 %v599, %v601
    %v603 = vrot.slane %v102, %v602
    %v605 = vunpack.c.l.s4 1983009808
    %v606 = vunpack.c.0.s8 %v605
    %v607 = vlaneseq
    %v608 = vshrl.u32 %v607, 7
    %v609 = vsub.s32 %v606, %v608
    %v610 = vrot.slane %v596, %v609
    %v611 = vcombine.high %v603, %v603
    %v612 = vcombine.high %v610, %v610
    %v614 = vunpack.c.l.s4 1983009808
    %v615 = vunpack.c.0.s8 %v614
    %v616 = vlaneseq
    %v617 = vshrl.u32 %v616, 7
    %v618 = vsub.s32 %v615, %v617
    %v619 = vrot.slane %v103, %v618
    %645 = vmatprep.subr.mxu0 0.0
    %646 = vmatpush1.msra.mxu0 %v104
    %647 = vmatprep.subr.mxu0 0.0
    %648 = vmatpush1.msra.mxu0 %v105
    %649 = vmatprep.subr.mxu0 0.0
    %650 = vmatpush1.msra.mxu0 %v106
    %651 = vmatprep.subr.mxu0 0.0
    %652 = vmatpush1.msra.mxu0 %v107
    %653 = vmatprep.subr.mxu0 0.0
    %654 = vmatpush1.msra.mxu0 %v108
    %655 = vmatprep.subr.mxu0 0.0
    %656 = vmatpush1.msra.mxu0 %v109
    %657 = vmatprep.subr.mxu0 0.0
    %658 = vmatpush1.msra.mxu0 %v110
    %659 = vmatprep.subr.mxu0 0.0
    %660 = vmatpush1.msra.mxu0 %v111
    %661 = vmatprep.subr.mxu0 0.0
    %662 = vmatpush1.msra.mxu0 %v112
    %663 = vmatprep.subr.mxu0 0.0
    %664 = vmatpush1.msra.mxu0 %v113
    %665 = vmatprep.subr.mxu0 0.0
    %666 = vmatpush1.msra.mxu0 %v114
    %667 = vmatprep.subr.mxu0 0.0
    %668 = vmatpush1.msra.mxu0 %v115
    %669 = vmatprep.subr.mxu0 0.0
    %670 = vmatpush1.msra.mxu0 %v116
    %671 = vmatprep.subr.mxu0 0.0
    %672 = vmatpush1.msra.mxu0 %v117
    %673 = vmatprep.subr.mxu0 0.0
    %674 = vmatpush1.msra.mxu0 %v118
    %675 = vmatprep.subr.mxu0 0.0
    %676 = vmatpush1.msra.mxu0 %v119
    %677 = vmatprep.subr.mxu0 0.0
    %678 = vmatpush1.msra.mxu0 %v120
    %679 = vmatprep.subr.mxu0 0.0
    %680 = vmatpush1.msra.mxu0 %v121
    %681 = vmatprep.subr.mxu0 0.0
    %682 = vmatpush1.msra.mxu0 %v122
    %683 = vmatprep.subr.mxu0 0.0
    %684 = vmatpush1.msra.mxu0 %v123
    %685 = vmatprep.subr.mxu0 0.0
    %686 = vmatpush1.msra.mxu0 %v124
    %687 = vmatprep.subr.mxu0 0.0
    %688 = vmatpush1.msra.mxu0 %v125
    %689 = vmatprep.subr.mxu0 0.0
    %690 = vmatpush1.msra.mxu0 %v126
    %691 = vmatprep.subr.mxu0 0.0
    %692 = vmatpush1.msra.mxu0 %v127
    %693 = vmatprep.subr.mxu0 0.0
    %694 = vmatpush1.msra.mxu0 %v128
    %695 = vmatprep.subr.mxu0 0.0
    %696 = vmatpush1.msra.mxu0 %v129
    %697 = vmatprep.subr.mxu0 0.0
    %698 = vmatpush1.msra.mxu0 %v130
    %699 = vmatprep.subr.mxu0 0.0
    %700 = vmatpush1.msra.mxu0 %v131
    %701 = vmatprep.subr.mxu0 0.0
    %702 = vmatpush1.msra.mxu0 %v132
    %703 = vmatprep.subr.mxu0 0.0
    %704 = vmatpush1.msra.mxu0 %v133
    %705 = vmatprep.subr.mxu0 0.0
    %706 = vmatpush1.msra.mxu0 %v134
    %707 = vmatprep.subr.mxu0 0.0
    %708 = vmatpush1.msra.mxu0 %v135
    %709 = vmatprep.mubr.f32.mxu0 %v526
    %710 = vmatmul.mubr.f32.gmra.mrb[0].mxu0 %v518
    %v711 = vpop.f32.mrb[0].mxu0
    %v712 = vadd.f32 0.0, %v711
    %v713 = vpop.f32.mrb[0].mxu0
    %714 = vdwg.mxu0
    %715 = vmatprep.subr.mxu0 0.0
    %716 = vmatpush1.msra.mxu0 %v136
    %717 = vmatprep.subr.mxu0 0.0
    %718 = vmatpush1.msra.mxu0 %v137
    %719 = vmatprep.subr.mxu0 0.0
    %720 = vmatpush1.msra.mxu0 %v138
    %721 = vmatprep.subr.mxu0 0.0
    %722 = vmatpush1.msra.mxu0 %v139
    %723 = vmatprep.subr.mxu0 0.0
    %724 = vmatpush1.msra.mxu0 %v140
    %725 = vmatprep.subr.mxu0 0.0
    %726 = vmatpush1.msra.mxu0 %v141
    %727 = vmatprep.subr.mxu0 0.0
    %728 = vmatpush1.msra.mxu0 %v142
    %729 = vmatprep.subr.mxu0 0.0
    %730 = vmatpush1.msra.mxu0 %v143
    %731 = vmatprep.subr.mxu0 0.0
    %732 = vmatpush1.msra.mxu0 %v144
    %733 = vmatprep.subr.mxu0 0.0
    %734 = vmatpush1.msra.mxu0 %v145
    %735 = vmatprep.subr.mxu0 0.0
    %736 = vmatpush1.msra.mxu0 %v146
    %737 = vmatprep.subr.mxu0 0.0
    %738 = vmatpush1.msra.mxu0 %v147
    %739 = vmatprep.subr.mxu0 0.0
    %740 = vmatpush1.msra.mxu0 %v148
    %741 = vmatprep.subr.mxu0 0.0
    %742 = vmatpush1.msra.mxu0 %v149
    %743 = vmatprep.subr.mxu0 0.0
    %744 = vmatpush1.msra.mxu0 %v150
    %745 = vmatprep.subr.mxu0 0.0
    %746 = vmatpush1.msra.mxu0 %v151
    %747 = vmatprep.subr.mxu0 0.0
    %748 = vmatpush1.msra.mxu0 %v152
    %749 = vmatprep.subr.mxu0 0.0
    %750 = vmatpush1.msra.mxu0 %v153
    %751 = vmatprep.subr.mxu0 0.0
    %752 = vmatpush1.msra.mxu0 %v154
    %753 = vmatprep.subr.mxu0 0.0
    %754 = vmatpush1.msra.mxu0 %v155
    %755 = vmatprep.subr.mxu0 0.0
    %756 = vmatpush1.msra.mxu0 %v156
    %757 = vmatprep.subr.mxu0 0.0
    %758 = vmatpush1.msra.mxu0 %v157
    %759 = vmatprep.subr.mxu0 0.0
    %760 = vmatpush1.msra.mxu0 %v158
    %761 = vmatprep.subr.mxu0 0.0
    %762 = vmatpush1.msra.mxu0 %v159
    %763 = vmatprep.subr.mxu0 0.0
    %764 = vmatpush1.msra.mxu0 %v160
    %765 = vmatprep.subr.mxu0 0.0
    %766 = vmatpush1.msra.mxu0 %v161
    %767 = vmatprep.subr.mxu0 0.0
    %768 = vmatpush1.msra.mxu0 %v162
    %769 = vmatprep.subr.mxu0 0.0
    %770 = vmatpush1.msra.mxu0 %v163
    %771 = vmatprep.subr.mxu0 0.0
    %772 = vmatpush1.msra.mxu0 %v164
    %773 = vmatprep.subr.mxu0 0.0
    %774 = vmatpush1.msra.mxu0 %v165
    %775 = vmatprep.subr.mxu0 0.0
    %776 = vmatpush1.msra.mxu0 %v166
    %777 = vmatprep.subr.mxu0 0.0
    %778 = vmatpush1.msra.mxu0 %v167
    %779 = vmatprep.mubr.f32.mxu0 %v527
    %780 = vmatmul.mubr.f32.gmra.mrb[0].mxu0 %v525
    %v781 = vpop.f32.mrb[0].mxu0
    %v782 = vadd.f32 %v712, %v781
    %v783 = vpop.f32.mrb[0].mxu0
    %784 = vdwg.mxu0
    %785 = vmatprep.subr.mxu0 0.0
    %786 = vmatpush1.msra.mxu0 %v168
    %787 = vmatprep.subr.mxu0 0.0
    %788 = vmatpush1.msra.mxu0 %v169
    %789 = vmatprep.subr.mxu0 0.0
    %790 = vmatpush1.msra.mxu0 %v170
    %791 = vmatprep.subr.mxu0 0.0
    %792 = vmatpush1.msra.mxu0 %v171
    %793 = vmatprep.subr.mxu0 0.0
    %794 = vmatpush1.msra.mxu0 %v172
    %795 = vmatprep.subr.mxu0 0.0
    %796 = vmatpush1.msra.mxu0 %v173
    %797 = vmatprep.subr.mxu0 0.0
    %798 = vmatpush1.msra.mxu0 %v174
    %799 = vmatprep.subr.mxu0 0.0
    %800 = vmatpush1.msra.mxu0 %v175
    %801 = vmatprep.subr.mxu0 0.0
    %802 = vmatpush1.msra.mxu0 %v176
    %803 = vmatprep.subr.mxu0 0.0
    %804 = vmatpush1.msra.mxu0 %v177
    %805 = vmatprep.subr.mxu0 0.0
    %806 = vmatpush1.msra.mxu0 %v178
    %807 = vmatprep.subr.mxu0 0.0
    %808 = vmatpush1.msra.mxu0 %v179
    %809 = vmatprep.subr.mxu0 0.0
    %810 = vmatpush1.msra.mxu0 %v180
    %811 = vmatprep.subr.mxu0 0.0
    %812 = vmatpush1.msra.mxu0 %v181
    %813 = vmatprep.subr.mxu0 0.0
    %814 = vmatpush1.msra.mxu0 %v182
    %815 = vmatprep.subr.mxu0 0.0
    %816 = vmatpush1.msra.mxu0 %v183
    %817 = vmatprep.subr.mxu0 0.0
    %818 = vmatpush1.msra.mxu0 %v184
    %819 = vmatprep.subr.mxu0 0.0
    %820 = vmatpush1.msra.mxu0 %v185
    %821 = vmatprep.subr.mxu0 0.0
    %822 = vmatpush1.msra.mxu0 %v186
    %823 = vmatprep.subr.mxu0 0.0
    %824 = vmatpush1.msra.mxu0 %v187
    %825 = vmatprep.subr.mxu0 0.0
    %826 = vmatpush1.msra.mxu0 %v188
    %827 = vmatprep.subr.mxu0 0.0
    %828 = vmatpush1.msra.mxu0 %v189
    %829 = vmatprep.subr.mxu0 0.0
    %830 = vmatpush1.msra.mxu0 %v190
    %831 = vmatprep.subr.mxu0 0.0
    %832 = vmatpush1.msra.mxu0 %v191
    %833 = vmatprep.subr.mxu0 0.0
    %834 = vmatpush1.msra.mxu0 %v192
    %835 = vmatprep.subr.mxu0 0.0
    %836 = vmatpush1.msra.mxu0 %v193
    %837 = vmatprep.subr.mxu0 0.0
    %838 = vmatpush1.msra.mxu0 %v194
    %839 = vmatprep.subr.mxu0 0.0
    %840 = vmatpush1.msra.mxu0 %v195
    %841 = vmatprep.subr.mxu0 0.0
    %842 = vmatpush1.msra.mxu0 %v196
    %843 = vmatprep.subr.mxu0 0.0
    %844 = vmatpush1.msra.mxu0 %v197
    %845 = vmatprep.subr.mxu0 0.0
    %846 = vmatpush1.msra.mxu0 %v198
    %847 = vmatprep.subr.mxu0 0.0
    %848 = vmatpush1.msra.mxu0 %v199
    %849 = vmatprep.mubr.f32.mxu0 %v543
    %850 = vmatmul.mubr.f32.gmra.mrb[0].mxu0 %v535
    %v851 = vpop.f32.mrb[0].mxu0
    %v852 = vadd.f32 %v782, %v851
    %v853 = vpop.f32.mrb[0].mxu0
    %854 = vdwg.mxu0
    %855 = vmatprep.subr.mxu0 0.0
    %856 = vmatpush1.msra.mxu0 %v200
    %857 = vmatprep.subr.mxu0 0.0
    %858 = vmatpush1.msra.mxu0 %v201
    %859 = vmatprep.subr.mxu0 0.0
    %860 = vmatpush1.msra.mxu0 %v202
    %861 = vmatprep.subr.mxu0 0.0
    %862 = vmatpush1.msra.mxu0 %v203
    %863 = vmatprep.subr.mxu0 0.0
    %864 = vmatpush1.msra.mxu0 %v204
    %865 = vmatprep.subr.mxu0 0.0
    %866 = vmatpush1.msra.mxu0 %v205
    %867 = vmatprep.subr.mxu0 0.0
    %868 = vmatpush1.msra.mxu0 %v206
    %869 = vmatprep.subr.mxu0 0.0
    %870 = vmatpush1.msra.mxu0 %v207
    %871 = vmatprep.subr.mxu0 0.0
    %872 = vmatpush1.msra.mxu0 %v208
    %873 = vmatprep.subr.mxu0 0.0
    %874 = vmatpush1.msra.mxu0 %v209
    %875 = vmatprep.subr.mxu0 0.0
    %876 = vmatpush1.msra.mxu0 %v210
    %877 = vmatprep.subr.mxu0 0.0
    %878 = vmatpush1.msra.mxu0 %v211
    %879 = vmatprep.subr.mxu0 0.0
    %880 = vmatpush1.msra.mxu0 %v212
    %881 = vmatprep.subr.mxu0 0.0
    %882 = vmatpush1.msra.mxu0 %v213
    %883 = vmatprep.subr.mxu0 0.0
    %884 = vmatpush1.msra.mxu0 %v214
    %885 = vmatprep.subr.mxu0 0.0
    %886 = vmatpush1.msra.mxu0 %v215
    %887 = vmatprep.subr.mxu0 0.0
    %888 = vmatpush1.msra.mxu0 %v216
    %889 = vmatprep.subr.mxu0 0.0
    %890 = vmatpush1.msra.mxu0 %v217
    %891 = vmatprep.subr.mxu0 0.0
    %892 = vmatpush1.msra.mxu0 %v218
    %893 = vmatprep.subr.mxu0 0.0
    %894 = vmatpush1.msra.mxu0 %v219
    %895 = vmatprep.subr.mxu0 0.0
    %896 = vmatpush1.msra.mxu0 %v220
    %897 = vmatprep.subr.mxu0 0.0
    %898 = vmatpush1.msra.mxu0 %v221
    %899 = vmatprep.subr.mxu0 0.0
    %900 = vmatpush1.msra.mxu0 %v222
    %901 = vmatprep.subr.mxu0 0.0
    %902 = vmatpush1.msra.mxu0 %v223
    %903 = vmatprep.subr.mxu0 0.0
    %904 = vmatpush1.msra.mxu0 %v224
    %905 = vmatprep.subr.mxu0 0.0
    %906 = vmatpush1.msra.mxu0 %v225
    %907 = vmatprep.subr.mxu0 0.0
    %908 = vmatpush1.msra.mxu0 %v226
    %909 = vmatprep.subr.mxu0 0.0
    %910 = vmatpush1.msra.mxu0 %v227
    %911 = vmatprep.subr.mxu0 0.0
    %912 = vmatpush1.msra.mxu0 %v228
    %913 = vmatprep.subr.mxu0 0.0
    %914 = vmatpush1.msra.mxu0 %v229
    %915 = vmatprep.subr.mxu0 0.0
    %916 = vmatpush1.msra.mxu0 %v230
    %917 = vmatprep.subr.mxu0 0.0
    %918 = vmatpush1.msra.mxu0 %v231
    %919 = vmatprep.mubr.f32.mxu0 %v544
    %920 = vmatmul.mubr.f32.gmra.mrb[0].mxu0 %v542
    %v921 = vpop.f32.mrb[0].mxu0
    %v922 = vadd.f32 %v852, %v921
    %v923 = vpop.f32.mrb[0].mxu0
    %924 = vdwg.mxu0
    %925 = vmatprep.subr.mxu0 0.0
    %926 = vmatpush1.msra.mxu0 %v232
    %927 = vmatprep.subr.mxu0 0.0
    %928 = vmatpush1.msra.mxu0 %v233
    %929 = vmatprep.subr.mxu0 0.0
    %930 = vmatpush1.msra.mxu0 %v234
    %931 = vmatprep.subr.mxu0 0.0
    %932 = vmatpush1.msra.mxu0 %v235
    %933 = vmatprep.subr.mxu0 0.0
    %934 = vmatpush1.msra.mxu0 %v236
    %935 = vmatprep.subr.mxu0 0.0
    %936 = vmatpush1.msra.mxu0 %v237
    %937 = vmatprep.subr.mxu0 0.0
    %938 = vmatpush1.msra.mxu0 %v238
    %939 = vmatprep.subr.mxu0 0.0
    %940 = vmatpush1.msra.mxu0 %v239
    %941 = vmatprep.subr.mxu0 0.0
    %942 = vmatpush1.msra.mxu0 %v240
    %943 = vmatprep.subr.mxu0 0.0
    %944 = vmatpush1.msra.mxu0 %v241
    %945 = vmatprep.subr.mxu0 0.0
    %946 = vmatpush1.msra.mxu0 %v242
    %947 = vmatprep.subr.mxu0 0.0
    %948 = vmatpush1.msra.mxu0 %v243
    %949 = vmatprep.subr.mxu0 0.0
    %950 = vmatpush1.msra.mxu0 %v244
    %951 = vmatprep.subr.mxu0 0.0
    %952 = vmatpush1.msra.mxu0 %v245
    %953 = vmatprep.subr.mxu0 0.0
    %954 = vmatpush1.msra.mxu0 %v246
    %955 = vmatprep.subr.mxu0 0.0
    %956 = vmatpush1.msra.mxu0 %v247
    %957 = vmatprep.subr.mxu0 0.0
    %958 = vmatpush1.msra.mxu0 %v248
    %959 = vmatprep.subr.mxu0 0.0
    %960 = vmatpush1.msra.mxu0 %v249
    %961 = vmatprep.subr.mxu0 0.0
    %962 = vmatpush1.msra.mxu0 %v250
    %963 = vmatprep.subr.mxu0 0.0
    %964 = vmatpush1.msra.mxu0 %v251
    %965 = vmatprep.subr.mxu0 0.0
    %966 = vmatpush1.msra.mxu0 %v252
    %967 = vmatprep.subr.mxu0 0.0
    %968 = vmatpush1.msra.mxu0 %v253
    %969 = vmatprep.subr.mxu0 0.0
    %970 = vmatpush1.msra.mxu0 %v254
    %971 = vmatprep.subr.mxu0 0.0
    %972 = vmatpush1.msra.mxu0 %v255
    %973 = vmatprep.subr.mxu0 0.0
    %974 = vmatpush1.msra.mxu0 %v256
    %975 = vmatprep.subr.mxu0 0.0
    %976 = vmatpush1.msra.mxu0 %v257
    %977 = vmatprep.subr.mxu0 0.0
    %978 = vmatpush1.msra.mxu0 %v258
    %979 = vmatprep.subr.mxu0 0.0
    %980 = vmatpush1.msra.mxu0 %v259
    %981 = vmatprep.subr.mxu0 0.0
    %982 = vmatpush1.msra.mxu0 %v260
    %983 = vmatprep.subr.mxu0 0.0
    %984 = vmatpush1.msra.mxu0 %v261
    %985 = vmatprep.subr.mxu0 0.0
    %986 = vmatpush1.msra.mxu0 %v262
    %987 = vmatprep.subr.mxu0 0.0
    %988 = vmatpush1.msra.mxu0 %v263
    %989 = vmatprep.mubr.f32.mxu0 %v560
    %990 = vmatmul.mubr.f32.gmra.mrb[0].mxu0 %v552
    %v991 = vpop.f32.mrb[0].mxu0
    %v992 = vadd.f32 %v922, %v991
    %v993 = vpop.f32.mrb[0].mxu0
    %994 = vdwg.mxu0
    %995 = vmatprep.subr.mxu0 0.0
    %996 = vmatpush1.msra.mxu0 %v264
    %997 = vmatprep.subr.mxu0 0.0
    %998 = vmatpush1.msra.mxu0 %v265
    %999 = vmatprep.subr.mxu0 0.0
    %1000 = vmatpush1.msra.mxu0 %v266
    %1001 = vmatprep.subr.mxu0 0.0
    %1002 = vmatpush1.msra.mxu0 %v267
    %1003 = vmatprep.subr.mxu0 0.0
    %1004 = vmatpush1.msra.mxu0 %v268
    %1005 = vmatprep.subr.mxu0 0.0
    %1006 = vmatpush1.msra.mxu0 %v269
    %1007 = vmatprep.subr.mxu0 0.0
    %1008 = vmatpush1.msra.mxu0 %v270
    %1009 = vmatprep.subr.mxu0 0.0
    %1010 = vmatpush1.msra.mxu0 %v271
    %1011 = vmatprep.subr.mxu0 0.0
    %1012 = vmatpush1.msra.mxu0 %v272
    %1013 = vmatprep.subr.mxu0 0.0
    %1014 = vmatpush1.msra.mxu0 %v273
    %1015 = vmatprep.subr.mxu0 0.0
    %1016 = vmatpush1.msra.mxu0 %v274
    %1017 = vmatprep.subr.mxu0 0.0
    %1018 = vmatpush1.msra.mxu0 %v275
    %1019 = vmatprep.subr.mxu0 0.0
    %1020 = vmatpush1.msra.mxu0 %v276
    %1021 = vmatprep.subr.mxu0 0.0
    %1022 = vmatpush1.msra.mxu0 %v277
    %1023 = vmatprep.subr.mxu0 0.0
    %1024 = vmatpush1.msra.mxu0 %v278
    %1025 = vmatprep.subr.mxu0 0.0
    %1026 = vmatpush1.msra.mxu0 %v279
    %1027 = vmatprep.subr.mxu0 0.0
    %1028 = vmatpush1.msra.mxu0 %v280
    %1029 = vmatprep.subr.mxu0 0.0
    %1030 = vmatpush1.msra.mxu0 %v281
    %1031 = vmatprep.subr.mxu0 0.0
    %1032 = vmatpush1.msra.mxu0 %v282
    %1033 = vmatprep.subr.mxu0 0.0
    %1034 = vmatpush1.msra.mxu0 %v283
    %1035 = vmatprep.subr.mxu0 0.0
    %1036 = vmatpush1.msra.mxu0 %v284
    %1037 = vmatprep.subr.mxu0 0.0
    %1038 = vmatpush1.msra.mxu0 %v285
    %1039 = vmatprep.subr.mxu0 0.0
    %1040 = vmatpush1.msra.mxu0 %v286
    %1041 = vmatprep.subr.mxu0 0.0
    %1042 = vmatpush1.msra.mxu0 %v287
    %1043 = vmatprep.subr.mxu0 0.0
    %1044 = vmatpush1.msra.mxu0 %v288
    %1045 = vmatprep.subr.mxu0 0.0
    %1046 = vmatpush1.msra.mxu0 %v289
    %1047 = vmatprep.subr.mxu0 0.0
    %1048 = vmatpush1.msra.mxu0 %v290
    %1049 = vmatprep.subr.mxu0 0.0
    %1050 = vmatpush1.msra.mxu0 %v291
    %1051 = vmatprep.subr.mxu0 0.0
    %1052 = vmatpush1.msra.mxu0 %v292
    %1053 = vmatprep.subr.mxu0 0.0
    %1054 = vmatpush1.msra.mxu0 %v293
    %1055 = vmatprep.subr.mxu0 0.0
    %1056 = vmatpush1.msra.mxu0 %v294
    %1057 = vmatprep.subr.mxu0 0.0
    %1058 = vmatpush1.msra.mxu0 %v295
    %1059 = vmatprep.mubr.f32.mxu0 %v561
    %1060 = vmatmul.mubr.f32.gmra.mrb[0].mxu0 %v559
    %v1061 = vpop.f32.mrb[0].mxu0
    %v1062 = vadd.f32 %v992, %v1061
    %v1063 = vpop.f32.mrb[0].mxu0
    %1064 = vdwg.mxu0
    %1065 = vmatprep.subr.mxu0 0.0
    %1066 = vmatpush1.msra.mxu0 %v296
    %1067 = vmatprep.subr.mxu0 0.0
    %1068 = vmatpush1.msra.mxu0 %v297
    %1069 = vmatprep.subr.mxu0 0.0
    %1070 = vmatpush1.msra.mxu0 %v298
    %1071 = vmatprep.subr.mxu0 0.0
    %1072 = vmatpush1.msra.mxu0 %v299
    %1073 = vmatprep.subr.mxu0 0.0
    %1074 = vmatpush1.msra.mxu0 %v300
    %1075 = vmatprep.subr.mxu0 0.0
    %1076 = vmatpush1.msra.mxu0 %v301
    %1077 = vmatprep.subr.mxu0 0.0
    %1078 = vmatpush1.msra.mxu0 %v302
    %1079 = vmatprep.subr.mxu0 0.0
    %1080 = vmatpush1.msra.mxu0 %v303
    %1081 = vmatprep.subr.mxu0 0.0
    %1082 = vmatpush1.msra.mxu0 %v304
    %1083 = vmatprep.subr.mxu0 0.0
    %1084 = vmatpush1.msra.mxu0 %v305
    %1085 = vmatprep.subr.mxu0 0.0
    %1086 = vmatpush1.msra.mxu0 %v306
    %1087 = vmatprep.subr.mxu0 0.0
    %1088 = vmatpush1.msra.mxu0 %v307
    %1089 = vmatprep.subr.mxu0 0.0
    %1090 = vmatpush1.msra.mxu0 %v308
    %1091 = vmatprep.subr.mxu0 0.0
    %1092 = vmatpush1.msra.mxu0 %v309
    %1093 = vmatprep.subr.mxu0 0.0
    %1094 = vmatpush1.msra.mxu0 %v310
    %1095 = vmatprep.subr.mxu0 0.0
    %1096 = vmatpush1.msra.mxu0 %v311
    %1097 = vmatprep.subr.mxu0 0.0
    %1098 = vmatpush1.msra.mxu0 %v312
    %1099 = vmatprep.subr.mxu0 0.0
    %1100 = vmatpush1.msra.mxu0 %v313
    %1101 = vmatprep.subr.mxu0 0.0
    %1102 = vmatpush1.msra.mxu0 %v314
    %1103 = vmatprep.subr.mxu0 0.0
    %1104 = vmatpush1.msra.mxu0 %v315
    %1105 = vmatprep.subr.mxu0 0.0
    %1106 = vmatpush1.msra.mxu0 %v316
    %1107 = vmatprep.subr.mxu0 0.0
    %1108 = vmatpush1.msra.mxu0 %v317
    %1109 = vmatprep.subr.mxu0 0.0
    %1110 = vmatpush1.msra.mxu0 %v318
    %1111 = vmatprep.subr.mxu0 0.0
    %1112 = vmatpush1.msra.mxu0 %v319
    %1113 = vmatprep.subr.mxu0 0.0
    %1114 = vmatpush1.msra.mxu0 %v320
    %1115 = vmatprep.subr.mxu0 0.0
    %1116 = vmatpush1.msra.mxu0 %v321
    %1117 = vmatprep.subr.mxu0 0.0
    %1118 = vmatpush1.msra.mxu0 %v322
    %1119 = vmatprep.subr.mxu0 0.0
    %1120 = vmatpush1.msra.mxu0 %v323
    %1121 = vmatprep.subr.mxu0 0.0
    %1122 = vmatpush1.msra.mxu0 %v324
    %1123 = vmatprep.subr.mxu0 0.0
    %1124 = vmatpush1.msra.mxu0 %v325
    %1125 = vmatprep.subr.mxu0 0.0
    %1126 = vmatpush1.msra.mxu0 %v326
    %1127 = vmatprep.subr.mxu0 0.0
    %1128 = vmatpush1.msra.mxu0 %v327
    %1129 = vmatprep.mubr.f32.mxu0 %v577
    %1130 = vmatmul.mubr.f32.gmra.mrb[0].mxu0 %v569
    %v1131 = vpop.f32.mrb[0].mxu0
    %v1132 = vadd.f32 %v1062, %v1131
    %v1133 = vpop.f32.mrb[0].mxu0
    %1134 = vdwg.mxu0
    %1135 = vmatprep.subr.mxu0 0.0
    %1136 = vmatpush1.msra.mxu0 %v328
    %1137 = vmatprep.subr.mxu0 0.0
    %1138 = vmatpush1.msra.mxu0 %v329
    %1139 = vmatprep.subr.mxu0 0.0
    %1140 = vmatpush1.msra.mxu0 %v330
    %1141 = vmatprep.subr.mxu0 0.0
    %1142 = vmatpush1.msra.mxu0 %v331
    %1143 = vmatprep.subr.mxu0 0.0
    %1144 = vmatpush1.msra.mxu0 %v332
    %1145 = vmatprep.subr.mxu0 0.0
    %1146 = vmatpush1.msra.mxu0 %v333
    %1147 = vmatprep.subr.mxu0 0.0
    %1148 = vmatpush1.msra.mxu0 %v334
    %1149 = vmatprep.subr.mxu0 0.0
    %1150 = vmatpush1.msra.mxu0 %v335
    %1151 = vmatprep.subr.mxu0 0.0
    %1152 = vmatpush1.msra.mxu0 %v336
    %1153 = vmatprep.subr.mxu0 0.0
    %1154 = vmatpush1.msra.mxu0 %v337
    %1155 = vmatprep.subr.mxu0 0.0
    %1156 = vmatpush1.msra.mxu0 %v338
    %1157 = vmatprep.subr.mxu0 0.0
    %1158 = vmatpush1.msra.mxu0 %v339
    %1159 = vmatprep.subr.mxu0 0.0
    %1160 = vmatpush1.msra.mxu0 %v340
    %1161 = vmatprep.subr.mxu0 0.0
    %1162 = vmatpush1.msra.mxu0 %v341
    %1163 = vmatprep.subr.mxu0 0.0
    %1164 = vmatpush1.msra.mxu0 %v342
    %1165 = vmatprep.subr.mxu0 0.0
    %1166 = vmatpush1.msra.mxu0 %v343
    %1167 = vmatprep.subr.mxu0 0.0
    %1168 = vmatpush1.msra.mxu0 %v344
    %1169 = vmatprep.subr.mxu0 0.0
    %1170 = vmatpush1.msra.mxu0 %v345
    %1171 = vmatprep.subr.mxu0 0.0
    %1172 = vmatpush1.msra.mxu0 %v346
    %1173 = vmatprep.subr.mxu0 0.0
    %1174 = vmatpush1.msra.mxu0 %v347
    %1175 = vmatprep.subr.mxu0 0.0
    %1176 = vmatpush1.msra.mxu0 %v348
    %1177 = vmatprep.subr.mxu0 0.0
    %1178 = vmatpush1.msra.mxu0 %v349
    %1179 = vmatprep.subr.mxu0 0.0
    %1180 = vmatpush1.msra.mxu0 %v350
    %1181 = vmatprep.subr.mxu0 0.0
    %1182 = vmatpush1.msra.mxu0 %v351
    %1183 = vmatprep.subr.mxu0 0.0
    %1184 = vmatpush1.msra.mxu0 %v352
    %1185 = vmatprep.subr.mxu0 0.0
    %1186 = vmatpush1.msra.mxu0 %v353
    %1187 = vmatprep.subr.mxu0 0.0
    %1188 = vmatpush1.msra.mxu0 %v354
    %1189 = vmatprep.subr.mxu0 0.0
    %1190 = vmatpush1.msra.mxu0 %v355
    %1191 = vmatprep.subr.mxu0 0.0
    %1192 = vmatpush1.msra.mxu0 %v356
    %1193 = vmatprep.subr.mxu0 0.0
    %1194 = vmatpush1.msra.mxu0 %v357
    %1195 = vmatprep.subr.mxu0 0.0
    %1196 = vmatpush1.msra.mxu0 %v358
    %1197 = vmatprep.subr.mxu0 0.0
    %1198 = vmatpush1.msra.mxu0 %v359
    %1199 = vmatprep.mubr.f32.mxu0 %v578
    %1200 = vmatmul.mubr.f32.gmra.mrb[0].mxu0 %v576
    %v1201 = vpop.f32.mrb[0].mxu0
    %v1202 = vadd.f32 %v1132, %v1201
    %v1203 = vpop.f32.mrb[0].mxu0
    %1204 = vdwg.mxu0
    %1205 = vmatprep.subr.mxu0 0.0
    %1206 = vmatpush1.msra.mxu0 %v360
    %1207 = vmatprep.subr.mxu0 0.0
    %1208 = vmatpush1.msra.mxu0 %v361
    %1209 = vmatprep.subr.mxu0 0.0
    %1210 = vmatpush1.msra.mxu0 %v362
    %1211 = vmatprep.subr.mxu0 0.0
    %1212 = vmatpush1.msra.mxu0 %v363
    %1213 = vmatprep.subr.mxu0 0.0
    %1214 = vmatpush1.msra.mxu0 %v364
    %1215 = vmatprep.subr.mxu0 0.0
    %1216 = vmatpush1.msra.mxu0 %v365
    %1217 = vmatprep.subr.mxu0 0.0
    %1218 = vmatpush1.msra.mxu0 %v366
    %1219 = vmatprep.subr.mxu0 0.0
    %1220 = vmatpush1.msra.mxu0 %v367
    %1221 = vmatprep.subr.mxu0 0.0
    %1222 = vmatpush1.msra.mxu0 %v368
    %1223 = vmatprep.subr.mxu0 0.0
    %1224 = vmatpush1.msra.mxu0 %v369
    %1225 = vmatprep.subr.mxu0 0.0
    %1226 = vmatpush1.msra.mxu0 %v370
    %1227 = vmatprep.subr.mxu0 0.0
    %1228 = vmatpush1.msra.mxu0 %v371
    %1229 = vmatprep.subr.mxu0 0.0
    %1230 = vmatpush1.msra.mxu0 %v372
    %1231 = vmatprep.subr.mxu0 0.0
    %1232 = vmatpush1.msra.mxu0 %v373
    %1233 = vmatprep.subr.mxu0 0.0
    %1234 = vmatpush1.msra.mxu0 %v374
    %1235 = vmatprep.subr.mxu0 0.0
    %1236 = vmatpush1.msra.mxu0 %v375
    %1237 = vmatprep.subr.mxu0 0.0
    %1238 = vmatpush1.msra.mxu0 %v376
    %1239 = vmatprep.subr.mxu0 0.0
    %1240 = vmatpush1.msra.mxu0 %v377
    %1241 = vmatprep.subr.mxu0 0.0
    %1242 = vmatpush1.msra.mxu0 %v378
    %1243 = vmatprep.subr.mxu0 0.0
    %1244 = vmatpush1.msra.mxu0 %v379
    %1245 = vmatprep.subr.mxu0 0.0
    %1246 = vmatpush1.msra.mxu0 %v380
    %1247 = vmatprep.subr.mxu0 0.0
    %1248 = vmatpush1.msra.mxu0 %v381
    %1249 = vmatprep.subr.mxu0 0.0
    %1250 = vmatpush1.msra.mxu0 %v382
    %1251 = vmatprep.subr.mxu0 0.0
    %1252 = vmatpush1.msra.mxu0 %v383
    %1253 = vmatprep.subr.mxu0 0.0
    %1254 = vmatpush1.msra.mxu0 %v384
    %1255 = vmatprep.subr.mxu0 0.0
    %1256 = vmatpush1.msra.mxu0 %v385
    %1257 = vmatprep.subr.mxu0 0.0
    %1258 = vmatpush1.msra.mxu0 %v386
    %1259 = vmatprep.subr.mxu0 0.0
    %1260 = vmatpush1.msra.mxu0 %v387
    %1261 = vmatprep.subr.mxu0 0.0
    %1262 = vmatpush1.msra.mxu0 %v388
    %1263 = vmatprep.subr.mxu0 0.0
    %1264 = vmatpush1.msra.mxu0 %v389
    %1265 = vmatprep.subr.mxu0 0.0
    %1266 = vmatpush1.msra.mxu0 %v390
    %1267 = vmatprep.subr.mxu0 0.0
    %1268 = vmatpush1.msra.mxu0 %v391
    %1269 = vmatprep.mubr.f32.mxu0 %v594
    %1270 = vmatmul.mubr.f32.gmra.mrb[0].mxu0 %v586
    %v1271 = vpop.f32.mrb[0].mxu0
    %v1272 = vadd.f32 %v1202, %v1271
    %v1273 = vpop.f32.mrb[0].mxu0
    %1274 = vdwg.mxu0
    %1275 = vmatprep.subr.mxu0 0.0
    %1276 = vmatpush1.msra.mxu0 %v392
    %1277 = vmatprep.subr.mxu0 0.0
    %1278 = vmatpush1.msra.mxu0 %v393
    %1279 = vmatprep.subr.mxu0 0.0
    %1280 = vmatpush1.msra.mxu0 %v394
    %1281 = vmatprep.subr.mxu0 0.0
    %1282 = vmatpush1.msra.mxu0 %v395
    %1283 = vmatprep.subr.mxu0 0.0
    %1284 = vmatpush1.msra.mxu0 %v396
    %1285 = vmatprep.subr.mxu0 0.0
    %1286 = vmatpush1.msra.mxu0 %v397
    %1287 = vmatprep.subr.mxu0 0.0
    %1288 = vmatpush1.msra.mxu0 %v398
    %1289 = vmatprep.subr.mxu0 0.0
    %1290 = vmatpush1.msra.mxu0 %v399
    %1291 = vmatprep.subr.mxu0 0.0
    %1292 = vmatpush1.msra.mxu0 %v400
    %1293 = vmatprep.subr.mxu0 0.0
    %1294 = vmatpush1.msra.mxu0 %v401
    %1295 = vmatprep.subr.mxu0 0.0
    %1296 = vmatpush1.msra.mxu0 %v402
    %1297 = vmatprep.subr.mxu0 0.0
    %1298 = vmatpush1.msra.mxu0 %v403
    %1299 = vmatprep.subr.mxu0 0.0
    %1300 = vmatpush1.msra.mxu0 %v404
    %1301 = vmatprep.subr.mxu0 0.0
    %1302 = vmatpush1.msra.mxu0 %v405
    %1303 = vmatprep.subr.mxu0 0.0
    %1304 = vmatpush1.msra.mxu0 %v406
    %1305 = vmatprep.subr.mxu0 0.0
    %1306 = vmatpush1.msra.mxu0 %v407
    %1307 = vmatprep.subr.mxu0 0.0
    %1308 = vmatpush1.msra.mxu0 %v408
    %1309 = vmatprep.subr.mxu0 0.0
    %1310 = vmatpush1.msra.mxu0 %v409
    %1311 = vmatprep.subr.mxu0 0.0
    %1312 = vmatpush1.msra.mxu0 %v410
    %1313 = vmatprep.subr.mxu0 0.0
    %1314 = vmatpush1.msra.mxu0 %v411
    %1315 = vmatprep.subr.mxu0 0.0
    %1316 = vmatpush1.msra.mxu0 %v412
    %1317 = vmatprep.subr.mxu0 0.0
    %1318 = vmatpush1.msra.mxu0 %v413
    %1319 = vmatprep.subr.mxu0 0.0
    %1320 = vmatpush1.msra.mxu0 %v414
    %1321 = vmatprep.subr.mxu0 0.0
    %1322 = vmatpush1.msra.mxu0 %v415
    %1323 = vmatprep.subr.mxu0 0.0
    %1324 = vmatpush1.msra.mxu0 %v416
    %1325 = vmatprep.subr.mxu0 0.0
    %1326 = vmatpush1.msra.mxu0 %v417
    %1327 = vmatprep.subr.mxu0 0.0
    %1328 = vmatpush1.msra.mxu0 %v418
    %1329 = vmatprep.subr.mxu0 0.0
    %1330 = vmatpush1.msra.mxu0 %v419
    %1331 = vmatprep.subr.mxu0 0.0
    %1332 = vmatpush1.msra.mxu0 %v420
    %1333 = vmatprep.subr.mxu0 0.0
    %1334 = vmatpush1.msra.mxu0 %v421
    %1335 = vmatprep.subr.mxu0 0.0
    %1336 = vmatpush1.msra.mxu0 %v422
    %1337 = vmatprep.subr.mxu0 0.0
    %1338 = vmatpush1.msra.mxu0 %v423
    %1339 = vmatprep.mubr.f32.mxu0 %v595
    %1340 = vmatmul.mubr.f32.gmra.mrb[0].mxu0 %v593
    %v1341 = vpop.f32.mrb[0].mxu0
    %v1342 = vadd.f32 %v1272, %v1341
    %v1343 = vpop.f32.mrb[0].mxu0
    %1344 = vdwg.mxu0
    %1345 = vmatprep.subr.mxu0 0.0
    %1346 = vmatpush1.msra.mxu0 %v424
    %1347 = vmatprep.subr.mxu0 0.0
    %1348 = vmatpush1.msra.mxu0 %v425
    %1349 = vmatprep.subr.mxu0 0.0
    %1350 = vmatpush1.msra.mxu0 %v426
    %1351 = vmatprep.subr.mxu0 0.0
    %1352 = vmatpush1.msra.mxu0 %v427
    %1353 = vmatprep.subr.mxu0 0.0
    %1354 = vmatpush1.msra.mxu0 %v428
    %1355 = vmatprep.subr.mxu0 0.0
    %1356 = vmatpush1.msra.mxu0 %v429
    %1357 = vmatprep.subr.mxu0 0.0
    %1358 = vmatpush1.msra.mxu0 %v430
    %1359 = vmatprep.subr.mxu0 0.0
    %1360 = vmatpush1.msra.mxu0 %v431
    %1361 = vmatprep.subr.mxu0 0.0
    %1362 = vmatpush1.msra.mxu0 %v432
    %1363 = vmatprep.subr.mxu0 0.0
    %1364 = vmatpush1.msra.mxu0 %v433
    %1365 = vmatprep.subr.mxu0 0.0
    %1366 = vmatpush1.msra.mxu0 %v434
    %1367 = vmatprep.subr.mxu0 0.0
    %1368 = vmatpush1.msra.mxu0 %v435
    %1369 = vmatprep.subr.mxu0 0.0
    %1370 = vmatpush1.msra.mxu0 %v436
    %1371 = vmatprep.subr.mxu0 0.0
    %1372 = vmatpush1.msra.mxu0 %v437
    %1373 = vmatprep.subr.mxu0 0.0
    %1374 = vmatpush1.msra.mxu0 %v438
    %1375 = vmatprep.subr.mxu0 0.0
    %1376 = vmatpush1.msra.mxu0 %v439
    %1377 = vmatprep.subr.mxu0 0.0
    %1378 = vmatpush1.msra.mxu0 %v440
    %1379 = vmatprep.subr.mxu0 0.0
    %1380 = vmatpush1.msra.mxu0 %v441
    %1381 = vmatprep.subr.mxu0 0.0
    %1382 = vmatpush1.msra.mxu0 %v442
    %1383 = vmatprep.subr.mxu0 0.0
    %1384 = vmatpush1.msra.mxu0 %v443
    %1385 = vmatprep.subr.mxu0 0.0
    %1386 = vmatpush1.msra.mxu0 %v444
    %1387 = vmatprep.subr.mxu0 0.0
    %1388 = vmatpush1.msra.mxu0 %v445
    %1389 = vmatprep.subr.mxu0 0.0
    %1390 = vmatpush1.msra.mxu0 %v446
    %1391 = vmatprep.subr.mxu0 0.0
    %1392 = vmatpush1.msra.mxu0 %v447
    %1393 = vmatprep.subr.mxu0 0.0
    %1394 = vmatpush1.msra.mxu0 %v448
    %1395 = vmatprep.subr.mxu0 0.0
    %1396 = vmatpush1.msra.mxu0 %v449
    %1397 = vmatprep.subr.mxu0 0.0
    %1398 = vmatpush1.msra.mxu0 %v450
    %1399 = vmatprep.subr.mxu0 0.0
    %1400 = vmatpush1.msra.mxu0 %v451
    %1401 = vmatprep.subr.mxu0 0.0
    %1402 = vmatpush1.msra.mxu0 %v452
    %1403 = vmatprep.subr.mxu0 0.0
    %1404 = vmatpush1.msra.mxu0 %v453
    %1405 = vmatprep.subr.mxu0 0.0
    %1406 = vmatpush1.msra.mxu0 %v454
    %1407 = vmatprep.subr.mxu0 0.0
    %1408 = vmatpush1.msra.mxu0 %v455
    %1409 = vmatprep.mubr.f32.mxu0 %v611
    %1410 = vmatmul.mubr.f32.gmra.mrb[0].mxu0 %v603
    %v1411 = vpop.f32.mrb[0].mxu0
    %v1412 = vadd.f32 %v1342, %v1411
    %v1413 = vpop.f32.mrb[0].mxu0
    %1414 = vdwg.mxu0
    %1415 = vmatprep.subr.mxu0 0.0
    %1416 = vmatpush1.msra.mxu0 %v456
    %1417 = vmatprep.subr.mxu0 0.0
    %1418 = vmatpush1.msra.mxu0 %v457
    %1419 = vmatprep.subr.mxu0 0.0
    %1420 = vmatpush1.msra.mxu0 %v458
    %1421 = vmatprep.subr.mxu0 0.0
    %1422 = vmatpush1.msra.mxu0 %v459
    %1423 = vmatprep.subr.mxu0 0.0
    %1424 = vmatpush1.msra.mxu0 %v460
    %1425 = vmatprep.subr.mxu0 0.0
    %1426 = vmatpush1.msra.mxu0 %v461
    %1427 = vmatprep.subr.mxu0 0.0
    %1428 = vmatpush1.msra.mxu0 %v462
    %1429 = vmatprep.subr.mxu0 0.0
    %1430 = vmatpush1.msra.mxu0 %v463
    %1431 = vmatprep.subr.mxu0 0.0
    %1432 = vmatpush1.msra.mxu0 %v464
    %1433 = vmatprep.subr.mxu0 0.0
    %1434 = vmatpush1.msra.mxu0 %v465
    %1435 = vmatprep.subr.mxu0 0.0
    %1436 = vmatpush1.msra.mxu0 %v466
    %1437 = vmatprep.subr.mxu0 0.0
    %1438 = vmatpush1.msra.mxu0 %v467
    %1439 = vmatprep.subr.mxu0 0.0
    %1440 = vmatpush1.msra.mxu0 %v468
    %1441 = vmatprep.subr.mxu0 0.0
    %1442 = vmatpush1.msra.mxu0 %v469
    %1443 = vmatprep.subr.mxu0 0.0
    %1444 = vmatpush1.msra.mxu0 %v470
    %1445 = vmatprep.subr.mxu0 0.0
    %1446 = vmatpush1.msra.mxu0 %v471
    %1447 = vmatprep.subr.mxu0 0.0
    %1448 = vmatpush1.msra.mxu0 %v472
    %1449 = vmatprep.subr.mxu0 0.0
    %1450 = vmatpush1.msra.mxu0 %v473
    %1451 = vmatprep.subr.mxu0 0.0
    %1452 = vmatpush1.msra.mxu0 %v474
    %1453 = vmatprep.subr.mxu0 0.0
    %1454 = vmatpush1.msra.mxu0 %v475
    %1455 = vmatprep.subr.mxu0 0.0
    %1456 = vmatpush1.msra.mxu0 %v476
    %1457 = vmatprep.subr.mxu0 0.0
    %1458 = vmatpush1.msra.mxu0 %v477
    %1459 = vmatprep.subr.mxu0 0.0
    %1460 = vmatpush1.msra.mxu0 %v478
    %1461 = vmatprep.subr.mxu0 0.0
    %1462 = vmatpush1.msra.mxu0 %v479
    %1463 = vmatprep.subr.mxu0 0.0
    %1464 = vmatpush1.msra.mxu0 %v480
    %1465 = vmatprep.subr.mxu0 0.0
    %1466 = vmatpush1.msra.mxu0 %v481
    %1467 = vmatprep.subr.mxu0 0.0
    %1468 = vmatpush1.msra.mxu0 %v482
    %1469 = vmatprep.subr.mxu0 0.0
    %1470 = vmatpush1.msra.mxu0 %v483
    %1471 = vmatprep.subr.mxu0 0.0
    %1472 = vmatpush1.msra.mxu0 %v484
    %1473 = vmatprep.subr.mxu0 0.0
    %1474 = vmatpush1.msra.mxu0 %v485
    %1475 = vmatprep.subr.mxu0 0.0
    %1476 = vmatpush1.msra.mxu0 %v486
    %1477 = vmatprep.subr.mxu0 0.0
    %1478 = vmatpush1.msra.mxu0 %v487
    %1479 = vmatprep.mubr.f32.mxu0 %v612
    %1480 = vmatmul.mubr.f32.gmra.mrb[0].mxu0 %v610
    %v1481 = vpop.f32.mrb[0].mxu0
    %v1482 = vadd.f32 %v1412, %v1481
    %v1483 = vpop.f32.mrb[0].mxu0
    %1484 = vdwg.mxu0
    %1485 = vmatprep.subr.mxu0 0.0
    %1486 = vmatpush1.msra.mxu0 %v488
    %1487 = vmatprep.subr.mxu0 0.0
    %1488 = vmatpush1.msra.mxu0 %v489
    %1489 = vmatprep.subr.mxu0 0.0
    %1490 = vmatpush1.msra.mxu0 %v490
    %1491 = vmatprep.subr.mxu0 0.0
    %1492 = vmatpush1.msra.mxu0 %v491
    %1493 = vmatprep.subr.mxu0 0.0
    %1494 = vmatpush1.msra.mxu0 %v492
    %1495 = vmatprep.subr.mxu0 0.0
    %1496 = vmatpush1.msra.mxu0 %v493
    %1497 = vmatprep.subr.mxu0 0.0
    %1498 = vmatpush1.msra.mxu0 %v494
    %1499 = vmatprep.subr.mxu0 0.0
    %1500 = vmatpush1.msra.mxu0 %v495
    %1501 = vmatprep.subr.mxu0 0.0
    %1502 = vmatpush1.msra.mxu0 %v496
    %1503 = vmatprep.subr.mxu0 0.0
    %1504 = vmatpush1.msra.mxu0 %v497
    %1505 = vmatprep.subr.mxu0 0.0
    %1506 = vmatpush1.msra.mxu0 %v498
    %1507 = vmatprep.subr.mxu0 0.0
    %1508 = vmatpush1.msra.mxu0 %v499
    %1509 = vmatprep.subr.mxu0 0.0
    %1510 = vmatpush1.msra.mxu0 %v500
    %1511 = vmatprep.subr.mxu0 0.0
    %1512 = vmatpush1.msra.mxu0 %v501
    %1513 = vmatprep.subr.mxu0 0.0
    %1514 = vmatpush1.msra.mxu0 %v502
    %1515 = vmatprep.subr.mxu0 0.0
    %1516 = vmatpush1.msra.mxu0 %v503
    %1517 = vmatprep.subr.mxu0 0.0
    %1518 = vmatpush1.msra.mxu0 0.0
    %1519 = vmatprep.subr.mxu0 0.0
    %1520 = vmatpush1.msra.mxu0 0.0
    %1521 = vmatprep.subr.mxu0 0.0
    %1522 = vmatpush1.msra.mxu0 0.0
    %1523 = vmatprep.subr.mxu0 0.0
    %1524 = vmatpush1.msra.mxu0 0.0
    %1525 = vmatprep.subr.mxu0 0.0
    %1526 = vmatpush1.msra.mxu0 0.0
    %1527 = vmatprep.subr.mxu0 0.0
    %1528 = vmatpush1.msra.mxu0 0.0
    %1529 = vmatprep.subr.mxu0 0.0
    %1530 = vmatpush1.msra.mxu0 0.0
    %1531 = vmatprep.subr.mxu0 0.0
    %1532 = vmatpush1.msra.mxu0 0.0
    %1533 = vmatprep.subr.mxu0 0.0
    %1534 = vmatpush1.msra.mxu0 0.0
    %1535 = vmatprep.subr.mxu0 0.0
    %1536 = vmatpush1.msra.mxu0 0.0
    %1537 = vmatprep.subr.mxu0 0.0
    %1538 = vmatpush1.msra.mxu0 0.0
    %1539 = vmatprep.subr.mxu0 0.0
    %1540 = vmatpush1.msra.mxu0 0.0
    %1541 = vmatprep.subr.mxu0 0.0
    %1542 = vmatpush1.msra.mxu0 0.0
    %1543 = vmatprep.subr.mxu0 0.0
    %1544 = vmatpush1.msra.mxu0 0.0
    %1545 = vmatprep.subr.mxu0 0.0
    %1546 = vmatpush1.msra.mxu0 0.0
    %1547 = vmatprep.subr.mxu0 0.0
    %1548 = vmatpush1.msra.mxu0 0.0
    %1549 = vmatprep.mubr.f32.mxu0 0.0
    %1550 = vmatmul.mubr.f32.gmra.mrb[0].mxu0 %v619
    %v1551 = vpop.f32.mrb[0].mxu0
    %v1552 = vadd.f32 %v1482, %v1551
    %v1553 = vpop.f32.mrb[0].mxu0
    %1554 = vdwg.mxu0
    %s1555 = sld [smem:[#allocation2]]
    %v1556 = vstv %s1555
    %s1557 = sld [smem:[#allocation10]]
    %v1558 = vstv %s1557
    %v1559 = vmul.f32 %v1552, %v1558
    %s1560 = sld [smem:[#allocation10 + $0x1]]
    %v1561 = vstv %s1560
    %v1562 = vmul.f32 %v1552, %v1561
    %1564 = vrot.lane.b32.xlu0 %v1562, 64
    %v1565 = vpop.permute.xlu0 %1564
    %v1567 = vadd.f32 %v1559, %v1565
    %s1568 = sld [smem:[#allocation11]]
    %v1569 = vstv %s1568
    %v1570 = vadd.f32 %v1567, %v1569
    %v1571 = vmax.f32 %v1570, 0.0
    %s1572 = sld [smem:[#allocation13]]
    %v1573 = vstv %s1572
    %v1574 = vmul.f32 %v1571, %v1573
    %v1575 = vadd.f32 %v1556, %v1574
    %s1576 = sld [smem:[#allocation10 + $0x2]]
    %v1577 = vstv %s1576
    %v1578 = vmul.f32 %v1552, %v1577
    %s1579 = sld [smem:[#allocation10 + $0x3]]
    %v1580 = vstv %s1579
    %v1581 = vmul.f32 %v1552, %v1580
    %1583 = vrot.lane.b32.xlu0 %v1581, 64
    %v1584 = vpop.permute.xlu0 %1583
    %v1586 = vadd.f32 %v1578, %v1584
    %s1587 = sld [smem:[#allocation11 + $0x1]]
    %v1588 = vstv %s1587
    %v1589 = vadd.f32 %v1586, %v1588
    %v1590 = vmax.f32 %v1589, 0.0
    %s1591 = sld [smem:[#allocation13 + $0x1]]
    %v1592 = vstv %s1591
    %v1593 = vmul.f32 %v1590, %v1592
    %v1594 = vadd.f32 %v1575, %v1593
    %s1595 = sld [smem:[#allocation10 + $0x4]]
    %v1596 = vstv %s1595
    %v1597 = vmul.f32 %v1552, %v1596
    %s1598 = sld [smem:[#allocation10 + $0x5]]
    %v1599 = vstv %s1598
    %v1600 = vmul.f32 %v1552, %v1599
    %1602 = vrot.lane.b32.xlu0 %v1600, 64
    %v1603 = vpop.permute.xlu0 %1602
    %v1605 = vadd.f32 %v1597, %v1603
    %s1606 = sld [smem:[#allocation11 + $0x2]]
    %v1607 = vstv %s1606
    %v1608 = vadd.f32 %v1605, %v1607
    %v1609 = vmax.f32 %v1608, 0.0
    %s1610 = sld [smem:[#allocation13 + $0x2]]
    %v1611 = vstv %s1610
    %v1612 = vmul.f32 %v1609, %v1611
    %v1613 = vadd.f32 %v1594, %v1612
    %s1614 = sld [smem:[#allocation10 + $0x6]]
    %v1615 = vstv %s1614
    %v1616 = vmul.f32 %v1552, %v1615
    %s1617 = sld [smem:[#allocation10 + $0x7]]
    %v1618 = vstv %s1617
    %v1619 = vmul.f32 %v1552, %v1618
    %1621 = vrot.lane.b32.xlu0 %v1619, 64
    %v1622 = vpop.permute.xlu0 %1621
    %v1624 = vadd.f32 %v1616, %v1622
    %s1625 = sld [smem:[#allocation11 + $0x3]]
    %v1626 = vstv %s1625
    %v1627 = vadd.f32 %v1624, %v1626
    %v1628 = vmax.f32 %v1627, 0.0
    %s1629 = sld [smem:[#allocation13 + $0x3]]
    %v1630 = vstv %s1629
    %v1631 = vmul.f32 %v1628, %v1630
    %v1632 = vadd.f32 %v1613, %v1631
    %s1633 = sld [smem:[#allocation10 + $0x8]]
    %v1634 = vstv %s1633
    %v1635 = vmul.f32 %v1552, %v1634
    %s1636 = sld [smem:[#allocation10 + $0x9]]
    %v1637 = vstv %s1636
    %v1638 = vmul.f32 %v1552, %v1637
    %1640 = vrot.lane.b32.xlu0 %v1638, 64
    %v1641 = vpop.permute.xlu0 %1640
    %v1643 = vadd.f32 %v1635, %v1641
    %s1644 = sld [smem:[#allocation11 + $0x4]]
    %v1645 = vstv %s1644
    %v1646 = vadd.f32 %v1643, %v1645
    %v1647 = vmax.f32 %v1646, 0.0
    %s1648 = sld [smem:[#allocation13 + $0x4]]
    %v1649 = vstv %s1648
    %v1650 = vmul.f32 %v1647, %v1649
    %v1651 = vadd.f32 %v1632, %v1650
    %s1652 = sld [smem:[#allocation10 + $0xa]]
    %v1653 = vstv %s1652
    %v1654 = vmul.f32 %v1552, %v1653
    %s1655 = sld [smem:[#allocation10 + $0xb]]
    %v1656 = vstv %s1655
    %v1657 = vmul.f32 %v1552, %v1656
    %1659 = vrot.lane.b32.xlu0 %v1657, 64
    %v1660 = vpop.permute.xlu0 %1659
    %v1662 = vadd.f32 %v1654, %v1660
    %s1663 = sld [smem:[#allocation11 + $0x5]]
    %v1664 = vstv %s1663
    %v1665 = vadd.f32 %v1662, %v1664
    %v1666 = vmax.f32 %v1665, 0.0
    %s1667 = sld [smem:[#allocation13 + $0x5]]
    %v1668 = vstv %s1667
    %v1669 = vmul.f32 %v1666, %v1668
    %v1670 = vadd.f32 %v1651, %v1669
    %s1671 = sld [smem:[#allocation10 + $0xc]]
    %v1672 = vstv %s1671
    %v1673 = vmul.f32 %v1552, %v1672
    %s1674 = sld [smem:[#allocation10 + $0xd]]
    %v1675 = vstv %s1674
    %v1676 = vmul.f32 %v1552, %v1675
    %1678 = vrot.lane.b32.xlu0 %v1676, 64
    %v1679 = vpop.permute.xlu0 %1678
    %v1681 = vadd.f32 %v1673, %v1679
    %s1682 = sld [smem:[#allocation11 + $0x6]]
    %v1683 = vstv %s1682
    %v1684 = vadd.f32 %v1681, %v1683
    %v1685 = vmax.f32 %v1684, 0.0
    %s1686 = sld [smem:[#allocation13 + $0x6]]
    %v1687 = vstv %s1686
    %v1688 = vmul.f32 %v1685, %v1687
    %v1689 = vadd.f32 %v1670, %v1688
    %s1690 = sld [smem:[#allocation10 + $0xe]]
    %v1691 = vstv %s1690
    %v1692 = vmul.f32 %v1552, %v1691
    %s1693 = sld [smem:[#allocation10 + $0xf]]
    %v1694 = vstv %s1693
    %v1695 = vmul.f32 %v1552, %v1694
    %1697 = vrot.lane.b32.xlu0 %v1695, 64
    %v1698 = vpop.permute.xlu0 %1697
    %v1700 = vadd.f32 %v1692, %v1698
    %s1701 = sld [smem:[#allocation11 + $0x7]]
    %v1702 = vstv %s1701
    %v1703 = vadd.f32 %v1700, %v1702
    %v1704 = vmax.f32 %v1703, 0.0
    %s1705 = sld [smem:[#allocation13 + $0x7]]
    %v1706 = vstv %s1705
    %v1707 = vmul.f32 %v1704, %v1706
    %v1708 = vadd.f32 %v1689, %v1707
    %s1709 = sld [smem:[#allocation10 + $0x10]]
    %v1710 = vstv %s1709
    %v1711 = vmul.f32 %v1552, %v1710
    %s1712 = sld [smem:[#allocation10 + $0x11]]
    %v1713 = vstv %s1712
    %v1714 = vmul.f32 %v1552, %v1713
    %1716 = vrot.lane.b32.xlu0 %v1714, 64
    %v1717 = vpop.permute.xlu0 %1716
    %v1719 = vadd.f32 %v1711, %v1717
    %s1720 = sld [smem:[#allocation11 + $0x8]]
    %v1721 = vstv %s1720
    %v1722 = vadd.f32 %v1719, %v1721
    %v1723 = vmax.f32 %v1722, 0.0
    %s1724 = sld [smem:[#allocation13 + $0x8]]
    %v1725 = vstv %s1724
    %v1726 = vmul.f32 %v1723, %v1725
    %v1727 = vadd.f32 %v1708, %v1726
    %s1728 = sld [smem:[#allocation10 + $0x12]]
    %v1729 = vstv %s1728
    %v1730 = vmul.f32 %v1552, %v1729
    %s1731 = sld [smem:[#allocation10 + $0x13]]
    %v1732 = vstv %s1731
    %v1733 = vmul.f32 %v1552, %v1732
    %1735 = vrot.lane.b32.xlu0 %v1733, 64
    %v1736 = vpop.permute.xlu0 %1735
    %v1738 = vadd.f32 %v1730, %v1736
    %s1739 = sld [smem:[#allocation11 + $0x9]]
    %v1740 = vstv %s1739
    %v1741 = vadd.f32 %v1738, %v1740
    %v1742 = vmax.f32 %v1741, 0.0
    %s1743 = sld [smem:[#allocation13 + $0x9]]
    %v1744 = vstv %s1743
    %v1745 = vmul.f32 %v1742, %v1744
    %v1746 = vadd.f32 %v1727, %v1745
    %s1747 = sld [smem:[#allocation10 + $0x14]]
    %v1748 = vstv %s1747
    %v1749 = vmul.f32 %v1552, %v1748
    %s1750 = sld [smem:[#allocation10 + $0x15]]
    %v1751 = vstv %s1750
    %v1752 = vmul.f32 %v1552, %v1751
    %1754 = vrot.lane.b32.xlu0 %v1752, 64
    %v1755 = vpop.permute.xlu0 %1754
    %v1757 = vadd.f32 %v1749, %v1755
    %s1758 = sld [smem:[#allocation11 + $0xa]]
    %v1759 = vstv %s1758
    %v1760 = vadd.f32 %v1757, %v1759
    %v1761 = vmax.f32 %v1760, 0.0
    %s1762 = sld [smem:[#allocation13 + $0xa]]
    %v1763 = vstv %s1762
    %v1764 = vmul.f32 %v1761, %v1763
    %v1765 = vadd.f32 %v1746, %v1764
    %s1766 = sld [smem:[#allocation10 + $0x16]]
    %v1767 = vstv %s1766
    %v1768 = vmul.f32 %v1552, %v1767
    %s1769 = sld [smem:[#allocation10 + $0x17]]
    %v1770 = vstv %s1769
    %v1771 = vmul.f32 %v1552, %v1770
    %1773 = vrot.lane.b32.xlu0 %v1771, 64
    %v1774 = vpop.permute.xlu0 %1773
    %v1776 = vadd.f32 %v1768, %v1774
    %s1777 = sld [smem:[#allocation11 + $0xb]]
    %v1778 = vstv %s1777
    %v1779 = vadd.f32 %v1776, %v1778
    %v1780 = vmax.f32 %v1779, 0.0
    %s1781 = sld [smem:[#allocation13 + $0xb]]
    %v1782 = vstv %s1781
    %v1783 = vmul.f32 %v1780, %v1782
    %v1784 = vadd.f32 %v1765, %v1783
    %s1785 = sld [smem:[#allocation10 + $0x18]]
    %v1786 = vstv %s1785
    %v1787 = vmul.f32 %v1552, %v1786
    %s1788 = sld [smem:[#allocation10 + $0x19]]
    %v1789 = vstv %s1788
    %v1790 = vmul.f32 %v1552, %v1789
    %1792 = vrot.lane.b32.xlu0 %v1790, 64
    %v1793 = vpop.permute.xlu0 %1792
    %v1795 = vadd.f32 %v1787, %v1793
    %s1796 = sld [smem:[#allocation11 + $0xc]]
    %v1797 = vstv %s1796
    %v1798 = vadd.f32 %v1795, %v1797
    %v1799 = vmax.f32 %v1798, 0.0
    %s1800 = sld [smem:[#allocation13 + $0xc]]
    %v1801 = vstv %s1800
    %v1802 = vmul.f32 %v1799, %v1801
    %v1803 = vadd.f32 %v1784, %v1802
    %s1804 = sld [smem:[#allocation10 + $0x1a]]
    %v1805 = vstv %s1804
    %v1806 = vmul.f32 %v1552, %v1805
    %s1807 = sld [smem:[#allocation10 + $0x1b]]
    %v1808 = vstv %s1807
    %v1809 = vmul.f32 %v1552, %v1808
    %1811 = vrot.lane.b32.xlu0 %v1809, 64
    %v1812 = vpop.permute.xlu0 %1811
    %v1814 = vadd.f32 %v1806, %v1812
    %s1815 = sld [smem:[#allocation11 + $0xd]]
    %v1816 = vstv %s1815
    %v1817 = vadd.f32 %v1814, %v1816
    %v1818 = vmax.f32 %v1817, 0.0
    %s1819 = sld [smem:[#allocation13 + $0xd]]
    %v1820 = vstv %s1819
    %v1821 = vmul.f32 %v1818, %v1820
    %v1822 = vadd.f32 %v1803, %v1821
    %s1823 = sld [smem:[#allocation10 + $0x1c]]
    %v1824 = vstv %s1823
    %v1825 = vmul.f32 %v1552, %v1824
    %s1826 = sld [smem:[#allocation10 + $0x1d]]
    %v1827 = vstv %s1826
    %v1828 = vmul.f32 %v1552, %v1827
    %1830 = vrot.lane.b32.xlu0 %v1828, 64
    %v1831 = vpop.permute.xlu0 %1830
    %v1833 = vadd.f32 %v1825, %v1831
    %s1834 = sld [smem:[#allocation11 + $0xe]]
    %v1835 = vstv %s1834
    %v1836 = vadd.f32 %v1833, %v1835
    %v1837 = vmax.f32 %v1836, 0.0
    %s1838 = sld [smem:[#allocation13 + $0xe]]
    %v1839 = vstv %s1838
    %v1840 = vmul.f32 %v1837, %v1839
    %v1841 = vadd.f32 %v1822, %v1840
    %s1842 = sld [smem:[#allocation10 + $0x1e]]
    %v1843 = vstv %s1842
    %v1844 = vmul.f32 %v1552, %v1843
    %s1845 = sld [smem:[#allocation10 + $0x1f]]
    %v1846 = vstv %s1845
    %v1847 = vmul.f32 %v1552, %v1846
    %1849 = vrot.lane.b32.xlu0 %v1847, 64
    %v1850 = vpop.permute.xlu0 %1849
    %v1852 = vadd.f32 %v1844, %v1850
    %s1853 = sld [smem:[#allocation11 + $0xf]]
    %v1854 = vstv %s1853
    %v1855 = vadd.f32 %v1852, %v1854
    %v1856 = vmax.f32 %v1855, 0.0
    %s1857 = sld [smem:[#allocation13 + $0xf]]
    %v1858 = vstv %s1857
    %v1859 = vmul.f32 %v1856, %v1858
    %v1860 = vadd.f32 %v1841, %v1859
    %v1861 = vld [vmem:[#allocation9] sm:$0xff]
    %v1862 = vld [vmem:[#allocation9 + $0x8] sm:$0xff]
    %v1863 = vld [vmem:[#allocation9 + $0x10] sm:$0xff]
    %v1864 = vld [vmem:[#allocation9 + $0x18] sm:$0xff]
    %v1865 = vld [vmem:[#allocation9 + $0x20] sm:$0xff]
    %v1866 = vld [vmem:[#allocation9 + $0x28] sm:$0xff]
    %v1867 = vld [vmem:[#allocation9 + $0x30] sm:$0xff]
    %v1868 = vld [vmem:[#allocation9 + $0x38] sm:$0xff]
    %v1869 = vld [vmem:[#allocation9 + $0x40] sm:$0xff]
    %v1870 = vld [vmem:[#allocation9 + $0x48] sm:$0xff]
    %v1871 = vld [vmem:[#allocation9 + $0x50] sm:$0xff]
    %v1872 = vld [vmem:[#allocation9 + $0x58] sm:$0xff]
    %v1873 = vld [vmem:[#allocation9 + $0x60] sm:$0xff]
    %v1874 = vld [vmem:[#allocation9 + $0x68] sm:$0xff]
    %v1875 = vld [vmem:[#allocation9 + $0x70] sm:$0xff]
    %v1876 = vld [vmem:[#allocation9 + $0x78] sm:$0xff]
    %v1877 = vld [vmem:[#allocation9 + $0x80] sm:$0xff]
    %v1878 = vld [vmem:[#allocation9 + $0x88] sm:$0xff]
    %v1879 = vld [vmem:[#allocation9 + $0x90] sm:$0xff]
    %v1880 = vld [vmem:[#allocation9 + $0x98] sm:$0xff]
    %v1881 = vld [vmem:[#allocation9 + $0xa0] sm:$0xff]
    %v1882 = vld [vmem:[#allocation9 + $0xa8] sm:$0xff]
    %v1883 = vld [vmem:[#allocation9 + $0xb0] sm:$0xff]
    %v1884 = vld [vmem:[#allocation9 + $0xb8] sm:$0xff]
    %v1885 = vld [vmem:[#allocation9 + $0xc0] sm:$0xff]
    %v1886 = vld [vmem:[#allocation9 + $0xc8] sm:$0xff]
    %v1887 = vld [vmem:[#allocation9 + $0xd0] sm:$0xff]
    %v1888 = vld [vmem:[#allocation9 + $0xd8] sm:$0xff]
    %v1889 = vld [vmem:[#allocation9 + $0xe0] sm:$0xff]
    %v1890 = vld [vmem:[#allocation9 + $0xe8] sm:$0xff]
    %v1891 = vld [vmem:[#allocation9 + $0xf0] sm:$0xff]
    %v1892 = vld [vmem:[#allocation9 + $0xf8] sm:$0xff]
    %v1893 = vld [vmem:[#allocation9 + $0x100] sm:$0xff]
    %v1894 = vld [vmem:[#allocation9 + $0x108] sm:$0xff]
    %v1895 = vld [vmem:[#allocation9 + $0x110] sm:$0xff]
    %v1896 = vld [vmem:[#allocation9 + $0x118] sm:$0xff]
    %v1897 = vld [vmem:[#allocation9 + $0x120] sm:$0xff]
    %v1898 = vld [vmem:[#allocation9 + $0x128] sm:$0xff]
    %v1899 = vld [vmem:[#allocation9 + $0x130] sm:$0xff]
    %v1900 = vld [vmem:[#allocation9 + $0x138] sm:$0xff]
    %v1901 = vld [vmem:[#allocation9 + $0x140] sm:$0xff]
    %v1902 = vld [vmem:[#allocation9 + $0x148] sm:$0xff]
    %v1903 = vld [vmem:[#allocation9 + $0x150] sm:$0xff]
    %v1904 = vld [vmem:[#allocation9 + $0x158] sm:$0xff]
    %v1905 = vld [vmem:[#allocation9 + $0x160] sm:$0xff]
    %v1906 = vld [vmem:[#allocation9 + $0x168] sm:$0xff]
    %v1907 = vld [vmem:[#allocation9 + $0x170] sm:$0xff]
    %v1908 = vld [vmem:[#allocation9 + $0x178] sm:$0xff]
    %v1909 = vld [vmem:[#allocation9 + $0x180] sm:$0xff]
    %v1910 = vld [vmem:[#allocation9 + $0x188] sm:$0xff]
    %v1911 = vld [vmem:[#allocation9 + $0x190] sm:$0xff]
    %v1912 = vld [vmem:[#allocation9 + $0x198] sm:$0xff]
    %v1913 = vld [vmem:[#allocation9 + $0x1a0] sm:$0xff]
    %v1914 = vld [vmem:[#allocation9 + $0x1a8] sm:$0xff]
    %v1915 = vld [vmem:[#allocation9 + $0x1b0] sm:$0xff]
    %v1916 = vld [vmem:[#allocation9 + $0x1b8] sm:$0xff]
    %v1917 = vld [vmem:[#allocation9 + $0x1c0] sm:$0xff]
    %v1918 = vld [vmem:[#allocation9 + $0x1c8] sm:$0xff]
    %v1919 = vld [vmem:[#allocation9 + $0x1d0] sm:$0xff]
    %v1920 = vld [vmem:[#allocation9 + $0x1d8] sm:$0xff]
    %v1921 = vld [vmem:[#allocation9 + $0x1e0] sm:$0xff]
    %v1922 = vld [vmem:[#allocation9 + $0x1e8] sm:$0xff]
    %v1923 = vld [vmem:[#allocation9 + $0x1f0] sm:$0xff]
    %v1924 = vld [vmem:[#allocation9 + $0x1f8] sm:$0xff]
    %v1925 = vld [vmem:[#allocation9 + $0x200] sm:$0xff]
    %v1926 = vld [vmem:[#allocation9 + $0x208] sm:$0xff]
    %v1927 = vld [vmem:[#allocation9 + $0x210] sm:$0xff]
    %v1928 = vld [vmem:[#allocation9 + $0x218] sm:$0xff]
    %v1929 = vld [vmem:[#allocation9 + $0x220] sm:$0xff]
    %v1930 = vld [vmem:[#allocation9 + $0x228] sm:$0xff]
    %v1931 = vld [vmem:[#allocation9 + $0x230] sm:$0xff]
    %v1932 = vld [vmem:[#allocation9 + $0x238] sm:$0xff]
    %v1933 = vld [vmem:[#allocation9 + $0x240] sm:$0xff]
    %v1934 = vld [vmem:[#allocation9 + $0x248] sm:$0xff]
    %v1935 = vld [vmem:[#allocation9 + $0x250] sm:$0xff]
    %v1936 = vld [vmem:[#allocation9 + $0x258] sm:$0xff]
    %v1937 = vld [vmem:[#allocation9 + $0x260] sm:$0xff]
    %v1938 = vld [vmem:[#allocation9 + $0x268] sm:$0xff]
    %v1939 = vld [vmem:[#allocation9 + $0x270] sm:$0xff]
    %v1940 = vld [vmem:[#allocation9 + $0x278] sm:$0xff]
    %v1941 = vld [vmem:[#allocation9 + $0x280] sm:$0xff]
    %v1942 = vld [vmem:[#allocation9 + $0x288] sm:$0xff]
    %v1943 = vld [vmem:[#allocation9 + $0x290] sm:$0xff]
    %v1944 = vld [vmem:[#allocation9 + $0x298] sm:$0xff]
    %v1945 = vld [vmem:[#allocation9 + $0x2a0] sm:$0xff]
    %v1946 = vld [vmem:[#allocation9 + $0x2a8] sm:$0xff]
    %v1947 = vld [vmem:[#allocation9 + $0x2b0] sm:$0xff]
    %v1948 = vld [vmem:[#allocation9 + $0x2b8] sm:$0xff]
    %v1949 = vld [vmem:[#allocation9 + $0x2c0] sm:$0xff]
    %v1950 = vld [vmem:[#allocation9 + $0x2c8] sm:$0xff]
    %v1951 = vld [vmem:[#allocation9 + $0x2d0] sm:$0xff]
    %v1952 = vld [vmem:[#allocation9 + $0x2d8] sm:$0xff]
    %v1953 = vld [vmem:[#allocation9 + $0x2e0] sm:$0xff]
    %v1954 = vld [vmem:[#allocation9 + $0x2e8] sm:$0xff]
    %v1955 = vld [vmem:[#allocation9 + $0x2f0] sm:$0xff]
    %v1956 = vld [vmem:[#allocation9 + $0x2f8] sm:$0xff]
    %v1957 = vld [vmem:[#allocation9 + $0x300] sm:$0xff]
    %v1958 = vld [vmem:[#allocation9 + $0x308] sm:$0xff]
    %v1959 = vld [vmem:[#allocation9 + $0x310] sm:$0xff]
    %v1960 = vld [vmem:[#allocation9 + $0x318] sm:$0xff]
    %v1961 = vld [vmem:[#allocation9 + $0x320] sm:$0xff]
    %v1962 = vld [vmem:[#allocation9 + $0x328] sm:$0xff]
    %v1963 = vld [vmem:[#allocation9 + $0x330] sm:$0xff]
    %v1964 = vld [vmem:[#allocation9 + $0x338] sm:$0xff]
    %vm1965 = vcmask 523264
    %v1967 = vsel %vm1965, %v1860, 0
    %1969 = vmatprep.subr.mxu0 %v1862
    %1970 = vmatpush1.msra.mxu0 %v1861
    %1971 = vmatprep.subr.mxu0 %v1875
    %1972 = vmatpush1.msra.mxu0 %v1874
    %1973 = vmatprep.subr.mxu0 %v1888
    %1974 = vmatpush1.msra.mxu0 %v1887
    %1975 = vmatprep.subr.mxu0 %v1901
    %1976 = vmatpush1.msra.mxu0 %v1900
    %1977 = vmatprep.subr.mxu0 %v1914
    %1978 = vmatpush1.msra.mxu0 %v1913
    %1979 = vmatprep.subr.mxu0 %v1927
    %1980 = vmatpush1.msra.mxu0 %v1926
    %1981 = vmatprep.subr.mxu0 %v1940
    %1982 = vmatpush1.msra.mxu0 %v1939
    %1983 = vmatprep.subr.mxu0 %v1953
    %1984 = vmatpush1.msra.mxu0 %v1952
    %1985 = vmatprep.subr.mxu0 0.0
    %1986 = vmatpush1.msra.mxu0 0.0
    %1987 = vmatprep.subr.mxu0 0.0
    %1988 = vmatpush1.msra.mxu0 0.0
    %1989 = vmatprep.subr.mxu0 0.0
    %1990 = vmatpush1.msra.mxu0 0.0
    %1991 = vmatprep.subr.mxu0 0.0
    %1992 = vmatpush1.msra.mxu0 0.0
    %1993 = vmatprep.subr.mxu0 0.0
    %1994 = vmatpush1.msra.mxu0 0.0
    %1995 = vmatprep.subr.mxu0 0.0
    %1996 = vmatpush1.msra.mxu0 0.0
    %1997 = vmatprep.subr.mxu0 0.0
    %1998 = vmatpush1.msra.mxu0 0.0
    %1999 = vmatprep.subr.mxu0 0.0
    %2000 = vmatpush1.msra.mxu0 0.0
    %2001 = vmatprep.subr.mxu0 0.0
    %2002 = vmatpush1.msra.mxu0 0.0
    %2003 = vmatprep.subr.mxu0 0.0
    %2004 = vmatpush1.msra.mxu0 0.0
    %2005 = vmatprep.subr.mxu0 0.0
    %2006 = vmatpush1.msra.mxu0 0.0
    %2007 = vmatprep.subr.mxu0 0.0
    %2008 = vmatpush1.msra.mxu0 0.0
    %2009 = vmatprep.subr.mxu0 0.0
    %2010 = vmatpush1.msra.mxu0 0.0
    %2011 = vmatprep.subr.mxu0 0.0
    %2012 = vmatpush1.msra.mxu0 0.0
    %2013 = vmatprep.subr.mxu0 0.0
    %2014 = vmatpush1.msra.mxu0 0.0
    %2015 = vmatprep.subr.mxu0 0.0
    %2016 = vmatpush1.msra.mxu0 0.0
    %2017 = vmatprep.subr.mxu0 0.0
    %2018 = vmatpush1.msra.mxu0 0.0
    %2019 = vmatprep.subr.mxu0 0.0
    %2020 = vmatpush1.msra.mxu0 0.0
    %2021 = vmatprep.subr.mxu0 0.0
    %2022 = vmatpush1.msra.mxu0 0.0
    %2023 = vmatprep.subr.mxu0 0.0
    %2024 = vmatpush1.msra.mxu0 0.0
    %2025 = vmatprep.subr.mxu0 0.0
    %2026 = vmatpush1.msra.mxu0 0.0
    %2027 = vmatprep.subr.mxu0 0.0
    %2028 = vmatpush1.msra.mxu0 0.0
    %2029 = vmatprep.subr.mxu0 0.0
    %2030 = vmatpush1.msra.mxu0 0.0
    %2031 = vmatprep.subr.mxu0 0.0
    %2032 = vmatpush1.msra.mxu0 0.0
    %2033 = vmatprep.mubr.f32.mxu0 0.0
    %2034 = vmatmul.mubr.f32.gmra.mrb[0].mxu0 %v1967
    %v2035 = vpop.f32.mrb[0].mxu0
    %v2036 = vadd.f32 0.0, %v2035
    %v2037 = vpop.f32.mrb[0].mxu0
    %v2038 = vadd.f32 0.0, %v2037
    %2039 = vdwg.mxu0
    %2040 = vmatprep.subr.mxu0 %v1864
    %2041 = vmatpush1.msra.mxu0 %v1863
    %2042 = vmatprep.subr.mxu0 %v1877
    %2043 = vmatpush1.msra.mxu0 %v1876
    %2044 = vmatprep.subr.mxu0 %v1890
    %2045 = vmatpush1.msra.mxu0 %v1889
    %2046 = vmatprep.subr.mxu0 %v1903
    %2047 = vmatpush1.msra.mxu0 %v1902
    %2048 = vmatprep.subr.mxu0 %v1916
    %2049 = vmatpush1.msra.mxu0 %v1915
    %2050 = vmatprep.subr.mxu0 %v1929
    %2051 = vmatpush1.msra.mxu0 %v1928
    %2052 = vmatprep.subr.mxu0 %v1942
    %2053 = vmatpush1.msra.mxu0 %v1941
    %2054 = vmatprep.subr.mxu0 %v1955
    %2055 = vmatpush1.msra.mxu0 %v1954
    %2056 = vmatprep.subr.mxu0 0.0
    %2057 = vmatpush1.msra.mxu0 0.0
    %2058 = vmatprep.subr.mxu0 0.0
    %2059 = vmatpush1.msra.mxu0 0.0
    %2060 = vmatprep.subr.mxu0 0.0
    %2061 = vmatpush1.msra.mxu0 0.0
    %2062 = vmatprep.subr.mxu0 0.0
    %2063 = vmatpush1.msra.mxu0 0.0
    %2064 = vmatprep.subr.mxu0 0.0
    %2065 = vmatpush1.msra.mxu0 0.0
    %2066 = vmatprep.subr.mxu0 0.0
    %2067 = vmatpush1.msra.mxu0 0.0
    %2068 = vmatprep.subr.mxu0 0.0
    %2069 = vmatpush1.msra.mxu0 0.0
    %2070 = vmatprep.subr.mxu0 0.0
    %2071 = vmatpush1.msra.mxu0 0.0
    %2072 = vmatprep.subr.mxu0 0.0
    %2073 = vmatpush1.msra.mxu0 0.0
    %2074 = vmatprep.subr.mxu0 0.0
    %2075 = vmatpush1.msra.mxu0 0.0
    %2076 = vmatprep.subr.mxu0 0.0
    %2077 = vmatpush1.msra.mxu0 0.0
    %2078 = vmatprep.subr.mxu0 0.0
    %2079 = vmatpush1.msra.mxu0 0.0
    %2080 = vmatprep.subr.mxu0 0.0
    %2081 = vmatpush1.msra.mxu0 0.0
    %2082 = vmatprep.subr.mxu0 0.0
    %2083 = vmatpush1.msra.mxu0 0.0
    %2084 = vmatprep.subr.mxu0 0.0
    %2085 = vmatpush1.msra.mxu0 0.0
    %2086 = vmatprep.subr.mxu0 0.0
    %2087 = vmatpush1.msra.mxu0 0.0
    %2088 = vmatprep.subr.mxu0 0.0
    %2089 = vmatpush1.msra.mxu0 0.0
    %2090 = vmatprep.subr.mxu0 0.0
    %2091 = vmatpush1.msra.mxu0 0.0
    %2092 = vmatprep.subr.mxu0 0.0
    %2093 = vmatpush1.msra.mxu0 0.0
    %2094 = vmatprep.subr.mxu0 0.0
    %2095 = vmatpush1.msra.mxu0 0.0
    %2096 = vmatprep.subr.mxu0 0.0
    %2097 = vmatpush1.msra.mxu0 0.0
    %2098 = vmatprep.subr.mxu0 0.0
    %2099 = vmatpush1.msra.mxu0 0.0
    %2100 = vmatprep.subr.mxu0 0.0
    %2101 = vmatpush1.msra.mxu0 0.0
    %2102 = vmatprep.subr.mxu0 0.0
    %2103 = vmatpush1.msra.mxu0 0.0
    %2104 = vmatprep.mubr.f32.mxu0 0.0
    %2105 = vmatmul.mubr.f32.gmra.mrb[0].mxu0 %v1967
    %v2106 = vpop.f32.mrb[0].mxu0
    %v2107 = vadd.f32 0.0, %v2106
    %v2108 = vpop.f32.mrb[0].mxu0
    %v2109 = vadd.f32 0.0, %v2108
    %2110 = vdwg.mxu0
    %2111 = vmatprep.subr.mxu0 %v1866
    %2112 = vmatpush1.msra.mxu0 %v1865
    %2113 = vmatprep.subr.mxu0 %v1879
    %2114 = vmatpush1.msra.mxu0 %v1878
    %2115 = vmatprep.subr.mxu0 %v1892
    %2116 = vmatpush1.msra.mxu0 %v1891
    %2117 = vmatprep.subr.mxu0 %v1905
    %2118 = vmatpush1.msra.mxu0 %v1904
    %2119 = vmatprep.subr.mxu0 %v1918
    %2120 = vmatpush1.msra.mxu0 %v1917
    %2121 = vmatprep.subr.mxu0 %v1931
    %2122 = vmatpush1.msra.mxu0 %v1930
    %2123 = vmatprep.subr.mxu0 %v1944
    %2124 = vmatpush1.msra.mxu0 %v1943
    %2125 = vmatprep.subr.mxu0 %v1957
    %2126 = vmatpush1.msra.mxu0 %v1956
    %2127 = vmatprep.subr.mxu0 0.0
    %2128 = vmatpush1.msra.mxu0 0.0
    %2129 = vmatprep.subr.mxu0 0.0
    %2130 = vmatpush1.msra.mxu0 0.0
    %2131 = vmatprep.subr.mxu0 0.0
    %2132 = vmatpush1.msra.mxu0 0.0
    %2133 = vmatprep.subr.mxu0 0.0
    %2134 = vmatpush1.msra.mxu0 0.0
    %2135 = vmatprep.subr.mxu0 0.0
    %2136 = vmatpush1.msra.mxu0 0.0
    %2137 = vmatprep.subr.mxu0 0.0
    %2138 = vmatpush1.msra.mxu0 0.0
    %2139 = vmatprep.subr.mxu0 0.0
    %2140 = vmatpush1.msra.mxu0 0.0
    %2141 = vmatprep.subr.mxu0 0.0
    %2142 = vmatpush1.msra.mxu0 0.0
    %2143 = vmatprep.subr.mxu0 0.0
    %2144 = vmatpush1.msra.mxu0 0.0
    %2145 = vmatprep.subr.mxu0 0.0
    %2146 = vmatpush1.msra.mxu0 0.0
    %2147 = vmatprep.subr.mxu0 0.0
    %2148 = vmatpush1.msra.mxu0 0.0
    %2149 = vmatprep.subr.mxu0 0.0
    %2150 = vmatpush1.msra.mxu0 0.0
    %2151 = vmatprep.subr.mxu0 0.0
    %2152 = vmatpush1.msra.mxu0 0.0
    %2153 = vmatprep.subr.mxu0 0.0
    %2154 = vmatpush1.msra.mxu0 0.0
    %2155 = vmatprep.subr.mxu0 0.0
    %2156 = vmatpush1.msra.mxu0 0.0
    %2157 = vmatprep.subr.mxu0 0.0
    %2158 = vmatpush1.msra.mxu0 0.0
    %2159 = vmatprep.subr.mxu0 0.0
    %2160 = vmatpush1.msra.mxu0 0.0
    %2161 = vmatprep.subr.mxu0 0.0
    %2162 = vmatpush1.msra.mxu0 0.0
    %2163 = vmatprep.subr.mxu0 0.0
    %2164 = vmatpush1.msra.mxu0 0.0
    %2165 = vmatprep.subr.mxu0 0.0
    %2166 = vmatpush1.msra.mxu0 0.0
    %2167 = vmatprep.subr.mxu0 0.0
    %2168 = vmatpush1.msra.mxu0 0.0
    %2169 = vmatprep.subr.mxu0 0.0
    %2170 = vmatpush1.msra.mxu0 0.0
    %2171 = vmatprep.subr.mxu0 0.0
    %2172 = vmatpush1.msra.mxu0 0.0
    %2173 = vmatprep.subr.mxu0 0.0
    %2174 = vmatpush1.msra.mxu0 0.0
    %2175 = vmatprep.mubr.f32.mxu0 0.0
    %2176 = vmatmul.mubr.f32.gmra.mrb[0].mxu0 %v1967
    %v2177 = vpop.f32.mrb[0].mxu0
    %v2178 = vadd.f32 0.0, %v2177
    %v2179 = vpop.f32.mrb[0].mxu0
    %v2180 = vadd.f32 0.0, %v2179
    %2181 = vdwg.mxu0
    %2182 = vmatprep.subr.mxu0 %v1868
    %2183 = vmatpush1.msra.mxu0 %v1867
    %2184 = vmatprep.subr.mxu0 %v1881
    %2185 = vmatpush1.msra.mxu0 %v1880
    %2186 = vmatprep.subr.mxu0 %v1894
    %2187 = vmatpush1.msra.mxu0 %v1893
    %2188 = vmatprep.subr.mxu0 %v1907
    %2189 = vmatpush1.msra.mxu0 %v1906
    %2190 = vmatprep.subr.mxu0 %v1920
    %2191 = vmatpush1.msra.mxu0 %v1919
    %2192 = vmatprep.subr.mxu0 %v1933
    %2193 = vmatpush1.msra.mxu0 %v1932
    %2194 = vmatprep.subr.mxu0 %v1946
    %2195 = vmatpush1.msra.mxu0 %v1945
    %2196 = vmatprep.subr.mxu0 %v1959
    %2197 = vmatpush1.msra.mxu0 %v1958
    %2198 = vmatprep.subr.mxu0 0.0
    %2199 = vmatpush1.msra.mxu0 0.0
    %2200 = vmatprep.subr.mxu0 0.0
    %2201 = vmatpush1.msra.mxu0 0.0
    %2202 = vmatprep.subr.mxu0 0.0
    %2203 = vmatpush1.msra.mxu0 0.0
    %2204 = vmatprep.subr.mxu0 0.0
    %2205 = vmatpush1.msra.mxu0 0.0
    %2206 = vmatprep.subr.mxu0 0.0
    %2207 = vmatpush1.msra.mxu0 0.0
    %2208 = vmatprep.subr.mxu0 0.0
    %2209 = vmatpush1.msra.mxu0 0.0
    %2210 = vmatprep.subr.mxu0 0.0
    %2211 = vmatpush1.msra.mxu0 0.0
    %2212 = vmatprep.subr.mxu0 0.0
    %2213 = vmatpush1.msra.mxu0 0.0
    %2214 = vmatprep.subr.mxu0 0.0
    %2215 = vmatpush1.msra.mxu0 0.0
    %2216 = vmatprep.subr.mxu0 0.0
    %2217 = vmatpush1.msra.mxu0 0.0
    %2218 = vmatprep.subr.mxu0 0.0
    %2219 = vmatpush1.msra.mxu0 0.0
    %2220 = vmatprep.subr.mxu0 0.0
    %2221 = vmatpush1.msra.mxu0 0.0
    %2222 = vmatprep.subr.mxu0 0.0
    %2223 = vmatpush1.msra.mxu0 0.0
    %2224 = vmatprep.subr.mxu0 0.0
    %2225 = vmatpush1.msra.mxu0 0.0
    %2226 = vmatprep.subr.mxu0 0.0
    %2227 = vmatpush1.msra.mxu0 0.0
    %2228 = vmatprep.subr.mxu0 0.0
    %2229 = vmatpush1.msra.mxu0 0.0
    %2230 = vmatprep.subr.mxu0 0.0
    %2231 = vmatpush1.msra.mxu0 0.0
    %2232 = vmatprep.subr.mxu0 0.0
    %2233 = vmatpush1.msra.mxu0 0.0
    %2234 = vmatprep.subr.mxu0 0.0
    %2235 = vmatpush1.msra.mxu0 0.0
    %2236 = vmatprep.subr.mxu0 0.0
    %2237 = vmatpush1.msra.mxu0 0.0
    %2238 = vmatprep.subr.mxu0 0.0
    %2239 = vmatpush1.msra.mxu0 0.0
    %2240 = vmatprep.subr.mxu0 0.0
    %2241 = vmatpush1.msra.mxu0 0.0
    %2242 = vmatprep.subr.mxu0 0.0
    %2243 = vmatpush1.msra.mxu0 0.0
    %2244 = vmatprep.subr.mxu0 0.0
    %2245 = vmatpush1.msra.mxu0 0.0
    %2246 = vmatprep.mubr.f32.mxu0 0.0
    %2247 = vmatmul.mubr.f32.gmra.mrb[0].mxu0 %v1967
    %v2248 = vpop.f32.mrb[0].mxu0
    %v2249 = vadd.f32 0.0, %v2248
    %v2250 = vpop.f32.mrb[0].mxu0
    %v2251 = vadd.f32 0.0, %v2250
    %2252 = vdwg.mxu0
    %2253 = vmatprep.subr.mxu0 %v1870
    %2254 = vmatpush1.msra.mxu0 %v1869
    %2255 = vmatprep.subr.mxu0 %v1883
    %2256 = vmatpush1.msra.mxu0 %v1882
    %2257 = vmatprep.subr.mxu0 %v1896
    %2258 = vmatpush1.msra.mxu0 %v1895
    %2259 = vmatprep.subr.mxu0 %v1909
    %2260 = vmatpush1.msra.mxu0 %v1908
    %2261 = vmatprep.subr.mxu0 %v1922
    %2262 = vmatpush1.msra.mxu0 %v1921
    %2263 = vmatprep.subr.mxu0 %v1935
    %2264 = vmatpush1.msra.mxu0 %v1934
    %2265 = vmatprep.subr.mxu0 %v1948
    %2266 = vmatpush1.msra.mxu0 %v1947
    %2267 = vmatprep.subr.mxu0 %v1961
    %2268 = vmatpush1.msra.mxu0 %v1960
    %2269 = vmatprep.subr.mxu0 0.0
    %2270 = vmatpush1.msra.mxu0 0.0
    %2271 = vmatprep.subr.mxu0 0.0
    %2272 = vmatpush1.msra.mxu0 0.0
    %2273 = vmatprep.subr.mxu0 0.0
    %2274 = vmatpush1.msra.mxu0 0.0
    %2275 = vmatprep.subr.mxu0 0.0
    %2276 = vmatpush1.msra.mxu0 0.0
    %2277 = vmatprep.subr.mxu0 0.0
    %2278 = vmatpush1.msra.mxu0 0.0
    %2279 = vmatprep.subr.mxu0 0.0
    %2280 = vmatpush1.msra.mxu0 0.0
    %2281 = vmatprep.subr.mxu0 0.0
    %2282 = vmatpush1.msra.mxu0 0.0
    %2283 = vmatprep.subr.mxu0 0.0
    %2284 = vmatpush1.msra.mxu0 0.0
    %2285 = vmatprep.subr.mxu0 0.0
    %2286 = vmatpush1.msra.mxu0 0.0
    %2287 = vmatprep.subr.mxu0 0.0
    %2288 = vmatpush1.msra.mxu0 0.0
    %2289 = vmatprep.subr.mxu0 0.0
    %2290 = vmatpush1.msra.mxu0 0.0
    %2291 = vmatprep.subr.mxu0 0.0
    %2292 = vmatpush1.msra.mxu0 0.0
    %2293 = vmatprep.subr.mxu0 0.0
    %2294 = vmatpush1.msra.mxu0 0.0
    %2295 = vmatprep.subr.mxu0 0.0
    %2296 = vmatpush1.msra.mxu0 0.0
    %2297 = vmatprep.subr.mxu0 0.0
    %2298 = vmatpush1.msra.mxu0 0.0
    %2299 = vmatprep.subr.mxu0 0.0
    %2300 = vmatpush1.msra.mxu0 0.0
    %2301 = vmatprep.subr.mxu0 0.0
    %2302 = vmatpush1.msra.mxu0 0.0
    %2303 = vmatprep.subr.mxu0 0.0
    %2304 = vmatpush1.msra.mxu0 0.0
    %2305 = vmatprep.subr.mxu0 0.0
    %2306 = vmatpush1.msra.mxu0 0.0
    %2307 = vmatprep.subr.mxu0 0.0
    %2308 = vmatpush1.msra.mxu0 0.0
    %2309 = vmatprep.subr.mxu0 0.0
    %2310 = vmatpush1.msra.mxu0 0.0
    %2311 = vmatprep.subr.mxu0 0.0
    %2312 = vmatpush1.msra.mxu0 0.0
    %2313 = vmatprep.subr.mxu0 0.0
    %2314 = vmatpush1.msra.mxu0 0.0
    %2315 = vmatprep.subr.mxu0 0.0
    %2316 = vmatpush1.msra.mxu0 0.0
    %2317 = vmatprep.mubr.f32.mxu0 0.0
    %2318 = vmatmul.mubr.f32.gmra.mrb[0].mxu0 %v1967
    %v2319 = vpop.f32.mrb[0].mxu0
    %v2320 = vadd.f32 0.0, %v2319
    %v2321 = vpop.f32.mrb[0].mxu0
    %v2322 = vadd.f32 0.0, %v2321
    %2323 = vdwg.mxu0
    %2324 = vmatprep.subr.mxu0 %v1872
    %2325 = vmatpush1.msra.mxu0 %v1871
    %2326 = vmatprep.subr.mxu0 %v1885
    %2327 = vmatpush1.msra.mxu0 %v1884
    %2328 = vmatprep.subr.mxu0 %v1898
    %2329 = vmatpush1.msra.mxu0 %v1897
    %2330 = vmatprep.subr.mxu0 %v1911
    %2331 = vmatpush1.msra.mxu0 %v1910
    %2332 = vmatprep.subr.mxu0 %v1924
    %2333 = vmatpush1.msra.mxu0 %v1923
    %2334 = vmatprep.subr.mxu0 %v1937
    %2335 = vmatpush1.msra.mxu0 %v1936
    %2336 = vmatprep.subr.mxu0 %v1950
    %2337 = vmatpush1.msra.mxu0 %v1949
    %2338 = vmatprep.subr.mxu0 %v1963
    %2339 = vmatpush1.msra.mxu0 %v1962
    %2340 = vmatprep.subr.mxu0 0.0
    %2341 = vmatpush1.msra.mxu0 0.0
    %2342 = vmatprep.subr.mxu0 0.0
    %2343 = vmatpush1.msra.mxu0 0.0
    %2344 = vmatprep.subr.mxu0 0.0
    %2345 = vmatpush1.msra.mxu0 0.0
    %2346 = vmatprep.subr.mxu0 0.0
    %2347 = vmatpush1.msra.mxu0 0.0
    %2348 = vmatprep.subr.mxu0 0.0
    %2349 = vmatpush1.msra.mxu0 0.0
    %2350 = vmatprep.subr.mxu0 0.0
    %2351 = vmatpush1.msra.mxu0 0.0
    %2352 = vmatprep.subr.mxu0 0.0
    %2353 = vmatpush1.msra.mxu0 0.0
    %2354 = vmatprep.subr.mxu0 0.0
    %2355 = vmatpush1.msra.mxu0 0.0
    %2356 = vmatprep.subr.mxu0 0.0
    %2357 = vmatpush1.msra.mxu0 0.0
    %2358 = vmatprep.subr.mxu0 0.0
    %2359 = vmatpush1.msra.mxu0 0.0
    %2360 = vmatprep.subr.mxu0 0.0
    %2361 = vmatpush1.msra.mxu0 0.0
    %2362 = vmatprep.subr.mxu0 0.0
    %2363 = vmatpush1.msra.mxu0 0.0
    %2364 = vmatprep.subr.mxu0 0.0
    %2365 = vmatpush1.msra.mxu0 0.0
    %2366 = vmatprep.subr.mxu0 0.0
    %2367 = vmatpush1.msra.mxu0 0.0
    %2368 = vmatprep.subr.mxu0 0.0
    %2369 = vmatpush1.msra.mxu0 0.0
    %2370 = vmatprep.subr.mxu0 0.0
    %2371 = vmatpush1.msra.mxu0 0.0
    %2372 = vmatprep.subr.mxu0 0.0
    %2373 = vmatpush1.msra.mxu0 0.0
    %2374 = vmatprep.subr.mxu0 0.0
    %2375 = vmatpush1.msra.mxu0 0.0
    %2376 = vmatprep.subr.mxu0 0.0
    %2377 = vmatpush1.msra.mxu0 0.0
    %2378 = vmatprep.subr.mxu0 0.0
    %2379 = vmatpush1.msra.mxu0 0.0
    %2380 = vmatprep.subr.mxu0 0.0
    %2381 = vmatpush1.msra.mxu0 0.0
    %2382 = vmatprep.subr.mxu0 0.0
    %2383 = vmatpush1.msra.mxu0 0.0
    %2384 = vmatprep.subr.mxu0 0.0
    %2385 = vmatpush1.msra.mxu0 0.0
    %2386 = vmatprep.subr.mxu0 0.0
    %2387 = vmatpush1.msra.mxu0 0.0
    %2388 = vmatprep.mubr.f32.mxu0 0.0
    %2389 = vmatmul.mubr.f32.gmra.mrb[0].mxu0 %v1967
    %v2390 = vpop.f32.mrb[0].mxu0
    %v2391 = vadd.f32 0.0, %v2390
    %v2392 = vpop.f32.mrb[0].mxu0
    %v2393 = vadd.f32 0.0, %v2392
    %2394 = vdwg.mxu0
    %2395 = vmatprep.subr.mxu0 0.0
    %2396 = vmatpush1.msra.mxu0 %v1873
    %2397 = vmatprep.subr.mxu0 0.0
    %2398 = vmatpush1.msra.mxu0 %v1886
    %2399 = vmatprep.subr.mxu0 0.0
    %2400 = vmatpush1.msra.mxu0 %v1899
    %2401 = vmatprep.subr.mxu0 0.0
    %2402 = vmatpush1.msra.mxu0 %v1912
    %2403 = vmatprep.subr.mxu0 0.0
    %2404 = vmatpush1.msra.mxu0 %v1925
    %2405 = vmatprep.subr.mxu0 0.0
    %2406 = vmatpush1.msra.mxu0 %v1938
    %2407 = vmatprep.subr.mxu0 0.0
    %2408 = vmatpush1.msra.mxu0 %v1951
    %2409 = vmatprep.subr.mxu0 0.0
    %2410 = vmatpush1.msra.mxu0 %v1964
    %2411 = vmatprep.subr.mxu0 0.0
    %2412 = vmatpush1.msra.mxu0 0.0
    %2413 = vmatprep.subr.mxu0 0.0
    %2414 = vmatpush1.msra.mxu0 0.0
    %2415 = vmatprep.subr.mxu0 0.0
    %2416 = vmatpush1.msra.mxu0 0.0
    %2417 = vmatprep.subr.mxu0 0.0
    %2418 = vmatpush1.msra.mxu0 0.0
    %2419 = vmatprep.subr.mxu0 0.0
    %2420 = vmatpush1.msra.mxu0 0.0
    %2421 = vmatprep.subr.mxu0 0.0
    %2422 = vmatpush1.msra.mxu0 0.0
    %2423 = vmatprep.subr.mxu0 0.0
    %2424 = vmatpush1.msra.mxu0 0.0
    %2425 = vmatprep.subr.mxu0 0.0
    %2426 = vmatpush1.msra.mxu0 0.0
    %2427 = vmatprep.subr.mxu0 0.0
    %2428 = vmatpush1.msra.mxu0 0.0
    %2429 = vmatprep.subr.mxu0 0.0
    %2430 = vmatpush1.msra.mxu0 0.0
    %2431 = vmatprep.subr.mxu0 0.0
    %2432 = vmatpush1.msra.mxu0 0.0
    %2433 = vmatprep.subr.mxu0 0.0
    %2434 = vmatpush1.msra.mxu0 0.0
    %2435 = vmatprep.subr.mxu0 0.0
    %2436 = vmatpush1.msra.mxu0 0.0
    %2437 = vmatprep.subr.mxu0 0.0
    %2438 = vmatpush1.msra.mxu0 0.0
    %2439 = vmatprep.subr.mxu0 0.0
    %2440 = vmatpush1.msra.mxu0 0.0
    %2441 = vmatprep.subr.mxu0 0.0
    %2442 = vmatpush1.msra.mxu0 0.0
    %2443 = vmatprep.subr.mxu0 0.0
    %2444 = vmatpush1.msra.mxu0 0.0
    %2445 = vmatprep.subr.mxu0 0.0
    %2446 = vmatpush1.msra.mxu0 0.0
    %2447 = vmatprep.subr.mxu0 0.0
    %2448 = vmatpush1.msra.mxu0 0.0
    %2449 = vmatprep.subr.mxu0 0.0
    %2450 = vmatpush1.msra.mxu0 0.0
    %2451 = vmatprep.subr.mxu0 0.0
    %2452 = vmatpush1.msra.mxu0 0.0
    %2453 = vmatprep.subr.mxu0 0.0
    %2454 = vmatpush1.msra.mxu0 0.0
    %2455 = vmatprep.subr.mxu0 0.0
    %2456 = vmatpush1.msra.mxu0 0.0
    %2457 = vmatprep.subr.mxu0 0.0
    %2458 = vmatpush1.msra.mxu0 0.0
    %2459 = vmatprep.mubr.f32.mxu0 0.0
    %2460 = vmatmul.mubr.f32.gmra.mrb[0].mxu0 %v1967
    %v2461 = vpop.f32.mrb[0].mxu0
    %v2462 = vadd.f32 0.0, %v2461
    %v2463 = vpop.f32.mrb[0].mxu0
    %2464 = vdwg.mxu0
    %v2478 = vcombine.low %v2036, %v2038
    %v2479 = vcombine.low %v2107, %v2109
    %v2481 = vunpack.c.l.s4 1983009808
    %v2482 = vunpack.c.0.s8 %v2481
    %v2483 = vlaneseq
    %v2484 = vshrl.u32 %v2483, 7
    %v2485 = vsub.s32 %v2482, %v2484
    %v2486 = vrot.slane %v2478, %v2485
    %v2488 = vunpack.c.l.s4 1983009808
    %v2489 = vunpack.c.0.s8 %v2488
    %v2490 = vlaneseq
    %v2491 = vshrl.u32 %v2490, 7
    %v2492 = vsub.s32 %v2489, %v2491
    %v2493 = vrot.slane %v2479, %v2492
    %v2494 = vcombine.low %v2486, %v2493
    %v2495 = vcombine.low %v2178, %v2180
    %v2496 = vcombine.low %v2249, %v2251
    %v2498 = vunpack.c.l.s4 1983009808
    %v2499 = vunpack.c.0.s8 %v2498
    %v2500 = vlaneseq
    %v2501 = vshrl.u32 %v2500, 7
    %v2502 = vsub.s32 %v2499, %v2501
    %v2503 = vrot.slane %v2495, %v2502
    %v2505 = vunpack.c.l.s4 1983009808
    %v2506 = vunpack.c.0.s8 %v2505
    %v2507 = vlaneseq
    %v2508 = vshrl.u32 %v2507, 7
    %v2509 = vsub.s32 %v2506, %v2508
    %v2510 = vrot.slane %v2496, %v2509
    %v2511 = vcombine.low %v2503, %v2510
    %v2512 = vcombine.low %v2320, %v2322
    %v2513 = vcombine.low %v2391, %v2393
    %v2515 = vunpack.c.l.s4 1983009808
    %v2516 = vunpack.c.0.s8 %v2515
    %v2517 = vlaneseq
    %v2518 = vshrl.u32 %v2517, 7
    %v2519 = vsub.s32 %v2516, %v2518
    %v2520 = vrot.slane %v2512, %v2519
    %v2522 = vunpack.c.l.s4 1983009808
    %v2523 = vunpack.c.0.s8 %v2522
    %v2524 = vlaneseq
    %v2525 = vshrl.u32 %v2524, 7
    %v2526 = vsub.s32 %v2523, %v2525
    %v2527 = vrot.slane %v2513, %v2526
    %v2528 = vcombine.low %v2520, %v2527
    %v2530 = vunpack.c.l.s4 1983009808
    %v2531 = vunpack.c.0.s8 %v2530
    %v2532 = vlaneseq
    %v2533 = vshrl.u32 %v2532, 7
    %v2534 = vsub.s32 %v2531, %v2533
    %v2535 = vrot.slane %v2462, %v2534
    %2540 = vst [vmem:[#allocation14] sm:$0xff] %v2494
    %2541 = vst [vmem:[#allocation14 + $0x8] sm:$0xff] %v2511
    %2542 = vst [vmem:[#allocation14 + $0x10] sm:$0xff] %v2528
    %vm2543 = vcmask 517120
    %2544 = vst.msk [vmem:[#allocation14 + $0x18] sm:$0x3] %vm2543, %v2535
    // Predicated region
    $region54: #{tpu_custom_call.1} parent=1 // pred_check
      _
    $region55: #{tpu_custom_call.1} parent=1 // pred_check_branch
      %2546 = sbr.rel (0) target = $region57
    $region56: #{tpu_custom_call.1} parent=1 // pred_region
      %s2548 = ssub.s32 416, 416
      %2549 = vsyncadd [#allocation5], %s2548
      %s2551 = sshll.u32 [#allocation14], 4
      %s2552 = int_to_ptr.vmem [resolvable:$true] %s2551
      %2554 = dma.vmem_to_hbm [thread:$0]  %s2552, 416, %s7, [#allocation5]
    $region57: #{tpu_custom_call.1} parent=1 // pred_fallthru
      _
    // Predicated region
    $region58: #{tpu_custom_call.1} parent=1 // pred_check
      _
    $region59: #{tpu_custom_call.1} parent=1 // pred_check_branch
      %2556 = sbr.rel (0) target = $region61
    $region60: #{tpu_custom_call.1} parent=1 // pred_region
      %2557 = dma.done [#allocation5], 416
    $region61: #{tpu_custom_call.1} parent=1 // pred_fallthru
      _
    %2558 = vsyncpa [#allocation4], 1
    %2559 = vsyncpa [#allocation8], 1
    %2560 = vsyncpa [#allocation5], 1
    %2561 = vsyncpa [#allocation6], 1
    %2562 = vsyncpa [#allocation12], 1

// kernel: tpu_custom_call.1
$region0: #{tpu_custom_call.1}
  #allocation0 [shape = 'u32[]', space=smem, size = 0x4, offset = 0x4, fixed_abs, tag = 'smem constant byte address 0x4 - core index']
  #allocation1 [shape = 'u32[144,128]{1,0:T(1,128)}', space=vmem, size = 0x12000, scoped, tag = 'internal scratch']
  #allocation2 [shape = 'f32[1]{0:T(128)S(6)}', space=smem, size = 0x200, scoped, tag = 'scoped memory for tpu_custom_call.1']
  %s0 = inlined_call_operand.hbm [shape: f32[2,3200], index: 0, kind: input, shape index: {}]
  %s1 = inlined_call_operand.hbm [shape: f32[3200,128], index: 1, kind: input, shape index: {}]
  %s2 = inlined_call_operand.hbm [shape: f32[64,1600], index: 2, kind: input, shape index: {}]
  %s3 = inlined_call_operand.hbm [shape: f32[32], index: 3, kind: input, shape index: {}]
  %s4 = inlined_call_operand.hbm [shape: f32[16], index: 4, kind: input, shape index: {}]
  %s5 = inlined_call_operand.hbm [shape: f32[16], index: 5, kind: input, shape index: {}]
  %s6 = inlined_call_operand.<no memory space> [shape: f32[1], index: 6, kind: input, shape index: {}]
  %s7 = inlined_call_operand.hbm [shape: f32[2,1600], index: 7, kind: output, shape index: {}]
  %s8 = sld [smem:[#allocation0]]
  $region62: #{tpu_custom_call.1} parent=0
    _
  %s10 = ssub.s32 1, %s8
  %s11 = scalar_select 0, %s10, %s8
  %12 = sst [smem:[#allocation2]] %s6
  $region1: #{tpu_custom_call.1} parent=0
    #allocation3 [shape = 'u8[25600]{0}', space=vmem, size = 0x6400, scoped, tag = 'input window, operand 0, single buffered']
    #allocation4 [shape = 's32[1]{0}', space=sflag, size = 0x4, scoped, tag = 'scoped memory for tpu_custom_call.1']
    #allocation5 [shape = 's32[1]{0}', space=sflag, size = 0x4, scoped, tag = 'scoped memory for tpu_custom_call.1']
    #allocation6 [shape = 's32[1]{0}', space=sflag, size = 0x4, scoped, tag = 'scoped memory for tpu_custom_call.1']
    #allocation7 [shape = 'u8[1638400]{0}', space=vmem, size = 0x190000, scoped, tag = 'input window, operand 1, single buffered']
    #allocation8 [shape = 's32[1]{0}', space=sflag, size = 0x4, scoped, tag = 'scoped memory for tpu_custom_call.1']
    #allocation9 [shape = 'u8[425984]{0}', space=vmem, size = 0x68000, scoped, tag = 'input window, operand 2, single buffered']
    #allocation10 [shape = 'u8[512]{0}', space=smem, size = 0x200, scoped, tag = 'input window, operand 3, single buffered']
    #allocation11 [shape = 'u8[512]{0}', space=smem, size = 0x200, scoped, tag = 'input window, operand 4, single buffered']
    #allocation12 [shape = 's32[1]{0}', space=sflag, size = 0x4, scoped, tag = 'scoped memory for tpu_custom_call.1']
    #allocation13 [shape = 'u8[512]{0}', space=smem, size = 0x200, scoped, tag = 'input window, operand 5, single buffered']
    #allocation14 [shape = 'u8[13312]{0}', space=vmem, size = 0x3400, scoped, tag = 'output window, operand 0, single buffered']
    %13 = vsyncpa [#allocation4], 0
    %14 = vsyncpa [#allocation8], 0
    %15 = vsyncpa [#allocation6], 0
    %16 = vsyncpa [#allocation12], 0
    %17 = vsyncpa [#allocation5], 0
    // Predicated region
    $region2: #{tpu_custom_call.1} parent=1 // pred_check
      _
    $region3: #{tpu_custom_call.1} parent=1 // pred_check_branch
      %19 = sbr.rel (0) target = $region5
    $region4: #{tpu_custom_call.1} parent=1 // pred_region
      %s21 = ssub.s32 800, 800
      %22 = vsyncadd [#allocation4], %s21
      %s24 = sshll.u32 [#allocation3], 4
      %s25 = int_to_ptr.vmem [resolvable:$true] %s24
      %27 = dma.hbm_to_vmem [thread:$0]  %s0, 800, %s25, [#allocation4]
    $region5: #{tpu_custom_call.1} parent=1 // pred_fallthru
      _
    // Predicated region
    $region6: #{tpu_custom_call.1} parent=1 // pred_check
      _
    $region7: #{tpu_custom_call.1} parent=1 // pred_check_branch
      %29 = sbr.rel (0) target = $region9
    $region8: #{tpu_custom_call.1} parent=1 // pred_region
      %s31 = ssub.s32 51200, 51200
      %32 = vsyncadd [#allocation8], %s31
      %s33 = sshll.u32 [#allocation7], 4
      %s34 = int_to_ptr.vmem [resolvable:$true] %s33
      %39 = dma.hbm_to_vmem [thread:$0]  %s1, 51200, %s34, [#allocation8], 128, 128, 8
    $region9: #{tpu_custom_call.1} parent=1 // pred_fallthru
      _
    // Predicated region
    $region10: #{tpu_custom_call.1} parent=1 // pred_check
      _
    $region11: #{tpu_custom_call.1} parent=1 // pred_check_branch
      %41 = sbr.rel (0) target = $region13
    $region12: #{tpu_custom_call.1} parent=1 // pred_region
      %s43 = ssub.s32 13312, 13312
      %44 = vsyncadd [#allocation8], %s43
      %s45 = sshll.u32 [#allocation9], 4
      %s46 = int_to_ptr.vmem [resolvable:$true] %s45
      %51 = dma.hbm_to_vmem [thread:$0]  %s2, 13312, %s46, [#allocation8], 1664, 1664, 104
    $region13: #{tpu_custom_call.1} parent=1 // pred_fallthru
      _
    // Predicated region
    $region14: #{tpu_custom_call.1} parent=1 // pred_check
      _
    $region15: #{tpu_custom_call.1} parent=1 // pred_check_branch
      %53 = sbr.rel (0) target = $region17
    $region16: #{tpu_custom_call.1} parent=1 // pred_region
      %s55 = ssub.s32 16, 16
      %56 = vsyncadd [#allocation6], %s55
      %59 = dma.hbm_to_smem %s3, 16, [#allocation10], [#allocation6]
    $region17: #{tpu_custom_call.1} parent=1 // pred_fallthru
      _
    // Predicated region
    $region18: #{tpu_custom_call.1} parent=1 // pred_check
      _
    $region19: #{tpu_custom_call.1} parent=1 // pred_check_branch
      %61 = sbr.rel (0) target = $region21
    $region20: #{tpu_custom_call.1} parent=1 // pred_region
      %s63 = ssub.s32 16, 16
      %64 = vsyncadd [#allocation12], %s63
      %67 = dma.hbm_to_smem %s4, 16, [#allocation11], [#allocation12]
    $region21: #{tpu_custom_call.1} parent=1 // pred_fallthru
      _
    // Predicated region
    $region22: #{tpu_custom_call.1} parent=1 // pred_check
      _
    $region23: #{tpu_custom_call.1} parent=1 // pred_check_branch
      %69 = sbr.rel (0) target = $region25
    $region24: #{tpu_custom_call.1} parent=1 // pred_region
      %s71 = ssub.s32 16, 16
      %72 = vsyncadd [#allocation12], %s71
      %75 = dma.hbm_to_smem %s5, 16, [#allocation13], [#allocation12]
    $region25: #{tpu_custom_call.1} parent=1 // pred_fallthru
      _
    // Predicated region
    $region26: #{tpu_custom_call.1} parent=1 // pred_check
      _
    $region27: #{tpu_custom_call.1} parent=1 // pred_check_branch
      %77 = sbr.rel (0) target = $region29
    $region28: #{tpu_custom_call.1} parent=1 // pred_region
      _
    $region29: #{tpu_custom_call.1} parent=1 // pred_fallthru
      _
    // Predicated region
    $region30: #{tpu_custom_call.1} parent=1 // pred_check
      _
    $region31: #{tpu_custom_call.1} parent=1 // pred_check_branch
      %79 = sbr.rel (0) target = $region33
    $region32: #{tpu_custom_call.1} parent=1 // pred_region
      %80 = dma.done [#allocation4], 800
    $region33: #{tpu_custom_call.1} parent=1 // pred_fallthru
      _
    // Predicated region
    $region34: #{tpu_custom_call.1} parent=1 // pred_check
      _
    $region35: #{tpu_custom_call.1} parent=1 // pred_check_branch
      %82 = sbr.rel (0) target = $region37
    $region36: #{tpu_custom_call.1} parent=1 // pred_region
      %83 = dma.done [#allocation8], 51200
    $region37: #{tpu_custom_call.1} parent=1 // pred_fallthru
      _
    // Predicated region
    $region38: #{tpu_custom_call.1} parent=1 // pred_check
      _
    $region39: #{tpu_custom_call.1} parent=1 // pred_check_branch
      %85 = sbr.rel (0) target = $region41
    $region40: #{tpu_custom_call.1} parent=1 // pred_region
      %86 = dma.done [#allocation8], 13312
    $region41: #{tpu_custom_call.1} parent=1 // pred_fallthru
      _
    // Predicated region
    $region42: #{tpu_custom_call.1} parent=1 // pred_check
      _
    $region43: #{tpu_custom_call.1} parent=1 // pred_check_branch
      %88 = sbr.rel (0) target = $region45
    $region44: #{tpu_custom_call.1} parent=1 // pred_region
      %89 = dma.done [#allocation6], 16
    $region45: #{tpu_custom_call.1} parent=1 // pred_fallthru
      _
    // Predicated region
    $region46: #{tpu_custom_call.1} parent=1 // pred_check
      _
    $region47: #{tpu_custom_call.1} parent=1 // pred_check_branch
      %91 = sbr.rel (0) target = $region49
    $region48: #{tpu_custom_call.1} parent=1 // pred_region
      %92 = dma.done [#allocation12], 16
    $region49: #{tpu_custom_call.1} parent=1 // pred_fallthru
      _
    // Predicated region
    $region50: #{tpu_custom_call.1} parent=1 // pred_check
      _
    $region51: #{tpu_custom_call.1} parent=1 // pred_check_branch
      %94 = sbr.rel (0) target = $region53
    $region52: #{tpu_custom_call.1} parent=1 // pred_region
      %95 = dma.done [#allocation12], 16
    $region53: #{tpu_custom_call.1} parent=1 // pred_fallthru
      _
    %96 = sfence
    %v97 = vld [vmem:[#allocation3] sm:$0xff]
    %v98 = vld [vmem:[#allocation3 + $0x8] sm:$0xff]
    %v99 = vld [vmem:[#allocation3 + $0x10] sm:$0xff]
    %v100 = vld [vmem:[#allocation3 + $0x18] sm:$0xff]
    %v101 = vld [vmem:[#allocation3 + $0x20] sm:$0xff]
    %v102 = vld [vmem:[#allocation3 + $0x28] sm:$0xff]
    %v103 = vld [vmem:[#allocation3 + $0x30] sm:$0x3]
    %v104 = vld [vmem:[#allocation7] sm:$0xff]
    %v105 = vld [vmem:[#allocation7 + $0x8] sm:$0xff]
    %v106 = vld [vmem:[#allocation7 + $0x10] sm:$0xff]
    %v107 = vld [vmem:[#allocation7 + $0x18] sm:$0xff]
    %v108 = vld [vmem:[#allocation7 + $0x20] sm:$0xff]
    %v109 = vld [vmem:[#allocation7 + $0x28] sm:$0xff]
    %v110 = vld [vmem:[#allocation7 + $0x30] sm:$0xff]
    %v111 = vld [vmem:[#allocation7 + $0x38] sm:$0xff]
    %v112 = vld [vmem:[#allocation7 + $0x40] sm:$0xff]
    %v113 = vld [vmem:[#allocation7 + $0x48] sm:$0xff]
    %v114 = vld [vmem:[#allocation7 + $0x50] sm:$0xff]
    %v115 = vld [vmem:[#allocation7 + $0x58] sm:$0xff]
    %v116 = vld [vmem:[#allocation7 + $0x60] sm:$0xff]
    %v117 = vld [vmem:[#allocation7 + $0x68] sm:$0xff]
    %v118 = vld [vmem:[#allocation7 + $0x70] sm:$0xff]
    %v119 = vld [vmem:[#allocation7 + $0x78] sm:$0xff]
    %v120 = vld [vmem:[#allocation7 + $0x80] sm:$0xff]
    %v121 = vld [vmem:[#allocation7 + $0x88] sm:$0xff]
    %v122 = vld [vmem:[#allocation7 + $0x90] sm:$0xff]
    %v123 = vld [vmem:[#allocation7 + $0x98] sm:$0xff]
    %v124 = vld [vmem:[#allocation7 + $0xa0] sm:$0xff]
    %v125 = vld [vmem:[#allocation7 + $0xa8] sm:$0xff]
    %v126 = vld [vmem:[#allocation7 + $0xb0] sm:$0xff]
    %v127 = vld [vmem:[#allocation7 + $0xb8] sm:$0xff]
    %v128 = vld [vmem:[#allocation7 + $0xc0] sm:$0xff]
    %v129 = vld [vmem:[#allocation7 + $0xc8] sm:$0xff]
    %v130 = vld [vmem:[#allocation7 + $0xd0] sm:$0xff]
    %v131 = vld [vmem:[#allocation7 + $0xd8] sm:$0xff]
    %v132 = vld [vmem:[#allocation7 + $0xe0] sm:$0xff]
    %v133 = vld [vmem:[#allocation7 + $0xe8] sm:$0xff]
    %v134 = vld [vmem:[#allocation7 + $0xf0] sm:$0xff]
    %v135 = vld [vmem:[#allocation7 + $0xf8] sm:$0xff]
    %v136 = vld [vmem:[#allocation7 + $0x100] sm:$0xff]
    %v137 = vld [vmem:[#allocation7 + $0x108] sm:$0xff]
    %v138 = vld [vmem:[#allocation7 + $0x110] sm:$0xff]
    %v139 = vld [vmem:[#allocation7 + $0x118] sm:$0xff]
    %v140 = vld [vmem:[#allocation7 + $0x120] sm:$0xff]
    %v141 = vld [vmem:[#allocation7 + $0x128] sm:$0xff]
    %v142 = vld [vmem:[#allocation7 + $0x130] sm:$0xff]
    %v143 = vld [vmem:[#allocation7 + $0x138] sm:$0xff]
    %v144 = vld [vmem:[#allocation7 + $0x140] sm:$0xff]
    %v145 = vld [vmem:[#allocation7 + $0x148] sm:$0xff]
    %v146 = vld [vmem:[#allocation7 + $0x150] sm:$0xff]
    %v147 = vld [vmem:[#allocation7 + $0x158] sm:$0xff]
    %v148 = vld [vmem:[#allocation7 + $0x160] sm:$0xff]
    %v149 = vld [vmem:[#allocation7 + $0x168] sm:$0xff]
    %v150 = vld [vmem:[#allocation7 + $0x170] sm:$0xff]
    %v151 = vld [vmem:[#allocation7 + $0x178] sm:$0xff]
    %v152 = vld [vmem:[#allocation7 + $0x180] sm:$0xff]
    %v153 = vld [vmem:[#allocation7 + $0x188] sm:$0xff]
    %v154 = vld [vmem:[#allocation7 + $0x190] sm:$0xff]
    %v155 = vld [vmem:[#allocation7 + $0x198] sm:$0xff]
    %v156 = vld [vmem:[#allocation7 + $0x1a0] sm:$0xff]
    %v157 = vld [vmem:[#allocation7 + $0x1a8] sm:$0xff]
    %v158 = vld [vmem:[#allocation7 + $0x1b0] sm:$0xff]
    %v159 = vld [vmem:[#allocation7 + $0x1b8] sm:$0xff]
    %v160 = vld [vmem:[#allocation7 + $0x1c0] sm:$0xff]
    %v161 = vld [vmem:[#allocation7 + $0x1c8] sm:$0xff]
    %v162 = vld [vmem:[#allocation7 + $0x1d0] sm:$0xff]
    %v163 = vld [vmem:[#allocation7 + $0x1d8] sm:$0xff]
    %v164 = vld [vmem:[#allocation7 + $0x1e0] sm:$0xff]
    %v165 = vld [vmem:[#allocation7 + $0x1e8] sm:$0xff]
    %v166 = vld [vmem:[#allocation7 + $0x1f0] sm:$0xff]
    %v167 = vld [vmem:[#allocation7 + $0x1f8] sm:$0xff]
    %v168 = vld [vmem:[#allocation7 + $0x200] sm:$0xff]
    %v169 = vld [vmem:[#allocation7 + $0x208] sm:$0xff]
    %v170 = vld [vmem:[#allocation7 + $0x210] sm:$0xff]
    %v171 = vld [vmem:[#allocation7 + $0x218] sm:$0xff]
    %v172 = vld [vmem:[#allocation7 + $0x220] sm:$0xff]
    %v173 = vld [vmem:[#allocation7 + $0x228] sm:$0xff]
    %v174 = vld [vmem:[#allocation7 + $0x230] sm:$0xff]
    %v175 = vld [vmem:[#allocation7 + $0x238] sm:$0xff]
    %v176 = vld [vmem:[#allocation7 + $0x240] sm:$0xff]
    %v177 = vld [vmem:[#allocation7 + $0x248] sm:$0xff]
    %v178 = vld [vmem:[#allocation7 + $0x250] sm:$0xff]
    %v179 = vld [vmem:[#allocation7 + $0x258] sm:$0xff]
    %v180 = vld [vmem:[#allocation7 + $0x260] sm:$0xff]
    %v181 = vld [vmem:[#allocation7 + $0x268] sm:$0xff]
    %v182 = vld [vmem:[#allocation7 + $0x270] sm:$0xff]
    %v183 = vld [vmem:[#allocation7 + $0x278] sm:$0xff]
    %v184 = vld [vmem:[#allocation7 + $0x280] sm:$0xff]
    %v185 = vld [vmem:[#allocation7 + $0x288] sm:$0xff]
    %v186 = vld [vmem:[#allocation7 + $0x290] sm:$0xff]
    %v187 = vld [vmem:[#allocation7 + $0x298] sm:$0xff]
    %v188 = vld [vmem:[#allocation7 + $0x2a0] sm:$0xff]
    %v189 = vld [vmem:[#allocation7 + $0x2a8] sm:$0xff]
    %v190 = vld [vmem:[#allocation7 + $0x2b0] sm:$0xff]
    %v191 = vld [vmem:[#allocation7 + $0x2b8] sm:$0xff]
    %v192 = vld [vmem:[#allocation7 + $0x2c0] sm:$0xff]
    %v193 = vld [vmem:[#allocation7 + $0x2c8] sm:$0xff]
    %v194 = vld [vmem:[#allocation7 + $0x2d0] sm:$0xff]
    %v195 = vld [vmem:[#allocation7 + $0x2d8] sm:$0xff]
    %v196 = vld [vmem:[#allocation7 + $0x2e0] sm:$0xff]
    %v197 = vld [vmem:[#allocation7 + $0x2e8] sm:$0xff]
    %v198 = vld [vmem:[#allocation7 + $0x2f0] sm:$0xff]
    %v199 = vld [vmem:[#allocation7 + $0x2f8] sm:$0xff]
    %v200 = vld [vmem:[#allocation7 + $0x300] sm:$0xff]
    %v201 = vld [vmem:[#allocation7 + $0x308] sm:$0xff]
    %v202 = vld [vmem:[#allocation7 + $0x310] sm:$0xff]
    %v203 = vld [vmem:[#allocation7 + $0x318] sm:$0xff]
    %v204 = vld [vmem:[#allocation7 + $0x320] sm:$0xff]
    %v205 = vld [vmem:[#allocation7 + $0x328] sm:$0xff]
    %v206 = vld [vmem:[#allocation7 + $0x330] sm:$0xff]
    %v207 = vld [vmem:[#allocation7 + $0x338] sm:$0xff]
    %v208 = vld [vmem:[#allocation7 + $0x340] sm:$0xff]
    %v209 = vld [vmem:[#allocation7 + $0x348] sm:$0xff]
    %v210 = vld [vmem:[#allocation7 + $0x350] sm:$0xff]
    %v211 = vld [vmem:[#allocation7 + $0x358] sm:$0xff]
    %v212 = vld [vmem:[#allocation7 + $0x360] sm:$0xff]
    %v213 = vld [vmem:[#allocation7 + $0x368] sm:$0xff]
    %v214 = vld [vmem:[#allocation7 + $0x370] sm:$0xff]
    %v215 = vld [vmem:[#allocation7 + $0x378] sm:$0xff]
    %v216 = vld [vmem:[#allocation7 + $0x380] sm:$0xff]
    %v217 = vld [vmem:[#allocation7 + $0x388] sm:$0xff]
    %v218 = vld [vmem:[#allocation7 + $0x390] sm:$0xff]
    %v219 = vld [vmem:[#allocation7 + $0x398] sm:$0xff]
    %v220 = vld [vmem:[#allocation7 + $0x3a0] sm:$0xff]
    %v221 = vld [vmem:[#allocation7 + $0x3a8] sm:$0xff]
    %v222 = vld [vmem:[#allocation7 + $0x3b0] sm:$0xff]
    %v223 = vld [vmem:[#allocation7 + $0x3b8] sm:$0xff]
    %v224 = vld [vmem:[#allocation7 + $0x3c0] sm:$0xff]
    %v225 = vld [vmem:[#allocation7 + $0x3c8] sm:$0xff]
    %v226 = vld [vmem:[#allocation7 + $0x3d0] sm:$0xff]
    %v227 = vld [vmem:[#allocation7 + $0x3d8] sm:$0xff]
    %v228 = vld [vmem:[#allocation7 + $0x3e0] sm:$0xff]
    %v229 = vld [vmem:[#allocation7 + $0x3e8] sm:$0xff]
    %v230 = vld [vmem:[#allocation7 + $0x3f0] sm:$0xff]
    %v231 = vld [vmem:[#allocation7 + $0x3f8] sm:$0xff]
    %v232 = vld [vmem:[#allocation7 + $0x400] sm:$0xff]
    %v233 = vld [vmem:[#allocation7 + $0x408] sm:$0xff]
    %v234 = vld [vmem:[#allocation7 + $0x410] sm:$0xff]
    %v235 = vld [vmem:[#allocation7 + $0x418] sm:$0xff]
    %v236 = vld [vmem:[#allocation7 + $0x420] sm:$0xff]
    %v237 = vld [vmem:[#allocation7 + $0x428] sm:$0xff]
    %v238 = vld [vmem:[#allocation7 + $0x430] sm:$0xff]
    %v239 = vld [vmem:[#allocation7 + $0x438] sm:$0xff]
    %v240 = vld [vmem:[#allocation7 + $0x440] sm:$0xff]
    %v241 = vld [vmem:[#allocation7 + $0x448] sm:$0xff]
    %v242 = vld [vmem:[#allocation7 + $0x450] sm:$0xff]
    %v243 = vld [vmem:[#allocation7 + $0x458] sm:$0xff]
    %v244 = vld [vmem:[#allocation7 + $0x460] sm:$0xff]
    %v245 = vld [vmem:[#allocation7 + $0x468] sm:$0xff]
    %v246 = vld [vmem:[#allocation7 + $0x470] sm:$0xff]
    %v247 = vld [vmem:[#allocation7 + $0x478] sm:$0xff]
    %v248 = vld [vmem:[#allocation7 + $0x480] sm:$0xff]
    %v249 = vld [vmem:[#allocation7 + $0x488] sm:$0xff]
    %v250 = vld [vmem:[#allocation7 + $0x490] sm:$0xff]
    %v251 = vld [vmem:[#allocation7 + $0x498] sm:$0xff]
    %v252 = vld [vmem:[#allocation7 + $0x4a0] sm:$0xff]
    %v253 = vld [vmem:[#allocation7 + $0x4a8] sm:$0xff]
    %v254 = vld [vmem:[#allocation7 + $0x4b0] sm:$0xff]
    %v255 = vld [vmem:[#allocation7 + $0x4b8] sm:$0xff]
    %v256 = vld [vmem:[#allocation7 + $0x4c0] sm:$0xff]
    %v257 = vld [vmem:[#allocation7 + $0x4c8] sm:$0xff]
    %v258 = vld [vmem:[#allocation7 + $0x4d0] sm:$0xff]
    %v259 = vld [vmem:[#allocation7 + $0x4d8] sm:$0xff]
    %v260 = vld [vmem:[#allocation7 + $0x4e0] sm:$0xff]
    %v261 = vld [vmem:[#allocation7 + $0x4e8] sm:$0xff]
    %v262 = vld [vmem:[#allocation7 + $0x4f0] sm:$0xff]
    %v263 = vld [vmem:[#allocation7 + $0x4f8] sm:$0xff]
    %v264 = vld [vmem:[#allocation7 + $0x500] sm:$0xff]
    %v265 = vld [vmem:[#allocation7 + $0x508] sm:$0xff]
    %v266 = vld [vmem:[#allocation7 + $0x510] sm:$0xff]
    %v267 = vld [vmem:[#allocation7 + $0x518] sm:$0xff]
    %v268 = vld [vmem:[#allocation7 + $0x520] sm:$0xff]
    %v269 = vld [vmem:[#allocation7 + $0x528] sm:$0xff]
    %v270 = vld [vmem:[#allocation7 + $0x530] sm:$0xff]
    %v271 = vld [vmem:[#allocation7 + $0x538] sm:$0xff]
    %v272 = vld [vmem:[#allocation7 + $0x540] sm:$0xff]
    %v273 = vld [vmem:[#allocation7 + $0x548] sm:$0xff]
    %v274 = vld [vmem:[#allocation7 + $0x550] sm:$0xff]
    %v275 = vld [vmem:[#allocation7 + $0x558] sm:$0xff]
    %v276 = vld [vmem:[#allocation7 + $0x560] sm:$0xff]
    %v277 = vld [vmem:[#allocation7 + $0x568] sm:$0xff]
    %v278 = vld [vmem:[#allocation7 + $0x570] sm:$0xff]
    %v279 = vld [vmem:[#allocation7 + $0x578] sm:$0xff]
    %v280 = vld [vmem:[#allocation7 + $0x580] sm:$0xff]
    %v281 = vld [vmem:[#allocation7 + $0x588] sm:$0xff]
    %v282 = vld [vmem:[#allocation7 + $0x590] sm:$0xff]
    %v283 = vld [vmem:[#allocation7 + $0x598] sm:$0xff]
    %v284 = vld [vmem:[#allocation7 + $0x5a0] sm:$0xff]
    %v285 = vld [vmem:[#allocation7 + $0x5a8] sm:$0xff]
    %v286 = vld [vmem:[#allocation7 + $0x5b0] sm:$0xff]
    %v287 = vld [vmem:[#allocation7 + $0x5b8] sm:$0xff]
    %v288 = vld [vmem:[#allocation7 + $0x5c0] sm:$0xff]
    %v289 = vld [vmem:[#allocation7 + $0x5c8] sm:$0xff]
    %v290 = vld [vmem:[#allocation7 + $0x5d0] sm:$0xff]
    %v291 = vld [vmem:[#allocation7 + $0x5d8] sm:$0xff]
    %v292 = vld [vmem:[#allocation7 + $0x5e0] sm:$0xff]
    %v293 = vld [vmem:[#allocation7 + $0x5e8] sm:$0xff]
    %v294 = vld [vmem:[#allocation7 + $0x5f0] sm:$0xff]
    %v295 = vld [vmem:[#allocation7 + $0x5f8] sm:$0xff]
    %v296 = vld [vmem:[#allocation7 + $0x600] sm:$0xff]
    %v297 = vld [vmem:[#allocation7 + $0x608] sm:$0xff]
    %v298 = vld [vmem:[#allocation7 + $0x610] sm:$0xff]
    %v299 = vld [vmem:[#allocation7 + $0x618] sm:$0xff]
    %v300 = vld [vmem:[#allocation7 + $0x620] sm:$0xff]
    %v301 = vld [vmem:[#allocation7 + $0x628] sm:$0xff]
    %v302 = vld [vmem:[#allocation7 + $0x630] sm:$0xff]
    %v303 = vld [vmem:[#allocation7 + $0x638] sm:$0xff]
    %v304 = vld [vmem:[#allocation7 + $0x640] sm:$0xff]
    %v305 = vld [vmem:[#allocation7 + $0x648] sm:$0xff]
    %v306 = vld [vmem:[#allocation7 + $0x650] sm:$0xff]
    %v307 = vld [vmem:[#allocation7 + $0x658] sm:$0xff]
    %v308 = vld [vmem:[#allocation7 + $0x660] sm:$0xff]
    %v309 = vld [vmem:[#allocation7 + $0x668] sm:$0xff]
    %v310 = vld [vmem:[#allocation7 + $0x670] sm:$0xff]
    %v311 = vld [vmem:[#allocation7 + $0x678] sm:$0xff]
    %v312 = vld [vmem:[#allocation7 + $0x680] sm:$0xff]
    %v313 = vld [vmem:[#allocation7 + $0x688] sm:$0xff]
    %v314 = vld [vmem:[#allocation7 + $0x690] sm:$0xff]
    %v315 = vld [vmem:[#allocation7 + $0x698] sm:$0xff]
    %v316 = vld [vmem:[#allocation7 + $0x6a0] sm:$0xff]
    %v317 = vld [vmem:[#allocation7 + $0x6a8] sm:$0xff]
    %v318 = vld [vmem:[#allocation7 + $0x6b0] sm:$0xff]
    %v319 = vld [vmem:[#allocation7 + $0x6b8] sm:$0xff]
    %v320 = vld [vmem:[#allocation7 + $0x6c0] sm:$0xff]
    %v321 = vld [vmem:[#allocation7 + $0x6c8] sm:$0xff]
    %v322 = vld [vmem:[#allocation7 + $0x6d0] sm:$0xff]
    %v323 = vld [vmem:[#allocation7 + $0x6d8] sm:$0xff]
    %v324 = vld [vmem:[#allocation7 + $0x6e0] sm:$0xff]
    %v325 = vld [vmem:[#allocation7 + $0x6e8] sm:$0xff]
    %v326 = vld [vmem:[#allocation7 + $0x6f0] sm:$0xff]
    %v327 = vld [vmem:[#allocation7 + $0x6f8] sm:$0xff]
    %v328 = vld [vmem:[#allocation7 + $0x700] sm:$0xff]
    %v329 = vld [vmem:[#allocation7 + $0x708] sm:$0xff]
    %v330 = vld [vmem:[#allocation7 + $0x710] sm:$0xff]
    %v331 = vld [vmem:[#allocation7 + $0x718] sm:$0xff]
    %v332 = vld [vmem:[#allocation7 + $0x720] sm:$0xff]
    %v333 = vld [vmem:[#allocation7 + $0x728] sm:$0xff]
    %v334 = vld [vmem:[#allocation7 + $0x730] sm:$0xff]
    %v335 = vld [vmem:[#allocation7 + $0x738] sm:$0xff]
    %v336 = vld [vmem:[#allocation7 + $0x740] sm:$0xff]
    %v337 = vld [vmem:[#allocation7 + $0x748] sm:$0xff]
    %v338 = vld [vmem:[#allocation7 + $0x750] sm:$0xff]
    %v339 = vld [vmem:[#allocation7 + $0x758] sm:$0xff]
    %v340 = vld [vmem:[#allocation7 + $0x760] sm:$0xff]
    %v341 = vld [vmem:[#allocation7 + $0x768] sm:$0xff]
    %v342 = vld [vmem:[#allocation7 + $0x770] sm:$0xff]
    %v343 = vld [vmem:[#allocation7 + $0x778] sm:$0xff]
    %v344 = vld [vmem:[#allocation7 + $0x780] sm:$0xff]
    %v345 = vld [vmem:[#allocation7 + $0x788] sm:$0xff]
    %v346 = vld [vmem:[#allocation7 + $0x790] sm:$0xff]
    %v347 = vld [vmem:[#allocation7 + $0x798] sm:$0xff]
    %v348 = vld [vmem:[#allocation7 + $0x7a0] sm:$0xff]
    %v349 = vld [vmem:[#allocation7 + $0x7a8] sm:$0xff]
    %v350 = vld [vmem:[#allocation7 + $0x7b0] sm:$0xff]
    %v351 = vld [vmem:[#allocation7 + $0x7b8] sm:$0xff]
    %v352 = vld [vmem:[#allocation7 + $0x7c0] sm:$0xff]
    %v353 = vld [vmem:[#allocation7 + $0x7c8] sm:$0xff]
    %v354 = vld [vmem:[#allocation7 + $0x7d0] sm:$0xff]
    %v355 = vld [vmem:[#allocation7 + $0x7d8] sm:$0xff]
    %v356 = vld [vmem:[#allocation7 + $0x7e0] sm:$0xff]
    %v357 = vld [vmem:[#allocation7 + $0x7e8] sm:$0xff]
    %v358 = vld [vmem:[#allocation7 + $0x7f0] sm:$0xff]
    %v359 = vld [vmem:[#allocation7 + $0x7f8] sm:$0xff]
    %v360 = vld [vmem:[#allocation7 + $0x800] sm:$0xff]
    %v361 = vld [vmem:[#allocation7 + $0x808] sm:$0xff]
    %v362 = vld [vmem:[#allocation7 + $0x810] sm:$0xff]
    %v363 = vld [vmem:[#allocation7 + $0x818] sm:$0xff]
    %v364 = vld [vmem:[#allocation7 + $0x820] sm:$0xff]
    %v365 = vld [vmem:[#allocation7 + $0x828] sm:$0xff]
    %v366 = vld [vmem:[#allocation7 + $0x830] sm:$0xff]
    %v367 = vld [vmem:[#allocation7 + $0x838] sm:$0xff]
    %v368 = vld [vmem:[#allocation7 + $0x840] sm:$0xff]
    %v369 = vld [vmem:[#allocation7 + $0x848] sm:$0xff]
    %v370 = vld [vmem:[#allocation7 + $0x850] sm:$0xff]
    %v371 = vld [vmem:[#allocation7 + $0x858] sm:$0xff]
    %v372 = vld [vmem:[#allocation7 + $0x860] sm:$0xff]
    %v373 = vld [vmem:[#allocation7 + $0x868] sm:$0xff]
    %v374 = vld [vmem:[#allocation7 + $0x870] sm:$0xff]
    %v375 = vld [vmem:[#allocation7 + $0x878] sm:$0xff]
    %v376 = vld [vmem:[#allocation7 + $0x880] sm:$0xff]
    %v377 = vld [vmem:[#allocation7 + $0x888] sm:$0xff]
    %v378 = vld [vmem:[#allocation7 + $0x890] sm:$0xff]
    %v379 = vld [vmem:[#allocation7 + $0x898] sm:$0xff]
    %v380 = vld [vmem:[#allocation7 + $0x8a0] sm:$0xff]
    %v381 = vld [vmem:[#allocation7 + $0x8a8] sm:$0xff]
    %v382 = vld [vmem:[#allocation7 + $0x8b0] sm:$0xff]
    %v383 = vld [vmem:[#allocation7 + $0x8b8] sm:$0xff]
    %v384 = vld [vmem:[#allocation7 + $0x8c0] sm:$0xff]
    %v385 = vld [vmem:[#allocation7 + $0x8c8] sm:$0xff]
    %v386 = vld [vmem:[#allocation7 + $0x8d0] sm:$0xff]
    %v387 = vld [vmem:[#allocation7 + $0x8d8] sm:$0xff]
    %v388 = vld [vmem:[#allocation7 + $0x8e0] sm:$0xff]
    %v389 = vld [vmem:[#allocation7 + $0x8e8] sm:$0xff]
    %v390 = vld [vmem:[#allocation7 + $0x8f0] sm:$0xff]
    %v391 = vld [vmem:[#allocation7 + $0x8f8] sm:$0xff]
    %v392 = vld [vmem:[#allocation7 + $0x900] sm:$0xff]
    %v393 = vld [vmem:[#allocation7 + $0x908] sm:$0xff]
    %v394 = vld [vmem:[#allocation7 + $0x910] sm:$0xff]
    %v395 = vld [vmem:[#allocation7 + $0x918] sm:$0xff]
    %v396 = vld [vmem:[#allocation7 + $0x920] sm:$0xff]
    %v397 = vld [vmem:[#allocation7 + $0x928] sm:$0xff]
    %v398 = vld [vmem:[#allocation7 + $0x930] sm:$0xff]
    %v399 = vld [vmem:[#allocation7 + $0x938] sm:$0xff]
    %v400 = vld [vmem:[#allocation7 + $0x940] sm:$0xff]
    %v401 = vld [vmem:[#allocation7 + $0x948] sm:$0xff]
    %v402 = vld [vmem:[#allocation7 + $0x950] sm:$0xff]
    %v403 = vld [vmem:[#allocation7 + $0x958] sm:$0xff]
    %v404 = vld [vmem:[#allocation7 + $0x960] sm:$0xff]
    %v405 = vld [vmem:[#allocation7 + $0x968] sm:$0xff]
    %v406 = vld [vmem:[#allocation7 + $0x970] sm:$0xff]
    %v407 = vld [vmem:[#allocation7 + $0x978] sm:$0xff]
    %v408 = vld [vmem:[#allocation7 + $0x980] sm:$0xff]
    %v409 = vld [vmem:[#allocation7 + $0x988] sm:$0xff]
    %v410 = vld [vmem:[#allocation7 + $0x990] sm:$0xff]
    %v411 = vld [vmem:[#allocation7 + $0x998] sm:$0xff]
    %v412 = vld [vmem:[#allocation7 + $0x9a0] sm:$0xff]
    %v413 = vld [vmem:[#allocation7 + $0x9a8] sm:$0xff]
    %v414 = vld [vmem:[#allocation7 + $0x9b0] sm:$0xff]
    %v415 = vld [vmem:[#allocation7 + $0x9b8] sm:$0xff]
    %v416 = vld [vmem:[#allocation7 + $0x9c0] sm:$0xff]
    %v417 = vld [vmem:[#allocation7 + $0x9c8] sm:$0xff]
    %v418 = vld [vmem:[#allocation7 + $0x9d0] sm:$0xff]
    %v419 = vld [vmem:[#allocation7 + $0x9d8] sm:$0xff]
    %v420 = vld [vmem:[#allocation7 + $0x9e0] sm:$0xff]
    %v421 = vld [vmem:[#allocation7 + $0x9e8] sm:$0xff]
    %v422 = vld [vmem:[#allocation7 + $0x9f0] sm:$0xff]
    %v423 = vld [vmem:[#allocation7 + $0x9f8] sm:$0xff]
    %v424 = vld [vmem:[#allocation7 + $0xa00] sm:$0xff]
    %v425 = vld [vmem:[#allocation7 + $0xa08] sm:$0xff]
    %v426 = vld [vmem:[#allocation7 + $0xa10] sm:$0xff]
    %v427 = vld [vmem:[#allocation7 + $0xa18] sm:$0xff]
    %v428 = vld [vmem:[#allocation7 + $0xa20] sm:$0xff]
    %v429 = vld [vmem:[#allocation7 + $0xa28] sm:$0xff]
    %v430 = vld [vmem:[#allocation7 + $0xa30] sm:$0xff]
    %v431 = vld [vmem:[#allocation7 + $0xa38] sm:$0xff]
    %v432 = vld [vmem:[#allocation7 + $0xa40] sm:$0xff]
    %v433 = vld [vmem:[#allocation7 + $0xa48] sm:$0xff]
    %v434 = vld [vmem:[#allocation7 + $0xa50] sm:$0xff]
    %v435 = vld [vmem:[#allocation7 + $0xa58] sm:$0xff]
    %v436 = vld [vmem:[#allocation7 + $0xa60] sm:$0xff]
    %v437 = vld [vmem:[#allocation7 + $0xa68] sm:$0xff]
    %v438 = vld [vmem:[#allocation7 + $0xa70] sm:$0xff]
    %v439 = vld [vmem:[#allocation7 + $0xa78] sm:$0xff]
    %v440 = vld [vmem:[#allocation7 + $0xa80] sm:$0xff]
    %v441 = vld [vmem:[#allocation7 + $0xa88] sm:$0xff]
    %v442 = vld [vmem:[#allocation7 + $0xa90] sm:$0xff]
    %v443 = vld [vmem:[#allocation7 + $0xa98] sm:$0xff]
    %v444 = vld [vmem:[#allocation7 + $0xaa0] sm:$0xff]
    %v445 = vld [vmem:[#allocation7 + $0xaa8] sm:$0xff]
    %v446 = vld [vmem:[#allocation7 + $0xab0] sm:$0xff]
    %v447 = vld [vmem:[#allocation7 + $0xab8] sm:$0xff]
    %v448 = vld [vmem:[#allocation7 + $0xac0] sm:$0xff]
    %v449 = vld [vmem:[#allocation7 + $0xac8] sm:$0xff]
    %v450 = vld [vmem:[#allocation7 + $0xad0] sm:$0xff]
    %v451 = vld [vmem:[#allocation7 + $0xad8] sm:$0xff]
    %v452 = vld [vmem:[#allocation7 + $0xae0] sm:$0xff]
    %v453 = vld [vmem:[#allocation7 + $0xae8] sm:$0xff]
    %v454 = vld [vmem:[#allocation7 + $0xaf0] sm:$0xff]
    %v455 = vld [vmem:[#allocation7 + $0xaf8] sm:$0xff]
    %v456 = vld [vmem:[#allocation7 + $0xb00] sm:$0xff]
    %v457 = vld [vmem:[#allocation7 + $0xb08] sm:$0xff]
    %v458 = vld [vmem:[#allocation7 + $0xb10] sm:$0xff]
    %v459 = vld [vmem:[#allocation7 + $0xb18] sm:$0xff]
    %v460 = vld [vmem:[#allocation7 + $0xb20] sm:$0xff]
    %v461 = vld [vmem:[#allocation7 + $0xb28] sm:$0xff]
    %v462 = vld [vmem:[#allocation7 + $0xb30] sm:$0xff]
    %v463 = vld [vmem:[#allocation7 + $0xb38] sm:$0xff]
    %v464 = vld [vmem:[#allocation7 + $0xb40] sm:$0xff]
    %v465 = vld [vmem:[#allocation7 + $0xb48] sm:$0xff]
    %v466 = vld [vmem:[#allocation7 + $0xb50] sm:$0xff]
    %v467 = vld [vmem:[#allocation7 + $0xb58] sm:$0xff]
    %v468 = vld [vmem:[#allocation7 + $0xb60] sm:$0xff]
    %v469 = vld [vmem:[#allocation7 + $0xb68] sm:$0xff]
    %v470 = vld [vmem:[#allocation7 + $0xb70] sm:$0xff]
    %v471 = vld [vmem:[#allocation7 + $0xb78] sm:$0xff]
    %v472 = vld [vmem:[#allocation7 + $0xb80] sm:$0xff]
    %v473 = vld [vmem:[#allocation7 + $0xb88] sm:$0xff]
    %v474 = vld [vmem:[#allocation7 + $0xb90] sm:$0xff]
    %v475 = vld [vmem:[#allocation7 + $0xb98] sm:$0xff]
    %v476 = vld [vmem:[#allocation7 + $0xba0] sm:$0xff]
    %v477 = vld [vmem:[#allocation7 + $0xba8] sm:$0xff]
    %v478 = vld [vmem:[#allocation7 + $0xbb0] sm:$0xff]
    %v479 = vld [vmem:[#allocation7 + $0xbb8] sm:$0xff]
    %v480 = vld [vmem:[#allocation7 + $0xbc0] sm:$0xff]
    %v481 = vld [vmem:[#allocation7 + $0xbc8] sm:$0xff]
    %v482 = vld [vmem:[#allocation7 + $0xbd0] sm:$0xff]
    %v483 = vld [vmem:[#allocation7 + $0xbd8] sm:$0xff]
    %v484 = vld [vmem:[#allocation7 + $0xbe0] sm:$0xff]
    %v485 = vld [vmem:[#allocation7 + $0xbe8] sm:$0xff]
    %v486 = vld [vmem:[#allocation7 + $0xbf0] sm:$0xff]
    %v487 = vld [vmem:[#allocation7 + $0xbf8] sm:$0xff]
    %v488 = vld [vmem:[#allocation7 + $0xc00] sm:$0xff]
    %v489 = vld [vmem:[#allocation7 + $0xc08] sm:$0xff]
    %v490 = vld [vmem:[#allocation7 + $0xc10] sm:$0xff]
    %v491 = vld [vmem:[#allocation7 + $0xc18] sm:$0xff]
    %v492 = vld [vmem:[#allocation7 + $0xc20] sm:$0xff]
    %v493 = vld [vmem:[#allocation7 + $0xc28] sm:$0xff]
    %v494 = vld [vmem:[#allocation7 + $0xc30] sm:$0xff]
    %v495 = vld [vmem:[#allocation7 + $0xc38] sm:$0xff]
    %v496 = vld [vmem:[#allocation7 + $0xc40] sm:$0xff]
    %v497 = vld [vmem:[#allocation7 + $0xc48] sm:$0xff]
    %v498 = vld [vmem:[#allocation7 + $0xc50] sm:$0xff]
    %v499 = vld [vmem:[#allocation7 + $0xc58] sm:$0xff]
    %v500 = vld [vmem:[#allocation7 + $0xc60] sm:$0xff]
    %v501 = vld [vmem:[#allocation7 + $0xc68] sm:$0xff]
    %v502 = vld [vmem:[#allocation7 + $0xc70] sm:$0xff]
    %v503 = vld [vmem:[#allocation7 + $0xc78] sm:$0xff]
    %v511 = vcombine.high %v97, %v97
    %v513 = vunpack.c.l.s4 1983009808
    %v514 = vunpack.c.0.s8 %v513
    %v515 = vlaneseq
    %v516 = vshrl.u32 %v515, 7
    %v517 = vsub.s32 %v514, %v516
    %v518 = vrot.slane %v97, %v517
    %v520 = vunpack.c.l.s4 1983009808
    %v521 = vunpack.c.0.s8 %v520
    %v522 = vlaneseq
    %v523 = vshrl.u32 %v522, 7
    %v524 = vsub.s32 %v521, %v523
    %v525 = vrot.slane %v511, %v524
    %v526 = vcombine.high %v518, %v518
    %v527 = vcombine.high %v525, %v525
    %v528 = vcombine.high %v98, %v98
    %v530 = vunpack.c.l.s4 1983009808
    %v531 = vunpack.c.0.s8 %v530
    %v532 = vlaneseq
    %v533 = vshrl.u32 %v532, 7
    %v534 = vsub.s32 %v531, %v533
    %v535 = vrot.slane %v98, %v534
    %v537 = vunpack.c.l.s4 1983009808
    %v538 = vunpack.c.0.s8 %v537
    %v539 = vlaneseq
    %v540 = vshrl.u32 %v539, 7
    %v541 = vsub.s32 %v538, %v540
    %v542 = vrot.slane %v528, %v541
    %v543 = vcombine.high %v535, %v535
    %v544 = vcombine.high %v542, %v542
    %v545 = vcombine.high %v99, %v99
    %v547 = vunpack.c.l.s4 1983009808
    %v548 = vunpack.c.0.s8 %v547
    %v549 = vlaneseq
    %v550 = vshrl.u32 %v549, 7
    %v551 = vsub.s32 %v548, %v550
    %v552 = vrot.slane %v99, %v551
    %v554 = vunpack.c.l.s4 1983009808
    %v555 = vunpack.c.0.s8 %v554
    %v556 = vlaneseq
    %v557 = vshrl.u32 %v556, 7
    %v558 = vsub.s32 %v555, %v557
    %v559 = vrot.slane %v545, %v558
    %v560 = vcombine.high %v552, %v552
    %v561 = vcombine.high %v559, %v559
    %v562 = vcombine.high %v100, %v100
    %v564 = vunpack.c.l.s4 1983009808
    %v565 = vunpack.c.0.s8 %v564
    %v566 = vlaneseq
    %v567 = vshrl.u32 %v566, 7
    %v568 = vsub.s32 %v565, %v567
    %v569 = vrot.slane %v100, %v568
    %v571 = vunpack.c.l.s4 1983009808
    %v572 = vunpack.c.0.s8 %v571
    %v573 = vlaneseq
    %v574 = vshrl.u32 %v573, 7
    %v575 = vsub.s32 %v572, %v574
    %v576 = vrot.slane %v562, %v575
    %v577 = vcombine.high %v569, %v569
    %v578 = vcombine.high %v576, %v576
    %v579 = vcombine.high %v101, %v101
    %v581 = vunpack.c.l.s4 1983009808
    %v582 = vunpack.c.0.s8 %v581
    %v583 = vlaneseq
    %v584 = vshrl.u32 %v583, 7
    %v585 = vsub.s32 %v582, %v584
    %v586 = vrot.slane %v101, %v585
    %v588 = vunpack.c.l.s4 1983009808
    %v589 = vunpack.c.0.s8 %v588
    %v590 = vlaneseq
    %v591 = vshrl.u32 %v590, 7
    %v592 = vsub.s32 %v589, %v591
    %v593 = vrot.slane %v579, %v592
    %v594 = vcombine.high %v586, %v586
    %v595 = vcombine.high %v593, %v593
    %v596 = vcombine.high %v102, %v102
    %v598 = vunpack.c.l.s4 1983009808
    %v599 = vunpack.c.0.s8 %v598
    %v600 = vlaneseq
    %v601 = vshrl.u32 %v600, 7
    %v602 = vsub.s32 %v599, %v601
    %v603 = vrot.slane %v102, %v602
    %v605 = vunpack.c.l.s4 1983009808
    %v606 = vunpack.c.0.s8 %v605
    %v607 = vlaneseq
    %v608 = vshrl.u32 %v607, 7
    %v609 = vsub.s32 %v606, %v608
    %v610 = vrot.slane %v596, %v609
    %v611 = vcombine.high %v603, %v603
    %v612 = vcombine.high %v610, %v610
    %v614 = vunpack.c.l.s4 1983009808
    %v615 = vunpack.c.0.s8 %v614
    %v616 = vlaneseq
    %v617 = vshrl.u32 %v616, 7
    %v618 = vsub.s32 %v615, %v617
    %v619 = vrot.slane %v103, %v618
    %645 = vmatprep.subr.mxu0 0.0
    %646 = vmatpush1.msra.mxu0 %v104
    %647 = vmatprep.subr.mxu0 0.0
    %648 = vmatpush1.msra.mxu0 %v105
    %649 = vmatprep.subr.mxu0 0.0
    %650 = vmatpush1.msra.mxu0 %v106
    %651 = vmatprep.subr.mxu0 0.0
    %652 = vmatpush1.msra.mxu0 %v107
    %653 = vmatprep.subr.mxu0 0.0
    %654 = vmatpush1.msra.mxu0 %v108
    %655 = vmatprep.subr.mxu0 0.0
    %656 = vmatpush1.msra.mxu0 %v109
    %657 = vmatprep.subr.mxu0 0.0
    %658 = vmatpush1.msra.mxu0 %v110
    %659 = vmatprep.subr.mxu0 0.0
    %660 = vmatpush1.msra.mxu0 %v111
    %661 = vmatprep.subr.mxu0 0.0
    %662 = vmatpush1.msra.mxu0 %v112
    %663 = vmatprep.subr.mxu0 0.0
    %664 = vmatpush1.msra.mxu0 %v113
    %665 = vmatprep.subr.mxu0 0.0
    %666 = vmatpush1.msra.mxu0 %v114
    %667 = vmatprep.subr.mxu0 0.0
    %668 = vmatpush1.msra.mxu0 %v115
    %669 = vmatprep.subr.mxu0 0.0
    %670 = vmatpush1.msra.mxu0 %v116
    %671 = vmatprep.subr.mxu0 0.0
    %672 = vmatpush1.msra.mxu0 %v117
    %673 = vmatprep.subr.mxu0 0.0
    %674 = vmatpush1.msra.mxu0 %v118
    %675 = vmatprep.subr.mxu0 0.0
    %676 = vmatpush1.msra.mxu0 %v119
    %677 = vmatprep.subr.mxu0 0.0
    %678 = vmatpush1.msra.mxu0 %v120
    %679 = vmatprep.subr.mxu0 0.0
    %680 = vmatpush1.msra.mxu0 %v121
    %681 = vmatprep.subr.mxu0 0.0
    %682 = vmatpush1.msra.mxu0 %v122
    %683 = vmatprep.subr.mxu0 0.0
    %684 = vmatpush1.msra.mxu0 %v123
    %685 = vmatprep.subr.mxu0 0.0
    %686 = vmatpush1.msra.mxu0 %v124
    %687 = vmatprep.subr.mxu0 0.0
    %688 = vmatpush1.msra.mxu0 %v125
    %689 = vmatprep.subr.mxu0 0.0
    %690 = vmatpush1.msra.mxu0 %v126
    %691 = vmatprep.subr.mxu0 0.0
    %692 = vmatpush1.msra.mxu0 %v127
    %693 = vmatprep.subr.mxu0 0.0
    %694 = vmatpush1.msra.mxu0 %v128
    %695 = vmatprep.subr.mxu0 0.0
    %696 = vmatpush1.msra.mxu0 %v129
    %697 = vmatprep.subr.mxu0 0.0
    %698 = vmatpush1.msra.mxu0 %v130
    %699 = vmatprep.subr.mxu0 0.0
    %700 = vmatpush1.msra.mxu0 %v131
    %701 = vmatprep.subr.mxu0 0.0
    %702 = vmatpush1.msra.mxu0 %v132
    %703 = vmatprep.subr.mxu0 0.0
    %704 = vmatpush1.msra.mxu0 %v133
    %705 = vmatprep.subr.mxu0 0.0
    %706 = vmatpush1.msra.mxu0 %v134
    %707 = vmatprep.subr.mxu0 0.0
    %708 = vmatpush1.msra.mxu0 %v135
    %709 = vmatprep.mubr.f32.mxu0 %v526
    %710 = vmatmul.mubr.f32.gmra.mrb[0].mxu0 %v518
    %v711 = vpop.f32.mrb[0].mxu0
    %v712 = vadd.f32 0.0, %v711
    %v713 = vpop.f32.mrb[0].mxu0
    %714 = vdwg.mxu0
    %715 = vmatprep.subr.mxu0 0.0
    %716 = vmatpush1.msra.mxu0 %v136
    %717 = vmatprep.subr.mxu0 0.0
    %718 = vmatpush1.msra.mxu0 %v137
    %719 = vmatprep.subr.mxu0 0.0
    %720 = vmatpush1.msra.mxu0 %v138
    %721 = vmatprep.subr.mxu0 0.0
    %722 = vmatpush1.msra.mxu0 %v139
    %723 = vmatprep.subr.mxu0 0.0
    %724 = vmatpush1.msra.mxu0 %v140
    %725 = vmatprep.subr.mxu0 0.0
    %726 = vmatpush1.msra.mxu0 %v141
    %727 = vmatprep.subr.mxu0 0.0
    %728 = vmatpush1.msra.mxu0 %v142
    %729 = vmatprep.subr.mxu0 0.0
    %730 = vmatpush1.msra.mxu0 %v143
    %731 = vmatprep.subr.mxu0 0.0
    %732 = vmatpush1.msra.mxu0 %v144
    %733 = vmatprep.subr.mxu0 0.0
    %734 = vmatpush1.msra.mxu0 %v145
    %735 = vmatprep.subr.mxu0 0.0
    %736 = vmatpush1.msra.mxu0 %v146
    %737 = vmatprep.subr.mxu0 0.0
    %738 = vmatpush1.msra.mxu0 %v147
    %739 = vmatprep.subr.mxu0 0.0
    %740 = vmatpush1.msra.mxu0 %v148
    %741 = vmatprep.subr.mxu0 0.0
    %742 = vmatpush1.msra.mxu0 %v149
    %743 = vmatprep.subr.mxu0 0.0
    %744 = vmatpush1.msra.mxu0 %v150
    %745 = vmatprep.subr.mxu0 0.0
    %746 = vmatpush1.msra.mxu0 %v151
    %747 = vmatprep.subr.mxu0 0.0
    %748 = vmatpush1.msra.mxu0 %v152
    %749 = vmatprep.subr.mxu0 0.0
    %750 = vmatpush1.msra.mxu0 %v153
    %751 = vmatprep.subr.mxu0 0.0
    %752 = vmatpush1.msra.mxu0 %v154
    %753 = vmatprep.subr.mxu0 0.0
    %754 = vmatpush1.msra.mxu0 %v155
    %755 = vmatprep.subr.mxu0 0.0
    %756 = vmatpush1.msra.mxu0 %v156
    %757 = vmatprep.subr.mxu0 0.0
    %758 = vmatpush1.msra.mxu0 %v157
    %759 = vmatprep.subr.mxu0 0.0
    %760 = vmatpush1.msra.mxu0 %v158
    %761 = vmatprep.subr.mxu0 0.0
    %762 = vmatpush1.msra.mxu0 %v159
    %763 = vmatprep.subr.mxu0 0.0
    %764 = vmatpush1.msra.mxu0 %v160
    %765 = vmatprep.subr.mxu0 0.0
    %766 = vmatpush1.msra.mxu0 %v161
    %767 = vmatprep.subr.mxu0 0.0
    %768 = vmatpush1.msra.mxu0 %v162
    %769 = vmatprep.subr.mxu0 0.0
    %770 = vmatpush1.msra.mxu0 %v163
    %771 = vmatprep.subr.mxu0 0.0
    %772 = vmatpush1.msra.mxu0 %v164
    %773 = vmatprep.subr.mxu0 0.0
    %774 = vmatpush1.msra.mxu0 %v165
    %775 = vmatprep.subr.mxu0 0.0
    %776 = vmatpush1.msra.mxu0 %v166
    %777 = vmatprep.subr.mxu0 0.0
    %778 = vmatpush1.msra.mxu0 %v167
    %779 = vmatprep.mubr.f32.mxu0 %v527
    %780 = vmatmul.mubr.f32.gmra.mrb[0].mxu0 %v525
    %v781 = vpop.f32.mrb[0].mxu0
    %v782 = vadd.f32 %v712, %v781
    %v783 = vpop.f32.mrb[0].mxu0
    %784 = vdwg.mxu0
    %785 = vmatprep.subr.mxu0 0.0
    %786 = vmatpush1.msra.mxu0 %v168
    %787 = vmatprep.subr.mxu0 0.0
    %788 = vmatpush1.msra.mxu0 %v169
    %789 = vmatprep.subr.mxu0 0.0
    %790 = vmatpush1.msra.mxu0 %v170
    %791 = vmatprep.subr.mxu0 0.0
    %792 = vmatpush1.msra.mxu0 %v171
    %793 = vmatprep.subr.mxu0 0.0
    %794 = vmatpush1.msra.mxu0 %v172
    %795 = vmatprep.subr.mxu0 0.0
    %796 = vmatpush1.msra.mxu0 %v173
    %797 = vmatprep.subr.mxu0 0.0
    %798 = vmatpush1.msra.mxu0 %v174
    %799 = vmatprep.subr.mxu0 0.0
    %800 = vmatpush1.msra.mxu0 %v175
    %801 = vmatprep.subr.mxu0 0.0
    %802 = vmatpush1.msra.mxu0 %v176
    %803 = vmatprep.subr.mxu0 0.0
    %804 = vmatpush1.msra.mxu0 %v177
    %805 = vmatprep.subr.mxu0 0.0
    %806 = vmatpush1.msra.mxu0 %v178
    %807 = vmatprep.subr.mxu0 0.0
    %808 = vmatpush1.msra.mxu0 %v179
    %809 = vmatprep.subr.mxu0 0.0
    %810 = vmatpush1.msra.mxu0 %v180
    %811 = vmatprep.subr.mxu0 0.0
    %812 = vmatpush1.msra.mxu0 %v181
    %813 = vmatprep.subr.mxu0 0.0
    %814 = vmatpush1.msra.mxu0 %v182
    %815 = vmatprep.subr.mxu0 0.0
    %816 = vmatpush1.msra.mxu0 %v183
    %817 = vmatprep.subr.mxu0 0.0
    %818 = vmatpush1.msra.mxu0 %v184
    %819 = vmatprep.subr.mxu0 0.0
    %820 = vmatpush1.msra.mxu0 %v185
    %821 = vmatprep.subr.mxu0 0.0
    %822 = vmatpush1.msra.mxu0 %v186
    %823 = vmatprep.subr.mxu0 0.0
    %824 = vmatpush1.msra.mxu0 %v187
    %825 = vmatprep.subr.mxu0 0.0
    %826 = vmatpush1.msra.mxu0 %v188
    %827 = vmatprep.subr.mxu0 0.0
    %828 = vmatpush1.msra.mxu0 %v189
    %829 = vmatprep.subr.mxu0 0.0
    %830 = vmatpush1.msra.mxu0 %v190
    %831 = vmatprep.subr.mxu0 0.0
    %832 = vmatpush1.msra.mxu0 %v191
    %833 = vmatprep.subr.mxu0 0.0
    %834 = vmatpush1.msra.mxu0 %v192
    %835 = vmatprep.subr.mxu0 0.0
    %836 = vmatpush1.msra.mxu0 %v193
    %837 = vmatprep.subr.mxu0 0.0
    %838 = vmatpush1.msra.mxu0 %v194
    %839 = vmatprep.subr.mxu0 0.0
    %840 = vmatpush1.msra.mxu0 %v195
    %841 = vmatprep.subr.mxu0 0.0
    %842 = vmatpush1.msra.mxu0 %v196
    %843 = vmatprep.subr.mxu0 0.0
    %844 = vmatpush1.msra.mxu0 %v197
    %845 = vmatprep.subr.mxu0 0.0
    %846 = vmatpush1.msra.mxu0 %v198
    %847 = vmatprep.subr.mxu0 0.0
    %848 = vmatpush1.msra.mxu0 %v199
    %849 = vmatprep.mubr.f32.mxu0 %v543
    %850 = vmatmul.mubr.f32.gmra.mrb[0].mxu0 %v535
    %v851 = vpop.f32.mrb[0].mxu0
    %v852 = vadd.f32 %v782, %v851
    %v853 = vpop.f32.mrb[0].mxu0
    %854 = vdwg.mxu0
    %855 = vmatprep.subr.mxu0 0.0
    %856 = vmatpush1.msra.mxu0 %v200
    %857 = vmatprep.subr.mxu0 0.0
    %858 = vmatpush1.msra.mxu0 %v201
    %859 = vmatprep.subr.mxu0 0.0
    %860 = vmatpush1.msra.mxu0 %v202
    %861 = vmatprep.subr.mxu0 0.0
    %862 = vmatpush1.msra.mxu0 %v203
    %863 = vmatprep.subr.mxu0 0.0
    %864 = vmatpush1.msra.mxu0 %v204
    %865 = vmatprep.subr.mxu0 0.0
    %866 = vmatpush1.msra.mxu0 %v205
    %867 = vmatprep.subr.mxu0 0.0
    %868 = vmatpush1.msra.mxu0 %v206
    %869 = vmatprep.subr.mxu0 0.0
    %870 = vmatpush1.msra.mxu0 %v207
    %871 = vmatprep.subr.mxu0 0.0
    %872 = vmatpush1.msra.mxu0 %v208
    %873 = vmatprep.subr.mxu0 0.0
    %874 = vmatpush1.msra.mxu0 %v209
    %875 = vmatprep.subr.mxu0 0.0
    %876 = vmatpush1.msra.mxu0 %v210
    %877 = vmatprep.subr.mxu0 0.0
    %878 = vmatpush1.msra.mxu0 %v211
    %879 = vmatprep.subr.mxu0 0.0
    %880 = vmatpush1.msra.mxu0 %v212
    %881 = vmatprep.subr.mxu0 0.0
    %882 = vmatpush1.msra.mxu0 %v213
    %883 = vmatprep.subr.mxu0 0.0
    %884 = vmatpush1.msra.mxu0 %v214
    %885 = vmatprep.subr.mxu0 0.0
    %886 = vmatpush1.msra.mxu0 %v215
    %887 = vmatprep.subr.mxu0 0.0
    %888 = vmatpush1.msra.mxu0 %v216
    %889 = vmatprep.subr.mxu0 0.0
    %890 = vmatpush1.msra.mxu0 %v217
    %891 = vmatprep.subr.mxu0 0.0
    %892 = vmatpush1.msra.mxu0 %v218
    %893 = vmatprep.subr.mxu0 0.0
    %894 = vmatpush1.msra.mxu0 %v219
    %895 = vmatprep.subr.mxu0 0.0
    %896 = vmatpush1.msra.mxu0 %v220
    %897 = vmatprep.subr.mxu0 0.0
    %898 = vmatpush1.msra.mxu0 %v221
    %899 = vmatprep.subr.mxu0 0.0
    %900 = vmatpush1.msra.mxu0 %v222
    %901 = vmatprep.subr.mxu0 0.0
    %902 = vmatpush1.msra.mxu0 %v223
    %903 = vmatprep.subr.mxu0 0.0
    %904 = vmatpush1.msra.mxu0 %v224
    %905 = vmatprep.subr.mxu0 0.0
    %906 = vmatpush1.msra.mxu0 %v225
    %907 = vmatprep.subr.mxu0 0.0
    %908 = vmatpush1.msra.mxu0 %v226
    %909 = vmatprep.subr.mxu0 0.0
    %910 = vmatpush1.msra.mxu0 %v227
    %911 = vmatprep.subr.mxu0 0.0
    %912 = vmatpush1.msra.mxu0 %v228
    %913 = vmatprep.subr.mxu0 0.0
    %914 = vmatpush1.msra.mxu0 %v229
    %915 = vmatprep.subr.mxu0 0.0
    %916 = vmatpush1.msra.mxu0 %v230
    %917 = vmatprep.subr.mxu0 0.0
    %918 = vmatpush1.msra.mxu0 %v231
    %919 = vmatprep.mubr.f32.mxu0 %v544
    %920 = vmatmul.mubr.f32.gmra.mrb[0].mxu0 %v542
    %v921 = vpop.f32.mrb[0].mxu0
    %v922 = vadd.f32 %v852, %v921
    %v923 = vpop.f32.mrb[0].mxu0
    %924 = vdwg.mxu0
    %925 = vmatprep.subr.mxu0 0.0
    %926 = vmatpush1.msra.mxu0 %v232
    %927 = vmatprep.subr.mxu0 0.0
    %928 = vmatpush1.msra.mxu0 %v233
    %929 = vmatprep.subr.mxu0 0.0
    %930 = vmatpush1.msra.mxu0 %v234
    %931 = vmatprep.subr.mxu0 0.0
    %932 = vmatpush1.msra.mxu0 %v235
    %933 = vmatprep.subr.mxu0 0.0
    %934 = vmatpush1.msra.mxu0 %v236
    %935 = vmatprep.subr.mxu0 0.0
    %936 = vmatpush1.msra.mxu0 %v237
    %937 = vmatprep.subr.mxu0 0.0
    %938 = vmatpush1.msra.mxu0 %v238
    %939 = vmatprep.subr.mxu0 0.0
    %940 = vmatpush1.msra.mxu0 %v239
    %941 = vmatprep.subr.mxu0 0.0
    %942 = vmatpush1.msra.mxu0 %v240
    %943 = vmatprep.subr.mxu0 0.0
    %944 = vmatpush1.msra.mxu0 %v241
    %945 = vmatprep.subr.mxu0 0.0
    %946 = vmatpush1.msra.mxu0 %v242
    %947 = vmatprep.subr.mxu0 0.0
    %948 = vmatpush1.msra.mxu0 %v243
    %949 = vmatprep.subr.mxu0 0.0
    %950 = vmatpush1.msra.mxu0 %v244
    %951 = vmatprep.subr.mxu0 0.0
    %952 = vmatpush1.msra.mxu0 %v245
    %953 = vmatprep.subr.mxu0 0.0
    %954 = vmatpush1.msra.mxu0 %v246
    %955 = vmatprep.subr.mxu0 0.0
    %956 = vmatpush1.msra.mxu0 %v247
    %957 = vmatprep.subr.mxu0 0.0
    %958 = vmatpush1.msra.mxu0 %v248
    %959 = vmatprep.subr.mxu0 0.0
    %960 = vmatpush1.msra.mxu0 %v249
    %961 = vmatprep.subr.mxu0 0.0
    %962 = vmatpush1.msra.mxu0 %v250
    %963 = vmatprep.subr.mxu0 0.0
    %964 = vmatpush1.msra.mxu0 %v251
    %965 = vmatprep.subr.mxu0 0.0
    %966 = vmatpush1.msra.mxu0 %v252
    %967 = vmatprep.subr.mxu0 0.0
    %968 = vmatpush1.msra.mxu0 %v253
    %969 = vmatprep.subr.mxu0 0.0
    %970 = vmatpush1.msra.mxu0 %v254
    %971 = vmatprep.subr.mxu0 0.0
    %972 = vmatpush1.msra.mxu0 %v255
    %973 = vmatprep.subr.mxu0 0.0
    %974 = vmatpush1.msra.mxu0 %v256
    %975 = vmatprep.subr.mxu0 0.0
    %976 = vmatpush1.msra.mxu0 %v257
    %977 = vmatprep.subr.mxu0 0.0
    %978 = vmatpush1.msra.mxu0 %v258
    %979 = vmatprep.subr.mxu0 0.0
    %980 = vmatpush1.msra.mxu0 %v259
    %981 = vmatprep.subr.mxu0 0.0
    %982 = vmatpush1.msra.mxu0 %v260
    %983 = vmatprep.subr.mxu0 0.0
    %984 = vmatpush1.msra.mxu0 %v261
    %985 = vmatprep.subr.mxu0 0.0
    %986 = vmatpush1.msra.mxu0 %v262
    %987 = vmatprep.subr.mxu0 0.0
    %988 = vmatpush1.msra.mxu0 %v263
    %989 = vmatprep.mubr.f32.mxu0 %v560
    %990 = vmatmul.mubr.f32.gmra.mrb[0].mxu0 %v552
    %v991 = vpop.f32.mrb[0].mxu0
    %v992 = vadd.f32 %v922, %v991
    %v993 = vpop.f32.mrb[0].mxu0
    %994 = vdwg.mxu0
    %995 = vmatprep.subr.mxu0 0.0
    %996 = vmatpush1.msra.mxu0 %v264
    %997 = vmatprep.subr.mxu0 0.0
    %998 = vmatpush1.msra.mxu0 %v265
    %999 = vmatprep.subr.mxu0 0.0
    %1000 = vmatpush1.msra.mxu0 %v266
    %1001 = vmatprep.subr.mxu0 0.0
    %1002 = vmatpush1.msra.mxu0 %v267
    %1003 = vmatprep.subr.mxu0 0.0
    %1004 = vmatpush1.msra.mxu0 %v268
    %1005 = vmatprep.subr.mxu0 0.0
    %1006 = vmatpush1.msra.mxu0 %v269
    %1007 = vmatprep.subr.mxu0 0.0
    %1008 = vmatpush1.msra.mxu0 %v270
    %1009 = vmatprep.subr.mxu0 0.0
    %1010 = vmatpush1.msra.mxu0 %v271
    %1011 = vmatprep.subr.mxu0 0.0
    %1012 = vmatpush1.msra.mxu0 %v272
    %1013 = vmatprep.subr.mxu0 0.0
    %1014 = vmatpush1.msra.mxu0 %v273
    %1015 = vmatprep.subr.mxu0 0.0
    %1016 = vmatpush1.msra.mxu0 %v274
    %1017 = vmatprep.subr.mxu0 0.0
    %1018 = vmatpush1.msra.mxu0 %v275
    %1019 = vmatprep.subr.mxu0 0.0
    %1020 = vmatpush1.msra.mxu0 %v276
    %1021 = vmatprep.subr.mxu0 0.0
    %1022 = vmatpush1.msra.mxu0 %v277
    %1023 = vmatprep.subr.mxu0 0.0
    %1024 = vmatpush1.msra.mxu0 %v278
    %1025 = vmatprep.subr.mxu0 0.0
    %1026 = vmatpush1.msra.mxu0 %v279
    %1027 = vmatprep.subr.mxu0 0.0
    %1028 = vmatpush1.msra.mxu0 %v280
    %1029 = vmatprep.subr.mxu0 0.0
    %1030 = vmatpush1.msra.mxu0 %v281
    %1031 = vmatprep.subr.mxu0 0.0
    %1032 = vmatpush1.msra.mxu0 %v282
    %1033 = vmatprep.subr.mxu0 0.0
    %1034 = vmatpush1.msra.mxu0 %v283
    %1035 = vmatprep.subr.mxu0 0.0
    %1036 = vmatpush1.msra.mxu0 %v284
    %1037 = vmatprep.subr.mxu0 0.0
    %1038 = vmatpush1.msra.mxu0 %v285
    %1039 = vmatprep.subr.mxu0 0.0
    %1040 = vmatpush1.msra.mxu0 %v286
    %1041 = vmatprep.subr.mxu0 0.0
    %1042 = vmatpush1.msra.mxu0 %v287
    %1043 = vmatprep.subr.mxu0 0.0
    %1044 = vmatpush1.msra.mxu0 %v288
    %1045 = vmatprep.subr.mxu0 0.0
    %1046 = vmatpush1.msra.mxu0 %v289
    %1047 = vmatprep.subr.mxu0 0.0
    %1048 = vmatpush1.msra.mxu0 %v290
    %1049 = vmatprep.subr.mxu0 0.0
    %1050 = vmatpush1.msra.mxu0 %v291
    %1051 = vmatprep.subr.mxu0 0.0
    %1052 = vmatpush1.msra.mxu0 %v292
    %1053 = vmatprep.subr.mxu0 0.0
    %1054 = vmatpush1.msra.mxu0 %v293
    %1055 = vmatprep.subr.mxu0 0.0
    %1056 = vmatpush1.msra.mxu0 %v294
    %1057 = vmatprep.subr.mxu0 0.0
    %1058 = vmatpush1.msra.mxu0 %v295
    %1059 = vmatprep.mubr.f32.mxu0 %v561
    %1060 = vmatmul.mubr.f32.gmra.mrb[0].mxu0 %v559
    %v1061 = vpop.f32.mrb[0].mxu0
    %v1062 = vadd.f32 %v992, %v1061
    %v1063 = vpop.f32.mrb[0].mxu0
    %1064 = vdwg.mxu0
    %1065 = vmatprep.subr.mxu0 0.0
    %1066 = vmatpush1.msra.mxu0 %v296
    %1067 = vmatprep.subr.mxu0 0.0
    %1068 = vmatpush1.msra.mxu0 %v297
    %1069 = vmatprep.subr.mxu0 0.0
    %1070 = vmatpush1.msra.mxu0 %v298
    %1071 = vmatprep.subr.mxu0 0.0
    %1072 = vmatpush1.msra.mxu0 %v299
    %1073 = vmatprep.subr.mxu0 0.0
    %1074 = vmatpush1.msra.mxu0 %v300
    %1075 = vmatprep.subr.mxu0 0.0
    %1076 = vmatpush1.msra.mxu0 %v301
    %1077 = vmatprep.subr.mxu0 0.0
    %1078 = vmatpush1.msra.mxu0 %v302
    %1079 = vmatprep.subr.mxu0 0.0
    %1080 = vmatpush1.msra.mxu0 %v303
    %1081 = vmatprep.subr.mxu0 0.0
    %1082 = vmatpush1.msra.mxu0 %v304
    %1083 = vmatprep.subr.mxu0 0.0
    %1084 = vmatpush1.msra.mxu0 %v305
    %1085 = vmatprep.subr.mxu0 0.0
    %1086 = vmatpush1.msra.mxu0 %v306
    %1087 = vmatprep.subr.mxu0 0.0
    %1088 = vmatpush1.msra.mxu0 %v307
    %1089 = vmatprep.subr.mxu0 0.0
    %1090 = vmatpush1.msra.mxu0 %v308
    %1091 = vmatprep.subr.mxu0 0.0
    %1092 = vmatpush1.msra.mxu0 %v309
    %1093 = vmatprep.subr.mxu0 0.0
    %1094 = vmatpush1.msra.mxu0 %v310
    %1095 = vmatprep.subr.mxu0 0.0
    %1096 = vmatpush1.msra.mxu0 %v311
    %1097 = vmatprep.subr.mxu0 0.0
    %1098 = vmatpush1.msra.mxu0 %v312
    %1099 = vmatprep.subr.mxu0 0.0
    %1100 = vmatpush1.msra.mxu0 %v313
    %1101 = vmatprep.subr.mxu0 0.0
    %1102 = vmatpush1.msra.mxu0 %v314
    %1103 = vmatprep.subr.mxu0 0.0
    %1104 = vmatpush1.msra.mxu0 %v315
    %1105 = vmatprep.subr.mxu0 0.0
    %1106 = vmatpush1.msra.mxu0 %v316
    %1107 = vmatprep.subr.mxu0 0.0
    %1108 = vmatpush1.msra.mxu0 %v317
    %1109 = vmatprep.subr.mxu0 0.0
    %1110 = vmatpush1.msra.mxu0 %v318
    %1111 = vmatprep.subr.mxu0 0.0
    %1112 = vmatpush1.msra.mxu0 %v319
    %1113 = vmatprep.subr.mxu0 0.0
    %1114 = vmatpush1.msra.mxu0 %v320
    %1115 = vmatprep.subr.mxu0 0.0
    %1116 = vmatpush1.msra.mxu0 %v321
    %1117 = vmatprep.subr.mxu0 0.0
    %1118 = vmatpush1.msra.mxu0 %v322
    %1119 = vmatprep.subr.mxu0 0.0
    %1120 = vmatpush1.msra.mxu0 %v323
    %1121 = vmatprep.subr.mxu0 0.0
    %1122 = vmatpush1.msra.mxu0 %v324
    %1123 = vmatprep.subr.mxu0 0.0
    %1124 = vmatpush1.msra.mxu0 %v325
    %1125 = vmatprep.subr.mxu0 0.0
    %1126 = vmatpush1.msra.mxu0 %v326
    %1127 = vmatprep.subr.mxu0 0.0
    %1128 = vmatpush1.msra.mxu0 %v327
    %1129 = vmatprep.mubr.f32.mxu0 %v577
    %1130 = vmatmul.mubr.f32.gmra.mrb[0].mxu0 %v569
    %v1131 = vpop.f32.mrb[0].mxu0
    %v1132 = vadd.f32 %v1062, %v1131
    %v1133 = vpop.f32.mrb[0].mxu0
    %1134 = vdwg.mxu0
    %1135 = vmatprep.subr.mxu0 0.0
    %1136 = vmatpush1.msra.mxu0 %v328
    %1137 = vmatprep.subr.mxu0 0.0
    %1138 = vmatpush1.msra.mxu0 %v329
    %1139 = vmatprep.subr.mxu0 0.0
    %1140 = vmatpush1.msra.mxu0 %v330
    %1141 = vmatprep.subr.mxu0 0.0
    %1142 = vmatpush1.msra.mxu0 %v331
    %1143 = vmatprep.subr.mxu0 0.0
    %1144 = vmatpush1.msra.mxu0 %v332
    %1145 = vmatprep.subr.mxu0 0.0
    %1146 = vmatpush1.msra.mxu0 %v333
    %1147 = vmatprep.subr.mxu0 0.0
    %1148 = vmatpush1.msra.mxu0 %v334
    %1149 = vmatprep.subr.mxu0 0.0
    %1150 = vmatpush1.msra.mxu0 %v335
    %1151 = vmatprep.subr.mxu0 0.0
    %1152 = vmatpush1.msra.mxu0 %v336
    %1153 = vmatprep.subr.mxu0 0.0
    %1154 = vmatpush1.msra.mxu0 %v337
    %1155 = vmatprep.subr.mxu0 0.0
    %1156 = vmatpush1.msra.mxu0 %v338
    %1157 = vmatprep.subr.mxu0 0.0
    %1158 = vmatpush1.msra.mxu0 %v339
    %1159 = vmatprep.subr.mxu0 0.0
    %1160 = vmatpush1.msra.mxu0 %v340
    %1161 = vmatprep.subr.mxu0 0.0
    %1162 = vmatpush1.msra.mxu0 %v341
    %1163 = vmatprep.subr.mxu0 0.0
    %1164 = vmatpush1.msra.mxu0 %v342
    %1165 = vmatprep.subr.mxu0 0.0
    %1166 = vmatpush1.msra.mxu0 %v343
    %1167 = vmatprep.subr.mxu0 0.0
    %1168 = vmatpush1.msra.mxu0 %v344
    %1169 = vmatprep.subr.mxu0 0.0
    %1170 = vmatpush1.msra.mxu0 %v345
    %1171 = vmatprep.subr.mxu0 0.0
    %1172 = vmatpush1.msra.mxu0 %v346
    %1173 = vmatprep.subr.mxu0 0.0
    %1174 = vmatpush1.msra.mxu0 %v347
    %1175 = vmatprep.subr.mxu0 0.0
    %1176 = vmatpush1.msra.mxu0 %v348
    %1177 = vmatprep.subr.mxu0 0.0
    %1178 = vmatpush1.msra.mxu0 %v349
    %1179 = vmatprep.subr.mxu0 0.0
    %1180 = vmatpush1.msra.mxu0 %v350
    %1181 = vmatprep.subr.mxu0 0.0
    %1182 = vmatpush1.msra.mxu0 %v351
    %1183 = vmatprep.subr.mxu0 0.0
    %1184 = vmatpush1.msra.mxu0 %v352
    %1185 = vmatprep.subr.mxu0 0.0
    %1186 = vmatpush1.msra.mxu0 %v353
    %1187 = vmatprep.subr.mxu0 0.0
    %1188 = vmatpush1.msra.mxu0 %v354
    %1189 = vmatprep.subr.mxu0 0.0
    %1190 = vmatpush1.msra.mxu0 %v355
    %1191 = vmatprep.subr.mxu0 0.0
    %1192 = vmatpush1.msra.mxu0 %v356
    %1193 = vmatprep.subr.mxu0 0.0
    %1194 = vmatpush1.msra.mxu0 %v357
    %1195 = vmatprep.subr.mxu0 0.0
    %1196 = vmatpush1.msra.mxu0 %v358
    %1197 = vmatprep.subr.mxu0 0.0
    %1198 = vmatpush1.msra.mxu0 %v359
    %1199 = vmatprep.mubr.f32.mxu0 %v578
    %1200 = vmatmul.mubr.f32.gmra.mrb[0].mxu0 %v576
    %v1201 = vpop.f32.mrb[0].mxu0
    %v1202 = vadd.f32 %v1132, %v1201
    %v1203 = vpop.f32.mrb[0].mxu0
    %1204 = vdwg.mxu0
    %1205 = vmatprep.subr.mxu0 0.0
    %1206 = vmatpush1.msra.mxu0 %v360
    %1207 = vmatprep.subr.mxu0 0.0
    %1208 = vmatpush1.msra.mxu0 %v361
    %1209 = vmatprep.subr.mxu0 0.0
    %1210 = vmatpush1.msra.mxu0 %v362
    %1211 = vmatprep.subr.mxu0 0.0
    %1212 = vmatpush1.msra.mxu0 %v363
    %1213 = vmatprep.subr.mxu0 0.0
    %1214 = vmatpush1.msra.mxu0 %v364
    %1215 = vmatprep.subr.mxu0 0.0
    %1216 = vmatpush1.msra.mxu0 %v365
    %1217 = vmatprep.subr.mxu0 0.0
    %1218 = vmatpush1.msra.mxu0 %v366
    %1219 = vmatprep.subr.mxu0 0.0
    %1220 = vmatpush1.msra.mxu0 %v367
    %1221 = vmatprep.subr.mxu0 0.0
    %1222 = vmatpush1.msra.mxu0 %v368
    %1223 = vmatprep.subr.mxu0 0.0
    %1224 = vmatpush1.msra.mxu0 %v369
    %1225 = vmatprep.subr.mxu0 0.0
    %1226 = vmatpush1.msra.mxu0 %v370
    %1227 = vmatprep.subr.mxu0 0.0
    %1228 = vmatpush1.msra.mxu0 %v371
    %1229 = vmatprep.subr.mxu0 0.0
    %1230 = vmatpush1.msra.mxu0 %v372
    %1231 = vmatprep.subr.mxu0 0.0
    %1232 = vmatpush1.msra.mxu0 %v373
    %1233 = vmatprep.subr.mxu0 0.0
    %1234 = vmatpush1.msra.mxu0 %v374
    %1235 = vmatprep.subr.mxu0 0.0
    %1236 = vmatpush1.msra.mxu0 %v375
    %1237 = vmatprep.subr.mxu0 0.0
    %1238 = vmatpush1.msra.mxu0 %v376
    %1239 = vmatprep.subr.mxu0 0.0
    %1240 = vmatpush1.msra.mxu0 %v377
    %1241 = vmatprep.subr.mxu0 0.0
    %1242 = vmatpush1.msra.mxu0 %v378
    %1243 = vmatprep.subr.mxu0 0.0
    %1244 = vmatpush1.msra.mxu0 %v379
    %1245 = vmatprep.subr.mxu0 0.0
    %1246 = vmatpush1.msra.mxu0 %v380
    %1247 = vmatprep.subr.mxu0 0.0
    %1248 = vmatpush1.msra.mxu0 %v381
    %1249 = vmatprep.subr.mxu0 0.0
    %1250 = vmatpush1.msra.mxu0 %v382
    %1251 = vmatprep.subr.mxu0 0.0
    %1252 = vmatpush1.msra.mxu0 %v383
    %1253 = vmatprep.subr.mxu0 0.0
    %1254 = vmatpush1.msra.mxu0 %v384
    %1255 = vmatprep.subr.mxu0 0.0
    %1256 = vmatpush1.msra.mxu0 %v385
    %1257 = vmatprep.subr.mxu0 0.0
    %1258 = vmatpush1.msra.mxu0 %v386
    %1259 = vmatprep.subr.mxu0 0.0
    %1260 = vmatpush1.msra.mxu0 %v387
    %1261 = vmatprep.subr.mxu0 0.0
    %1262 = vmatpush1.msra.mxu0 %v388
    %1263 = vmatprep.subr.mxu0 0.0
    %1264 = vmatpush1.msra.mxu0 %v389
    %1265 = vmatprep.subr.mxu0 0.0
    %1266 = vmatpush1.msra.mxu0 %v390
    %1267 = vmatprep.subr.mxu0 0.0
    %1268 = vmatpush1.msra.mxu0 %v391
    %1269 = vmatprep.mubr.f32.mxu0 %v594
    %1270 = vmatmul.mubr.f32.gmra.mrb[0].mxu0 %v586
    %v1271 = vpop.f32.mrb[0].mxu0
    %v1272 = vadd.f32 %v1202, %v1271
    %v1273 = vpop.f32.mrb[0].mxu0
    %1274 = vdwg.mxu0
    %1275 = vmatprep.subr.mxu0 0.0
    %1276 = vmatpush1.msra.mxu0 %v392
    %1277 = vmatprep.subr.mxu0 0.0
    %1278 = vmatpush1.msra.mxu0 %v393
    %1279 = vmatprep.subr.mxu0 0.0
    %1280 = vmatpush1.msra.mxu0 %v394
    %1281 = vmatprep.subr.mxu0 0.0
    %1282 = vmatpush1.msra.mxu0 %v395
    %1283 = vmatprep.subr.mxu0 0.0
    %1284 = vmatpush1.msra.mxu0 %v396
    %1285 = vmatprep.subr.mxu0 0.0
    %1286 = vmatpush1.msra.mxu0 %v397
    %1287 = vmatprep.subr.mxu0 0.0
    %1288 = vmatpush1.msra.mxu0 %v398
    %1289 = vmatprep.subr.mxu0 0.0
    %1290 = vmatpush1.msra.mxu0 %v399
    %1291 = vmatprep.subr.mxu0 0.0
    %1292 = vmatpush1.msra.mxu0 %v400
    %1293 = vmatprep.subr.mxu0 0.0
    %1294 = vmatpush1.msra.mxu0 %v401
    %1295 = vmatprep.subr.mxu0 0.0
    %1296 = vmatpush1.msra.mxu0 %v402
    %1297 = vmatprep.subr.mxu0 0.0
    %1298 = vmatpush1.msra.mxu0 %v403
    %1299 = vmatprep.subr.mxu0 0.0
    %1300 = vmatpush1.msra.mxu0 %v404
    %1301 = vmatprep.subr.mxu0 0.0
    %1302 = vmatpush1.msra.mxu0 %v405
    %1303 = vmatprep.subr.mxu0 0.0
    %1304 = vmatpush1.msra.mxu0 %v406
    %1305 = vmatprep.subr.mxu0 0.0
    %1306 = vmatpush1.msra.mxu0 %v407
    %1307 = vmatprep.subr.mxu0 0.0
    %1308 = vmatpush1.msra.mxu0 %v408
    %1309 = vmatprep.subr.mxu0 0.0
    %1310 = vmatpush1.msra.mxu0 %v409
    %1311 = vmatprep.subr.mxu0 0.0
    %1312 = vmatpush1.msra.mxu0 %v410
    %1313 = vmatprep.subr.mxu0 0.0
    %1314 = vmatpush1.msra.mxu0 %v411
    %1315 = vmatprep.subr.mxu0 0.0
    %1316 = vmatpush1.msra.mxu0 %v412
    %1317 = vmatprep.subr.mxu0 0.0
    %1318 = vmatpush1.msra.mxu0 %v413
    %1319 = vmatprep.subr.mxu0 0.0
    %1320 = vmatpush1.msra.mxu0 %v414
    %1321 = vmatprep.subr.mxu0 0.0
    %1322 = vmatpush1.msra.mxu0 %v415
    %1323 = vmatprep.subr.mxu0 0.0
    %1324 = vmatpush1.msra.mxu0 %v416
    %1325 = vmatprep.subr.mxu0 0.0
    %1326 = vmatpush1.msra.mxu0 %v417
    %1327 = vmatprep.subr.mxu0 0.0
    %1328 = vmatpush1.msra.mxu0 %v418
    %1329 = vmatprep.subr.mxu0 0.0
    %1330 = vmatpush1.msra.mxu0 %v419
    %1331 = vmatprep.subr.mxu0 0.0
    %1332 = vmatpush1.msra.mxu0 %v420
    %1333 = vmatprep.subr.mxu0 0.0
    %1334 = vmatpush1.msra.mxu0 %v421
    %1335 = vmatprep.subr.mxu0 0.0
    %1336 = vmatpush1.msra.mxu0 %v422
    %1337 = vmatprep.subr.mxu0 0.0
    %1338 = vmatpush1.msra.mxu0 %v423
    %1339 = vmatprep.mubr.f32.mxu0 %v595
    %1340 = vmatmul.mubr.f32.gmra.mrb[0].mxu0 %v593
    %v1341 = vpop.f32.mrb[0].mxu0
    %v1342 = vadd.f32 %v1272, %v1341
    %v1343 = vpop.f32.mrb[0].mxu0
    %1344 = vdwg.mxu0
    %1345 = vmatprep.subr.mxu0 0.0
    %1346 = vmatpush1.msra.mxu0 %v424
    %1347 = vmatprep.subr.mxu0 0.0
    %1348 = vmatpush1.msra.mxu0 %v425
    %1349 = vmatprep.subr.mxu0 0.0
    %1350 = vmatpush1.msra.mxu0 %v426
    %1351 = vmatprep.subr.mxu0 0.0
    %1352 = vmatpush1.msra.mxu0 %v427
    %1353 = vmatprep.subr.mxu0 0.0
    %1354 = vmatpush1.msra.mxu0 %v428
    %1355 = vmatprep.subr.mxu0 0.0
    %1356 = vmatpush1.msra.mxu0 %v429
    %1357 = vmatprep.subr.mxu0 0.0
    %1358 = vmatpush1.msra.mxu0 %v430
    %1359 = vmatprep.subr.mxu0 0.0
    %1360 = vmatpush1.msra.mxu0 %v431
    %1361 = vmatprep.subr.mxu0 0.0
    %1362 = vmatpush1.msra.mxu0 %v432
    %1363 = vmatprep.subr.mxu0 0.0
    %1364 = vmatpush1.msra.mxu0 %v433
    %1365 = vmatprep.subr.mxu0 0.0
    %1366 = vmatpush1.msra.mxu0 %v434
    %1367 = vmatprep.subr.mxu0 0.0
    %1368 = vmatpush1.msra.mxu0 %v435
    %1369 = vmatprep.subr.mxu0 0.0
    %1370 = vmatpush1.msra.mxu0 %v436
    %1371 = vmatprep.subr.mxu0 0.0
    %1372 = vmatpush1.msra.mxu0 %v437
    %1373 = vmatprep.subr.mxu0 0.0
    %1374 = vmatpush1.msra.mxu0 %v438
    %1375 = vmatprep.subr.mxu0 0.0
    %1376 = vmatpush1.msra.mxu0 %v439
    %1377 = vmatprep.subr.mxu0 0.0
    %1378 = vmatpush1.msra.mxu0 %v440
    %1379 = vmatprep.subr.mxu0 0.0
    %1380 = vmatpush1.msra.mxu0 %v441
    %1381 = vmatprep.subr.mxu0 0.0
    %1382 = vmatpush1.msra.mxu0 %v442
    %1383 = vmatprep.subr.mxu0 0.0
    %1384 = vmatpush1.msra.mxu0 %v443
    %1385 = vmatprep.subr.mxu0 0.0
    %1386 = vmatpush1.msra.mxu0 %v444
    %1387 = vmatprep.subr.mxu0 0.0
    %1388 = vmatpush1.msra.mxu0 %v445
    %1389 = vmatprep.subr.mxu0 0.0
    %1390 = vmatpush1.msra.mxu0 %v446
    %1391 = vmatprep.subr.mxu0 0.0
    %1392 = vmatpush1.msra.mxu0 %v447
    %1393 = vmatprep.subr.mxu0 0.0
    %1394 = vmatpush1.msra.mxu0 %v448
    %1395 = vmatprep.subr.mxu0 0.0
    %1396 = vmatpush1.msra.mxu0 %v449
    %1397 = vmatprep.subr.mxu0 0.0
    %1398 = vmatpush1.msra.mxu0 %v450
    %1399 = vmatprep.subr.mxu0 0.0
    %1400 = vmatpush1.msra.mxu0 %v451
    %1401 = vmatprep.subr.mxu0 0.0
    %1402 = vmatpush1.msra.mxu0 %v452
    %1403 = vmatprep.subr.mxu0 0.0
    %1404 = vmatpush1.msra.mxu0 %v453
    %1405 = vmatprep.subr.mxu0 0.0
    %1406 = vmatpush1.msra.mxu0 %v454
    %1407 = vmatprep.subr.mxu0 0.0
    %1408 = vmatpush1.msra.mxu0 %v455
    %1409 = vmatprep.mubr.f32.mxu0 %v611
    %1410 = vmatmul.mubr.f32.gmra.mrb[0].mxu0 %v603
    %v1411 = vpop.f32.mrb[0].mxu0
    %v1412 = vadd.f32 %v1342, %v1411
    %v1413 = vpop.f32.mrb[0].mxu0
    %1414 = vdwg.mxu0
    %1415 = vmatprep.subr.mxu0 0.0
    %1416 = vmatpush1.msra.mxu0 %v456
    %1417 = vmatprep.subr.mxu0 0.0
    %1418 = vmatpush1.msra.mxu0 %v457
    %1419 = vmatprep.subr.mxu0 0.0
    %1420 = vmatpush1.msra.mxu0 %v458
    %1421 = vmatprep.subr.mxu0 0.0
    %1422 = vmatpush1.msra.mxu0 %v459
    %1423 = vmatprep.subr.mxu0 0.0
    %1424 = vmatpush1.msra.mxu0 %v460
    %1425 = vmatprep.subr.mxu0 0.0
    %1426 = vmatpush1.msra.mxu0 %v461
    %1427 = vmatprep.subr.mxu0 0.0
    %1428 = vmatpush1.msra.mxu0 %v462
    %1429 = vmatprep.subr.mxu0 0.0
    %1430 = vmatpush1.msra.mxu0 %v463
    %1431 = vmatprep.subr.mxu0 0.0
    %1432 = vmatpush1.msra.mxu0 %v464
    %1433 = vmatprep.subr.mxu0 0.0
    %1434 = vmatpush1.msra.mxu0 %v465
    %1435 = vmatprep.subr.mxu0 0.0
    %1436 = vmatpush1.msra.mxu0 %v466
    %1437 = vmatprep.subr.mxu0 0.0
    %1438 = vmatpush1.msra.mxu0 %v467
    %1439 = vmatprep.subr.mxu0 0.0
    %1440 = vmatpush1.msra.mxu0 %v468
    %1441 = vmatprep.subr.mxu0 0.0
    %1442 = vmatpush1.msra.mxu0 %v469
    %1443 = vmatprep.subr.mxu0 0.0
    %1444 = vmatpush1.msra.mxu0 %v470
    %1445 = vmatprep.subr.mxu0 0.0
    %1446 = vmatpush1.msra.mxu0 %v471
    %1447 = vmatprep.subr.mxu0 0.0
    %1448 = vmatpush1.msra.mxu0 %v472
    %1449 = vmatprep.subr.mxu0 0.0
    %1450 = vmatpush1.msra.mxu0 %v473
    %1451 = vmatprep.subr.mxu0 0.0
    %1452 = vmatpush1.msra.mxu0 %v474
    %1453 = vmatprep.subr.mxu0 0.0
    %1454 = vmatpush1.msra.mxu0 %v475
    %1455 = vmatprep.subr.mxu0 0.0
    %1456 = vmatpush1.msra.mxu0 %v476
    %1457 = vmatprep.subr.mxu0 0.0
    %1458 = vmatpush1.msra.mxu0 %v477
    %1459 = vmatprep.subr.mxu0 0.0
    %1460 = vmatpush1.msra.mxu0 %v478
    %1461 = vmatprep.subr.mxu0 0.0
    %1462 = vmatpush1.msra.mxu0 %v479
    %1463 = vmatprep.subr.mxu0 0.0
    %1464 = vmatpush1.msra.mxu0 %v480
    %1465 = vmatprep.subr.mxu0 0.0
    %1466 = vmatpush1.msra.mxu0 %v481
    %1467 = vmatprep.subr.mxu0 0.0
    %1468 = vmatpush1.msra.mxu0 %v482
    %1469 = vmatprep.subr.mxu0 0.0
    %1470 = vmatpush1.msra.mxu0 %v483
    %1471 = vmatprep.subr.mxu0 0.0
    %1472 = vmatpush1.msra.mxu0 %v484
    %1473 = vmatprep.subr.mxu0 0.0
    %1474 = vmatpush1.msra.mxu0 %v485
    %1475 = vmatprep.subr.mxu0 0.0
    %1476 = vmatpush1.msra.mxu0 %v486
    %1477 = vmatprep.subr.mxu0 0.0
    %1478 = vmatpush1.msra.mxu0 %v487
    %1479 = vmatprep.mubr.f32.mxu0 %v612
    %1480 = vmatmul.mubr.f32.gmra.mrb[0].mxu0 %v610
    %v1481 = vpop.f32.mrb[0].mxu0
    %v1482 = vadd.f32 %v1412, %v1481
    %v1483 = vpop.f32.mrb[0].mxu0
    %1484 = vdwg.mxu0
    %1485 = vmatprep.subr.mxu0 0.0
    %1486 = vmatpush1.msra.mxu0 %v488
    %1487 = vmatprep.subr.mxu0 0.0
    %1488 = vmatpush1.msra.mxu0 %v489
    %1489 = vmatprep.subr.mxu0 0.0
    %1490 = vmatpush1.msra.mxu0 %v490
    %1491 = vmatprep.subr.mxu0 0.0
    %1492 = vmatpush1.msra.mxu0 %v491
    %1493 = vmatprep.subr.mxu0 0.0
    %1494 = vmatpush1.msra.mxu0 %v492
    %1495 = vmatprep.subr.mxu0 0.0
    %1496 = vmatpush1.msra.mxu0 %v493
    %1497 = vmatprep.subr.mxu0 0.0
    %1498 = vmatpush1.msra.mxu0 %v494
    %1499 = vmatprep.subr.mxu0 0.0
    %1500 = vmatpush1.msra.mxu0 %v495
    %1501 = vmatprep.subr.mxu0 0.0
    %1502 = vmatpush1.msra.mxu0 %v496
    %1503 = vmatprep.subr.mxu0 0.0
    %1504 = vmatpush1.msra.mxu0 %v497
    %1505 = vmatprep.subr.mxu0 0.0
    %1506 = vmatpush1.msra.mxu0 %v498
    %1507 = vmatprep.subr.mxu0 0.0
    %1508 = vmatpush1.msra.mxu0 %v499
    %1509 = vmatprep.subr.mxu0 0.0
    %1510 = vmatpush1.msra.mxu0 %v500
    %1511 = vmatprep.subr.mxu0 0.0
    %1512 = vmatpush1.msra.mxu0 %v501
    %1513 = vmatprep.subr.mxu0 0.0
    %1514 = vmatpush1.msra.mxu0 %v502
    %1515 = vmatprep.subr.mxu0 0.0
    %1516 = vmatpush1.msra.mxu0 %v503
    %1517 = vmatprep.subr.mxu0 0.0
    %1518 = vmatpush1.msra.mxu0 0.0
    %1519 = vmatprep.subr.mxu0 0.0
    %1520 = vmatpush1.msra.mxu0 0.0
    %1521 = vmatprep.subr.mxu0 0.0
    %1522 = vmatpush1.msra.mxu0 0.0
    %1523 = vmatprep.subr.mxu0 0.0
    %1524 = vmatpush1.msra.mxu0 0.0
    %1525 = vmatprep.subr.mxu0 0.0
    %1526 = vmatpush1.msra.mxu0 0.0
    %1527 = vmatprep.subr.mxu0 0.0
    %1528 = vmatpush1.msra.mxu0 0.0
    %1529 = vmatprep.subr.mxu0 0.0
    %1530 = vmatpush1.msra.mxu0 0.0
    %1531 = vmatprep.subr.mxu0 0.0
    %1532 = vmatpush1.msra.mxu0 0.0
    %1533 = vmatprep.subr.mxu0 0.0
    %1534 = vmatpush1.msra.mxu0 0.0
    %1535 = vmatprep.subr.mxu0 0.0
    %1536 = vmatpush1.msra.mxu0 0.0
    %1537 = vmatprep.subr.mxu0 0.0
    %1538 = vmatpush1.msra.mxu0 0.0
    %1539 = vmatprep.subr.mxu0 0.0
    %1540 = vmatpush1.msra.mxu0 0.0
    %1541 = vmatprep.subr.mxu0 0.0
    %1542 = vmatpush1.msra.mxu0 0.0
    %1543 = vmatprep.subr.mxu0 0.0
    %1544 = vmatpush1.msra.mxu0 0.0
    %1545 = vmatprep.subr.mxu0 0.0
    %1546 = vmatpush1.msra.mxu0 0.0
    %1547 = vmatprep.subr.mxu0 0.0
    %1548 = vmatpush1.msra.mxu0 0.0
    %1549 = vmatprep.mubr.f32.mxu0 0.0
    %1550 = vmatmul.mubr.f32.gmra.mrb[0].mxu0 %v619
    %v1551 = vpop.f32.mrb[0].mxu0
    %v1552 = vadd.f32 %v1482, %v1551
    %v1553 = vpop.f32.mrb[0].mxu0
    %1554 = vdwg.mxu0
    %s1555 = sld [smem:[#allocation2]]
    %v1556 = vstv %s1555
    %s1557 = sld [smem:[#allocation10]]
    %v1558 = vstv %s1557
    %v1559 = vmul.f32 %v1552, %v1558
    %s1560 = sld [smem:[#allocation10 + $0x1]]
    %v1561 = vstv %s1560
    %v1562 = vmul.f32 %v1552, %v1561
    %1564 = vrot.lane.b32.xlu0 %v1562, 64
    %v1565 = vpop.permute.xlu0 %1564
    %v1567 = vadd.f32 %v1559, %v1565
    %s1568 = sld [smem:[#allocation11]]
    %v1569 = vstv %s1568
    %v1570 = vadd.f32 %v1567, %v1569
    %v1571 = vmax.f32 %v1570, 0.0
    %s1572 = sld [smem:[#allocation13]]
    %v1573 = vstv %s1572
    %v1574 = vmul.f32 %v1571, %v1573
    %v1575 = vadd.f32 %v1556, %v1574
    %s1576 = sld [smem:[#allocation10 + $0x2]]
    %v1577 = vstv %s1576
    %v1578 = vmul.f32 %v1552, %v1577
    %s1579 = sld [smem:[#allocation10 + $0x3]]
    %v1580 = vstv %s1579
    %v1581 = vmul.f32 %v1552, %v1580
    %1583 = vrot.lane.b32.xlu0 %v1581, 64
    %v1584 = vpop.permute.xlu0 %1583
    %v1586 = vadd.f32 %v1578, %v1584
    %s1587 = sld [smem:[#allocation11 + $0x1]]
    %v1588 = vstv %s1587
    %v1589 = vadd.f32 %v1586, %v1588
    %v1590 = vmax.f32 %v1589, 0.0
    %s1591 = sld [smem:[#allocation13 + $0x1]]
    %v1592 = vstv %s1591
    %v1593 = vmul.f32 %v1590, %v1592
    %v1594 = vadd.f32 %v1575, %v1593
    %s1595 = sld [smem:[#allocation10 + $0x4]]
    %v1596 = vstv %s1595
    %v1597 = vmul.f32 %v1552, %v1596
    %s1598 = sld [smem:[#allocation10 + $0x5]]
    %v1599 = vstv %s1598
    %v1600 = vmul.f32 %v1552, %v1599
    %1602 = vrot.lane.b32.xlu0 %v1600, 64
    %v1603 = vpop.permute.xlu0 %1602
    %v1605 = vadd.f32 %v1597, %v1603
    %s1606 = sld [smem:[#allocation11 + $0x2]]
    %v1607 = vstv %s1606
    %v1608 = vadd.f32 %v1605, %v1607
    %v1609 = vmax.f32 %v1608, 0.0
    %s1610 = sld [smem:[#allocation13 + $0x2]]
    %v1611 = vstv %s1610
    %v1612 = vmul.f32 %v1609, %v1611
    %v1613 = vadd.f32 %v1594, %v1612
    %s1614 = sld [smem:[#allocation10 + $0x6]]
    %v1615 = vstv %s1614
    %v1616 = vmul.f32 %v1552, %v1615
    %s1617 = sld [smem:[#allocation10 + $0x7]]
    %v1618 = vstv %s1617
    %v1619 = vmul.f32 %v1552, %v1618
    %1621 = vrot.lane.b32.xlu0 %v1619, 64
    %v1622 = vpop.permute.xlu0 %1621
    %v1624 = vadd.f32 %v1616, %v1622
    %s1625 = sld [smem:[#allocation11 + $0x3]]
    %v1626 = vstv %s1625
    %v1627 = vadd.f32 %v1624, %v1626
    %v1628 = vmax.f32 %v1627, 0.0
    %s1629 = sld [smem:[#allocation13 + $0x3]]
    %v1630 = vstv %s1629
    %v1631 = vmul.f32 %v1628, %v1630
    %v1632 = vadd.f32 %v1613, %v1631
    %s1633 = sld [smem:[#allocation10 + $0x8]]
    %v1634 = vstv %s1633
    %v1635 = vmul.f32 %v1552, %v1634
    %s1636 = sld [smem:[#allocation10 + $0x9]]
    %v1637 = vstv %s1636
    %v1638 = vmul.f32 %v1552, %v1637
    %1640 = vrot.lane.b32.xlu0 %v1638, 64
    %v1641 = vpop.permute.xlu0 %1640
    %v1643 = vadd.f32 %v1635, %v1641
    %s1644 = sld [smem:[#allocation11 + $0x4]]
    %v1645 = vstv %s1644
    %v1646 = vadd.f32 %v1643, %v1645
    %v1647 = vmax.f32 %v1646, 0.0
    %s1648 = sld [smem:[#allocation13 + $0x4]]
    %v1649 = vstv %s1648
    %v1650 = vmul.f32 %v1647, %v1649
    %v1651 = vadd.f32 %v1632, %v1650
    %s1652 = sld [smem:[#allocation10 + $0xa]]
    %v1653 = vstv %s1652
    %v1654 = vmul.f32 %v1552, %v1653
    %s1655 = sld [smem:[#allocation10 + $0xb]]
    %v1656 = vstv %s1655
    %v1657 = vmul.f32 %v1552, %v1656
    %1659 = vrot.lane.b32.xlu0 %v1657, 64
    %v1660 = vpop.permute.xlu0 %1659
    %v1662 = vadd.f32 %v1654, %v1660
    %s1663 = sld [smem:[#allocation11 + $0x5]]
    %v1664 = vstv %s1663
    %v1665 = vadd.f32 %v1662, %v1664
    %v1666 = vmax.f32 %v1665, 0.0
    %s1667 = sld [smem:[#allocation13 + $0x5]]
    %v1668 = vstv %s1667
    %v1669 = vmul.f32 %v1666, %v1668
    %v1670 = vadd.f32 %v1651, %v1669
    %s1671 = sld [smem:[#allocation10 + $0xc]]
    %v1672 = vstv %s1671
    %v1673 = vmul.f32 %v1552, %v1672
    %s1674 = sld [smem:[#allocation10 + $0xd]]
    %v1675 = vstv %s1674
    %v1676 = vmul.f32 %v1552, %v1675
    %1678 = vrot.lane.b32.xlu0 %v1676, 64
    %v1679 = vpop.permute.xlu0 %1678
    %v1681 = vadd.f32 %v1673, %v1679
    %s1682 = sld [smem:[#allocation11 + $0x6]]
    %v1683 = vstv %s1682
    %v1684 = vadd.f32 %v1681, %v1683
    %v1685 = vmax.f32 %v1684, 0.0
    %s1686 = sld [smem:[#allocation13 + $0x6]]
    %v1687 = vstv %s1686
    %v1688 = vmul.f32 %v1685, %v1687
    %v1689 = vadd.f32 %v1670, %v1688
    %s1690 = sld [smem:[#allocation10 + $0xe]]
    %v1691 = vstv %s1690
    %v1692 = vmul.f32 %v1552, %v1691
    %s1693 = sld [smem:[#allocation10 + $0xf]]
    %v1694 = vstv %s1693
    %v1695 = vmul.f32 %v1552, %v1694
    %1697 = vrot.lane.b32.xlu0 %v1695, 64
    %v1698 = vpop.permute.xlu0 %1697
    %v1700 = vadd.f32 %v1692, %v1698
    %s1701 = sld [smem:[#allocation11 + $0x7]]
    %v1702 = vstv %s1701
    %v1703 = vadd.f32 %v1700, %v1702
    %v1704 = vmax.f32 %v1703, 0.0
    %s1705 = sld [smem:[#allocation13 + $0x7]]
    %v1706 = vstv %s1705
    %v1707 = vmul.f32 %v1704, %v1706
    %v1708 = vadd.f32 %v1689, %v1707
    %s1709 = sld [smem:[#allocation10 + $0x10]]
    %v1710 = vstv %s1709
    %v1711 = vmul.f32 %v1552, %v1710
    %s1712 = sld [smem:[#allocation10 + $0x11]]
    %v1713 = vstv %s1712
    %v1714 = vmul.f32 %v1552, %v1713
    %1716 = vrot.lane.b32.xlu0 %v1714, 64
    %v1717 = vpop.permute.xlu0 %1716
    %v1719 = vadd.f32 %v1711, %v1717
    %s1720 = sld [smem:[#allocation11 + $0x8]]
    %v1721 = vstv %s1720
    %v1722 = vadd.f32 %v1719, %v1721
    %v1723 = vmax.f32 %v1722, 0.0
    %s1724 = sld [smem:[#allocation13 + $0x8]]
    %v1725 = vstv %s1724
    %v1726 = vmul.f32 %v1723, %v1725
    %v1727 = vadd.f32 %v1708, %v1726
    %s1728 = sld [smem:[#allocation10 + $0x12]]
    %v1729 = vstv %s1728
    %v1730 = vmul.f32 %v1552, %v1729
    %s1731 = sld [smem:[#allocation10 + $0x13]]
    %v1732 = vstv %s1731
    %v1733 = vmul.f32 %v1552, %v1732
    %1735 = vrot.lane.b32.xlu0 %v1733, 64
    %v1736 = vpop.permute.xlu0 %1735
    %v1738 = vadd.f32 %v1730, %v1736
    %s1739 = sld [smem:[#allocation11 + $0x9]]
    %v1740 = vstv %s1739
    %v1741 = vadd.f32 %v1738, %v1740
    %v1742 = vmax.f32 %v1741, 0.0
    %s1743 = sld [smem:[#allocation13 + $0x9]]
    %v1744 = vstv %s1743
    %v1745 = vmul.f32 %v1742, %v1744
    %v1746 = vadd.f32 %v1727, %v1745
    %s1747 = sld [smem:[#allocation10 + $0x14]]
    %v1748 = vstv %s1747
    %v1749 = vmul.f32 %v1552, %v1748
    %s1750 = sld [smem:[#allocation10 + $0x15]]
    %v1751 = vstv %s1750
    %v1752 = vmul.f32 %v1552, %v1751
    %1754 = vrot.lane.b32.xlu0 %v1752, 64
    %v1755 = vpop.permute.xlu0 %1754
    %v1757 = vadd.f32 %v1749, %v1755
    %s1758 = sld [smem:[#allocation11 + $0xa]]
    %v1759 = vstv %s1758
    %v1760 = vadd.f32 %v1757, %v1759
    %v1761 = vmax.f32 %v1760, 0.0
    %s1762 = sld [smem:[#allocation13 + $0xa]]
    %v1763 = vstv %s1762
    %v1764 = vmul.f32 %v1761, %v1763
    %v1765 = vadd.f32 %v1746, %v1764
    %s1766 = sld [smem:[#allocation10 + $0x16]]
    %v1767 = vstv %s1766
    %v1768 = vmul.f32 %v1552, %v1767
    %s1769 = sld [smem:[#allocation10 + $0x17]]
    %v1770 = vstv %s1769
    %v1771 = vmul.f32 %v1552, %v1770
    %1773 = vrot.lane.b32.xlu0 %v1771, 64
    %v1774 = vpop.permute.xlu0 %1773
    %v1776 = vadd.f32 %v1768, %v1774
    %s1777 = sld [smem:[#allocation11 + $0xb]]
    %v1778 = vstv %s1777
    %v1779 = vadd.f32 %v1776, %v1778
    %v1780 = vmax.f32 %v1779, 0.0
    %s1781 = sld [smem:[#allocation13 + $0xb]]
    %v1782 = vstv %s1781
    %v1783 = vmul.f32 %v1780, %v1782
    %v1784 = vadd.f32 %v1765, %v1783
    %s1785 = sld [smem:[#allocation10 + $0x18]]
    %v1786 = vstv %s1785
    %v1787 = vmul.f32 %v1552, %v1786
    %s1788 = sld [smem:[#allocation10 + $0x19]]
    %v1789 = vstv %s1788
    %v1790 = vmul.f32 %v1552, %v1789
    %1792 = vrot.lane.b32.xlu0 %v1790, 64
    %v1793 = vpop.permute.xlu0 %1792
    %v1795 = vadd.f32 %v1787, %v1793
    %s1796 = sld [smem:[#allocation11 + $0xc]]
    %v1797 = vstv %s1796
    %v1798 = vadd.f32 %v1795, %v1797
    %v1799 = vmax.f32 %v1798, 0.0
    %s1800 = sld [smem:[#allocation13 + $0xc]]
    %v1801 = vstv %s1800
    %v1802 = vmul.f32 %v1799, %v1801
    %v1803 = vadd.f32 %v1784, %v1802
    %s1804 = sld [smem:[#allocation10 + $0x1a]]
    %v1805 = vstv %s1804
    %v1806 = vmul.f32 %v1552, %v1805
    %s1807 = sld [smem:[#allocation10 + $0x1b]]
    %v1808 = vstv %s1807
    %v1809 = vmul.f32 %v1552, %v1808
    %1811 = vrot.lane.b32.xlu0 %v1809, 64
    %v1812 = vpop.permute.xlu0 %1811
    %v1814 = vadd.f32 %v1806, %v1812
    %s1815 = sld [smem:[#allocation11 + $0xd]]
    %v1816 = vstv %s1815
    %v1817 = vadd.f32 %v1814, %v1816
    %v1818 = vmax.f32 %v1817, 0.0
    %s1819 = sld [smem:[#allocation13 + $0xd]]
    %v1820 = vstv %s1819
    %v1821 = vmul.f32 %v1818, %v1820
    %v1822 = vadd.f32 %v1803, %v1821
    %s1823 = sld [smem:[#allocation10 + $0x1c]]
    %v1824 = vstv %s1823
    %v1825 = vmul.f32 %v1552, %v1824
    %s1826 = sld [smem:[#allocation10 + $0x1d]]
    %v1827 = vstv %s1826
    %v1828 = vmul.f32 %v1552, %v1827
    %1830 = vrot.lane.b32.xlu0 %v1828, 64
    %v1831 = vpop.permute.xlu0 %1830
    %v1833 = vadd.f32 %v1825, %v1831
    %s1834 = sld [smem:[#allocation11 + $0xe]]
    %v1835 = vstv %s1834
    %v1836 = vadd.f32 %v1833, %v1835
    %v1837 = vmax.f32 %v1836, 0.0
    %s1838 = sld [smem:[#allocation13 + $0xe]]
    %v1839 = vstv %s1838
    %v1840 = vmul.f32 %v1837, %v1839
    %v1841 = vadd.f32 %v1822, %v1840
    %s1842 = sld [smem:[#allocation10 + $0x1e]]
    %v1843 = vstv %s1842
    %v1844 = vmul.f32 %v1552, %v1843
    %s1845 = sld [smem:[#allocation10 + $0x1f]]
    %v1846 = vstv %s1845
    %v1847 = vmul.f32 %v1552, %v1846
    %1849 = vrot.lane.b32.xlu0 %v1847, 64
    %v1850 = vpop.permute.xlu0 %1849
    %v1852 = vadd.f32 %v1844, %v1850
    %s1853 = sld [smem:[#allocation11 + $0xf]]
    %v1854 = vstv %s1853
    %v1855 = vadd.f32 %v1852, %v1854
    %v1856 = vmax.f32 %v1855, 0.0
    %s1857 = sld [smem:[#allocation13 + $0xf]]
    %v1858 = vstv %s1857
    %v1859 = vmul.f32 %v1856, %v1858
    %v1860 = vadd.f32 %v1841, %v1859
    %v1861 = vld [vmem:[#allocation9] sm:$0xff]
    %v1862 = vld [vmem:[#allocation9 + $0x8] sm:$0xff]
    %v1863 = vld [vmem:[#allocation9 + $0x10] sm:$0xff]
    %v1864 = vld [vmem:[#allocation9 + $0x18] sm:$0xff]
    %v1865 = vld [vmem:[#allocation9 + $0x20] sm:$0xff]
    %v1866 = vld [vmem:[#allocation9 + $0x28] sm:$0xff]
    %v1867 = vld [vmem:[#allocation9 + $0x30] sm:$0xff]
    %v1868 = vld [vmem:[#allocation9 + $0x38] sm:$0xff]
    %v1869 = vld [vmem:[#allocation9 + $0x40] sm:$0xff]
    %v1870 = vld [vmem:[#allocation9 + $0x48] sm:$0xff]
    %v1871 = vld [vmem:[#allocation9 + $0x50] sm:$0xff]
    %v1872 = vld [vmem:[#allocation9 + $0x58] sm:$0xff]
    %v1873 = vld [vmem:[#allocation9 + $0x60] sm:$0xff]
    %v1874 = vld [vmem:[#allocation9 + $0x68] sm:$0xff]
    %v1875 = vld [vmem:[#allocation9 + $0x70] sm:$0xff]
    %v1876 = vld [vmem:[#allocation9 + $0x78] sm:$0xff]
    %v1877 = vld [vmem:[#allocation9 + $0x80] sm:$0xff]
    %v1878 = vld [vmem:[#allocation9 + $0x88] sm:$0xff]
    %v1879 = vld [vmem:[#allocation9 + $0x90] sm:$0xff]
    %v1880 = vld [vmem:[#allocation9 + $0x98] sm:$0xff]
    %v1881 = vld [vmem:[#allocation9 + $0xa0] sm:$0xff]
    %v1882 = vld [vmem:[#allocation9 + $0xa8] sm:$0xff]
    %v1883 = vld [vmem:[#allocation9 + $0xb0] sm:$0xff]
    %v1884 = vld [vmem:[#allocation9 + $0xb8] sm:$0xff]
    %v1885 = vld [vmem:[#allocation9 + $0xc0] sm:$0xff]
    %v1886 = vld [vmem:[#allocation9 + $0xc8] sm:$0xff]
    %v1887 = vld [vmem:[#allocation9 + $0xd0] sm:$0xff]
    %v1888 = vld [vmem:[#allocation9 + $0xd8] sm:$0xff]
    %v1889 = vld [vmem:[#allocation9 + $0xe0] sm:$0xff]
    %v1890 = vld [vmem:[#allocation9 + $0xe8] sm:$0xff]
    %v1891 = vld [vmem:[#allocation9 + $0xf0] sm:$0xff]
    %v1892 = vld [vmem:[#allocation9 + $0xf8] sm:$0xff]
    %v1893 = vld [vmem:[#allocation9 + $0x100] sm:$0xff]
    %v1894 = vld [vmem:[#allocation9 + $0x108] sm:$0xff]
    %v1895 = vld [vmem:[#allocation9 + $0x110] sm:$0xff]
    %v1896 = vld [vmem:[#allocation9 + $0x118] sm:$0xff]
    %v1897 = vld [vmem:[#allocation9 + $0x120] sm:$0xff]
    %v1898 = vld [vmem:[#allocation9 + $0x128] sm:$0xff]
    %v1899 = vld [vmem:[#allocation9 + $0x130] sm:$0xff]
    %v1900 = vld [vmem:[#allocation9 + $0x138] sm:$0xff]
    %v1901 = vld [vmem:[#allocation9 + $0x140] sm:$0xff]
    %v1902 = vld [vmem:[#allocation9 + $0x148] sm:$0xff]
    %v1903 = vld [vmem:[#allocation9 + $0x150] sm:$0xff]
    %v1904 = vld [vmem:[#allocation9 + $0x158] sm:$0xff]
    %v1905 = vld [vmem:[#allocation9 + $0x160] sm:$0xff]
    %v1906 = vld [vmem:[#allocation9 + $0x168] sm:$0xff]
    %v1907 = vld [vmem:[#allocation9 + $0x170] sm:$0xff]
    %v1908 = vld [vmem:[#allocation9 + $0x178] sm:$0xff]
    %v1909 = vld [vmem:[#allocation9 + $0x180] sm:$0xff]
    %v1910 = vld [vmem:[#allocation9 + $0x188] sm:$0xff]
    %v1911 = vld [vmem:[#allocation9 + $0x190] sm:$0xff]
    %v1912 = vld [vmem:[#allocation9 + $0x198] sm:$0xff]
    %v1913 = vld [vmem:[#allocation9 + $0x1a0] sm:$0xff]
    %v1914 = vld [vmem:[#allocation9 + $0x1a8] sm:$0xff]
    %v1915 = vld [vmem:[#allocation9 + $0x1b0] sm:$0xff]
    %v1916 = vld [vmem:[#allocation9 + $0x1b8] sm:$0xff]
    %v1917 = vld [vmem:[#allocation9 + $0x1c0] sm:$0xff]
    %v1918 = vld [vmem:[#allocation9 + $0x1c8] sm:$0xff]
    %v1919 = vld [vmem:[#allocation9 + $0x1d0] sm:$0xff]
    %v1920 = vld [vmem:[#allocation9 + $0x1d8] sm:$0xff]
    %v1921 = vld [vmem:[#allocation9 + $0x1e0] sm:$0xff]
    %v1922 = vld [vmem:[#allocation9 + $0x1e8] sm:$0xff]
    %v1923 = vld [vmem:[#allocation9 + $0x1f0] sm:$0xff]
    %v1924 = vld [vmem:[#allocation9 + $0x1f8] sm:$0xff]
    %v1925 = vld [vmem:[#allocation9 + $0x200] sm:$0xff]
    %v1926 = vld [vmem:[#allocation9 + $0x208] sm:$0xff]
    %v1927 = vld [vmem:[#allocation9 + $0x210] sm:$0xff]
    %v1928 = vld [vmem:[#allocation9 + $0x218] sm:$0xff]
    %v1929 = vld [vmem:[#allocation9 + $0x220] sm:$0xff]
    %v1930 = vld [vmem:[#allocation9 + $0x228] sm:$0xff]
    %v1931 = vld [vmem:[#allocation9 + $0x230] sm:$0xff]
    %v1932 = vld [vmem:[#allocation9 + $0x238] sm:$0xff]
    %v1933 = vld [vmem:[#allocation9 + $0x240] sm:$0xff]
    %v1934 = vld [vmem:[#allocation9 + $0x248] sm:$0xff]
    %v1935 = vld [vmem:[#allocation9 + $0x250] sm:$0xff]
    %v1936 = vld [vmem:[#allocation9 + $0x258] sm:$0xff]
    %v1937 = vld [vmem:[#allocation9 + $0x260] sm:$0xff]
    %v1938 = vld [vmem:[#allocation9 + $0x268] sm:$0xff]
    %v1939 = vld [vmem:[#allocation9 + $0x270] sm:$0xff]
    %v1940 = vld [vmem:[#allocation9 + $0x278] sm:$0xff]
    %v1941 = vld [vmem:[#allocation9 + $0x280] sm:$0xff]
    %v1942 = vld [vmem:[#allocation9 + $0x288] sm:$0xff]
    %v1943 = vld [vmem:[#allocation9 + $0x290] sm:$0xff]
    %v1944 = vld [vmem:[#allocation9 + $0x298] sm:$0xff]
    %v1945 = vld [vmem:[#allocation9 + $0x2a0] sm:$0xff]
    %v1946 = vld [vmem:[#allocation9 + $0x2a8] sm:$0xff]
    %v1947 = vld [vmem:[#allocation9 + $0x2b0] sm:$0xff]
    %v1948 = vld [vmem:[#allocation9 + $0x2b8] sm:$0xff]
    %v1949 = vld [vmem:[#allocation9 + $0x2c0] sm:$0xff]
    %v1950 = vld [vmem:[#allocation9 + $0x2c8] sm:$0xff]
    %v1951 = vld [vmem:[#allocation9 + $0x2d0] sm:$0xff]
    %v1952 = vld [vmem:[#allocation9 + $0x2d8] sm:$0xff]
    %v1953 = vld [vmem:[#allocation9 + $0x2e0] sm:$0xff]
    %v1954 = vld [vmem:[#allocation9 + $0x2e8] sm:$0xff]
    %v1955 = vld [vmem:[#allocation9 + $0x2f0] sm:$0xff]
    %v1956 = vld [vmem:[#allocation9 + $0x2f8] sm:$0xff]
    %v1957 = vld [vmem:[#allocation9 + $0x300] sm:$0xff]
    %v1958 = vld [vmem:[#allocation9 + $0x308] sm:$0xff]
    %v1959 = vld [vmem:[#allocation9 + $0x310] sm:$0xff]
    %v1960 = vld [vmem:[#allocation9 + $0x318] sm:$0xff]
    %v1961 = vld [vmem:[#allocation9 + $0x320] sm:$0xff]
    %v1962 = vld [vmem:[#allocation9 + $0x328] sm:$0xff]
    %v1963 = vld [vmem:[#allocation9 + $0x330] sm:$0xff]
    %v1964 = vld [vmem:[#allocation9 + $0x338] sm:$0xff]
    %vm1965 = vcmask 523264
    %v1967 = vsel %vm1965, %v1860, 0
    %1969 = vmatprep.subr.mxu0 %v1862
    %1970 = vmatpush1.msra.mxu0 %v1861
    %1971 = vmatprep.subr.mxu0 %v1875
    %1972 = vmatpush1.msra.mxu0 %v1874
    %1973 = vmatprep.subr.mxu0 %v1888
    %1974 = vmatpush1.msra.mxu0 %v1887
    %1975 = vmatprep.subr.mxu0 %v1901
    %1976 = vmatpush1.msra.mxu0 %v1900
    %1977 = vmatprep.subr.mxu0 %v1914
    %1978 = vmatpush1.msra.mxu0 %v1913
    %1979 = vmatprep.subr.mxu0 %v1927
    %1980 = vmatpush1.msra.mxu0 %v1926
    %1981 = vmatprep.subr.mxu0 %v1940
    %1982 = vmatpush1.msra.mxu0 %v1939
    %1983 = vmatprep.subr.mxu0 %v1953
    %1984 = vmatpush1.msra.mxu0 %v1952
    %1985 = vmatprep.subr.mxu0 0.0
    %1986 = vmatpush1.msra.mxu0 0.0
    %1987 = vmatprep.subr.mxu0 0.0
    %1988 = vmatpush1.msra.mxu0 0.0
    %1989 = vmatprep.subr.mxu0 0.0
    %1990 = vmatpush1.msra.mxu0 0.0
    %1991 = vmatprep.subr.mxu0 0.0
    %1992 = vmatpush1.msra.mxu0 0.0
    %1993 = vmatprep.subr.mxu0 0.0
    %1994 = vmatpush1.msra.mxu0 0.0
    %1995 = vmatprep.subr.mxu0 0.0
    %1996 = vmatpush1.msra.mxu0 0.0
    %1997 = vmatprep.subr.mxu0 0.0
    %1998 = vmatpush1.msra.mxu0 0.0
    %1999 = vmatprep.subr.mxu0 0.0
    %2000 = vmatpush1.msra.mxu0 0.0
    %2001 = vmatprep.subr.mxu0 0.0
    %2002 = vmatpush1.msra.mxu0 0.0
    %2003 = vmatprep.subr.mxu0 0.0
    %2004 = vmatpush1.msra.mxu0 0.0
    %2005 = vmatprep.subr.mxu0 0.0
    %2006 = vmatpush1.msra.mxu0 0.0
    %2007 = vmatprep.subr.mxu0 0.0
    %2008 = vmatpush1.msra.mxu0 0.0
    %2009 = vmatprep.subr.mxu0 0.0
    %2010 = vmatpush1.msra.mxu0 0.0
    %2011 = vmatprep.subr.mxu0 0.0
    %2012 = vmatpush1.msra.mxu0 0.0
    %2013 = vmatprep.subr.mxu0 0.0
    %2014 = vmatpush1.msra.mxu0 0.0
    %2015 = vmatprep.subr.mxu0 0.0
    %2016 = vmatpush1.msra.mxu0 0.0
    %2017 = vmatprep.subr.mxu0 0.0
    %2018 = vmatpush1.msra.mxu0 0.0
    %2019 = vmatprep.subr.mxu0 0.0
    %2020 = vmatpush1.msra.mxu0 0.0
    %2021 = vmatprep.subr.mxu0 0.0
    %2022 = vmatpush1.msra.mxu0 0.0
    %2023 = vmatprep.subr.mxu0 0.0
    %2024 = vmatpush1.msra.mxu0 0.0
    %2025 = vmatprep.subr.mxu0 0.0
    %2026 = vmatpush1.msra.mxu0 0.0
    %2027 = vmatprep.subr.mxu0 0.0
    %2028 = vmatpush1.msra.mxu0 0.0
    %2029 = vmatprep.subr.mxu0 0.0
    %2030 = vmatpush1.msra.mxu0 0.0
    %2031 = vmatprep.subr.mxu0 0.0
    %2032 = vmatpush1.msra.mxu0 0.0
    %2033 = vmatprep.mubr.f32.mxu0 0.0
    %2034 = vmatmul.mubr.f32.gmra.mrb[0].mxu0 %v1967
    %v2035 = vpop.f32.mrb[0].mxu0
    %v2036 = vadd.f32 0.0, %v2035
    %v2037 = vpop.f32.mrb[0].mxu0
    %v2038 = vadd.f32 0.0, %v2037
    %2039 = vdwg.mxu0
    %2040 = vmatprep.subr.mxu0 %v1864
    %2041 = vmatpush1.msra.mxu0 %v1863
    %2042 = vmatprep.subr.mxu0 %v1877
    %2043 = vmatpush1.msra.mxu0 %v1876
    %2044 = vmatprep.subr.mxu0 %v1890
    %2045 = vmatpush1.msra.mxu0 %v1889
    %2046 = vmatprep.subr.mxu0 %v1903
    %2047 = vmatpush1.msra.mxu0 %v1902
    %2048 = vmatprep.subr.mxu0 %v1916
    %2049 = vmatpush1.msra.mxu0 %v1915
    %2050 = vmatprep.subr.mxu0 %v1929
    %2051 = vmatpush1.msra.mxu0 %v1928
    %2052 = vmatprep.subr.mxu0 %v1942
    %2053 = vmatpush1.msra.mxu0 %v1941
    %2054 = vmatprep.subr.mxu0 %v1955
    %2055 = vmatpush1.msra.mxu0 %v1954
    %2056 = vmatprep.subr.mxu0 0.0
    %2057 = vmatpush1.msra.mxu0 0.0
    %2058 = vmatprep.subr.mxu0 0.0
    %2059 = vmatpush1.msra.mxu0 0.0
    %2060 = vmatprep.subr.mxu0 0.0
    %2061 = vmatpush1.msra.mxu0 0.0
    %2062 = vmatprep.subr.mxu0 0.0
    %2063 = vmatpush1.msra.mxu0 0.0
    %2064 = vmatprep.subr.mxu0 0.0
    %2065 = vmatpush1.msra.mxu0 0.0
    %2066 = vmatprep.subr.mxu0 0.0
    %2067 = vmatpush1.msra.mxu0 0.0
    %2068 = vmatprep.subr.mxu0 0.0
    %2069 = vmatpush1.msra.mxu0 0.0
    %2070 = vmatprep.subr.mxu0 0.0
    %2071 = vmatpush1.msra.mxu0 0.0
    %2072 = vmatprep.subr.mxu0 0.0
    %2073 = vmatpush1.msra.mxu0 0.0
    %2074 = vmatprep.subr.mxu0 0.0
    %2075 = vmatpush1.msra.mxu0 0.0
    %2076 = vmatprep.subr.mxu0 0.0
    %2077 = vmatpush1.msra.mxu0 0.0
    %2078 = vmatprep.subr.mxu0 0.0
    %2079 = vmatpush1.msra.mxu0 0.0
    %2080 = vmatprep.subr.mxu0 0.0
    %2081 = vmatpush1.msra.mxu0 0.0
    %2082 = vmatprep.subr.mxu0 0.0
    %2083 = vmatpush1.msra.mxu0 0.0
    %2084 = vmatprep.subr.mxu0 0.0
    %2085 = vmatpush1.msra.mxu0 0.0
    %2086 = vmatprep.subr.mxu0 0.0
    %2087 = vmatpush1.msra.mxu0 0.0
    %2088 = vmatprep.subr.mxu0 0.0
    %2089 = vmatpush1.msra.mxu0 0.0
    %2090 = vmatprep.subr.mxu0 0.0
    %2091 = vmatpush1.msra.mxu0 0.0
    %2092 = vmatprep.subr.mxu0 0.0
    %2093 = vmatpush1.msra.mxu0 0.0
    %2094 = vmatprep.subr.mxu0 0.0
    %2095 = vmatpush1.msra.mxu0 0.0
    %2096 = vmatprep.subr.mxu0 0.0
    %2097 = vmatpush1.msra.mxu0 0.0
    %2098 = vmatprep.subr.mxu0 0.0
    %2099 = vmatpush1.msra.mxu0 0.0
    %2100 = vmatprep.subr.mxu0 0.0
    %2101 = vmatpush1.msra.mxu0 0.0
    %2102 = vmatprep.subr.mxu0 0.0
    %2103 = vmatpush1.msra.mxu0 0.0
    %2104 = vmatprep.mubr.f32.mxu0 0.0
    %2105 = vmatmul.mubr.f32.gmra.mrb[0].mxu0 %v1967
    %v2106 = vpop.f32.mrb[0].mxu0
    %v2107 = vadd.f32 0.0, %v2106
    %v2108 = vpop.f32.mrb[0].mxu0
    %v2109 = vadd.f32 0.0, %v2108
    %2110 = vdwg.mxu0
    %2111 = vmatprep.subr.mxu0 %v1866
    %2112 = vmatpush1.msra.mxu0 %v1865
    %2113 = vmatprep.subr.mxu0 %v1879
    %2114 = vmatpush1.msra.mxu0 %v1878
    %2115 = vmatprep.subr.mxu0 %v1892
    %2116 = vmatpush1.msra.mxu0 %v1891
    %2117 = vmatprep.subr.mxu0 %v1905
    %2118 = vmatpush1.msra.mxu0 %v1904
    %2119 = vmatprep.subr.mxu0 %v1918
    %2120 = vmatpush1.msra.mxu0 %v1917
    %2121 = vmatprep.subr.mxu0 %v1931
    %2122 = vmatpush1.msra.mxu0 %v1930
    %2123 = vmatprep.subr.mxu0 %v1944
    %2124 = vmatpush1.msra.mxu0 %v1943
    %2125 = vmatprep.subr.mxu0 %v1957
    %2126 = vmatpush1.msra.mxu0 %v1956
    %2127 = vmatprep.subr.mxu0 0.0
    %2128 = vmatpush1.msra.mxu0 0.0
    %2129 = vmatprep.subr.mxu0 0.0
    %2130 = vmatpush1.msra.mxu0 0.0
    %2131 = vmatprep.subr.mxu0 0.0
    %2132 = vmatpush1.msra.mxu0 0.0
    %2133 = vmatprep.subr.mxu0 0.0
    %2134 = vmatpush1.msra.mxu0 0.0
    %2135 = vmatprep.subr.mxu0 0.0
    %2136 = vmatpush1.msra.mxu0 0.0
    %2137 = vmatprep.subr.mxu0 0.0
    %2138 = vmatpush1.msra.mxu0 0.0
    %2139 = vmatprep.subr.mxu0 0.0
    %2140 = vmatpush1.msra.mxu0 0.0
    %2141 = vmatprep.subr.mxu0 0.0
    %2142 = vmatpush1.msra.mxu0 0.0
    %2143 = vmatprep.subr.mxu0 0.0
    %2144 = vmatpush1.msra.mxu0 0.0
    %2145 = vmatprep.subr.mxu0 0.0
    %2146 = vmatpush1.msra.mxu0 0.0
    %2147 = vmatprep.subr.mxu0 0.0
    %2148 = vmatpush1.msra.mxu0 0.0
    %2149 = vmatprep.subr.mxu0 0.0
    %2150 = vmatpush1.msra.mxu0 0.0
    %2151 = vmatprep.subr.mxu0 0.0
    %2152 = vmatpush1.msra.mxu0 0.0
    %2153 = vmatprep.subr.mxu0 0.0
    %2154 = vmatpush1.msra.mxu0 0.0
    %2155 = vmatprep.subr.mxu0 0.0
    %2156 = vmatpush1.msra.mxu0 0.0
    %2157 = vmatprep.subr.mxu0 0.0
    %2158 = vmatpush1.msra.mxu0 0.0
    %2159 = vmatprep.subr.mxu0 0.0
    %2160 = vmatpush1.msra.mxu0 0.0
    %2161 = vmatprep.subr.mxu0 0.0
    %2162 = vmatpush1.msra.mxu0 0.0
    %2163 = vmatprep.subr.mxu0 0.0
    %2164 = vmatpush1.msra.mxu0 0.0
    %2165 = vmatprep.subr.mxu0 0.0
    %2166 = vmatpush1.msra.mxu0 0.0
    %2167 = vmatprep.subr.mxu0 0.0
    %2168 = vmatpush1.msra.mxu0 0.0
    %2169 = vmatprep.subr.mxu0 0.0
    %2170 = vmatpush1.msra.mxu0 0.0
    %2171 = vmatprep.subr.mxu0 0.0
    %2172 = vmatpush1.msra.mxu0 0.0
    %2173 = vmatprep.subr.mxu0 0.0
    %2174 = vmatpush1.msra.mxu0 0.0
    %2175 = vmatprep.mubr.f32.mxu0 0.0
    %2176 = vmatmul.mubr.f32.gmra.mrb[0].mxu0 %v1967
    %v2177 = vpop.f32.mrb[0].mxu0
    %v2178 = vadd.f32 0.0, %v2177
    %v2179 = vpop.f32.mrb[0].mxu0
    %v2180 = vadd.f32 0.0, %v2179
    %2181 = vdwg.mxu0
    %2182 = vmatprep.subr.mxu0 %v1868
    %2183 = vmatpush1.msra.mxu0 %v1867
    %2184 = vmatprep.subr.mxu0 %v1881
    %2185 = vmatpush1.msra.mxu0 %v1880
    %2186 = vmatprep.subr.mxu0 %v1894
    %2187 = vmatpush1.msra.mxu0 %v1893
    %2188 = vmatprep.subr.mxu0 %v1907
    %2189 = vmatpush1.msra.mxu0 %v1906
    %2190 = vmatprep.subr.mxu0 %v1920
    %2191 = vmatpush1.msra.mxu0 %v1919
    %2192 = vmatprep.subr.mxu0 %v1933
    %2193 = vmatpush1.msra.mxu0 %v1932
    %2194 = vmatprep.subr.mxu0 %v1946
    %2195 = vmatpush1.msra.mxu0 %v1945
    %2196 = vmatprep.subr.mxu0 %v1959
    %2197 = vmatpush1.msra.mxu0 %v1958
    %2198 = vmatprep.subr.mxu0 0.0
    %2199 = vmatpush1.msra.mxu0 0.0
    %2200 = vmatprep.subr.mxu0 0.0
    %2201 = vmatpush1.msra.mxu0 0.0
    %2202 = vmatprep.subr.mxu0 0.0
    %2203 = vmatpush1.msra.mxu0 0.0
    %2204 = vmatprep.subr.mxu0 0.0
    %2205 = vmatpush1.msra.mxu0 0.0
    %2206 = vmatprep.subr.mxu0 0.0
    %2207 = vmatpush1.msra.mxu0 0.0
    %2208 = vmatprep.subr.mxu0 0.0
    %2209 = vmatpush1.msra.mxu0 0.0
    %2210 = vmatprep.subr.mxu0 0.0
    %2211 = vmatpush1.msra.mxu0 0.0
    %2212 = vmatprep.subr.mxu0 0.0
    %2213 = vmatpush1.msra.mxu0 0.0
    %2214 = vmatprep.subr.mxu0 0.0
    %2215 = vmatpush1.msra.mxu0 0.0
    %2216 = vmatprep.subr.mxu0 0.0
    %2217 = vmatpush1.msra.mxu0 0.0
    %2218 = vmatprep.subr.mxu0 0.0
    %2219 = vmatpush1.msra.mxu0 0.0
    %2220 = vmatprep.subr.mxu0 0.0
    %2221 = vmatpush1.msra.mxu0 0.0
    %2222 = vmatprep.subr.mxu0 0.0
    %2223 = vmatpush1.msra.mxu0 0.0
    %2224 = vmatprep.subr.mxu0 0.0
    %2225 = vmatpush1.msra.mxu0 0.0
    %2226 = vmatprep.subr.mxu0 0.0
    %2227 = vmatpush1.msra.mxu0 0.0
    %2228 = vmatprep.subr.mxu0 0.0
    %2229 = vmatpush1.msra.mxu0 0.0
    %2230 = vmatprep.subr.mxu0 0.0
    %2231 = vmatpush1.msra.mxu0 0.0
    %2232 = vmatprep.subr.mxu0 0.0
    %2233 = vmatpush1.msra.mxu0 0.0
    %2234 = vmatprep.subr.mxu0 0.0
    %2235 = vmatpush1.msra.mxu0 0.0
    %2236 = vmatprep.subr.mxu0 0.0
    %2237 = vmatpush1.msra.mxu0 0.0
    %2238 = vmatprep.subr.mxu0 0.0
    %2239 = vmatpush1.msra.mxu0 0.0
    %2240 = vmatprep.subr.mxu0 0.0
    %2241 = vmatpush1.msra.mxu0 0.0
    %2242 = vmatprep.subr.mxu0 0.0
    %2243 = vmatpush1.msra.mxu0 0.0
    %2244 = vmatprep.subr.mxu0 0.0
    %2245 = vmatpush1.msra.mxu0 0.0
    %2246 = vmatprep.mubr.f32.mxu0 0.0
    %2247 = vmatmul.mubr.f32.gmra.mrb[0].mxu0 %v1967
    %v2248 = vpop.f32.mrb[0].mxu0
    %v2249 = vadd.f32 0.0, %v2248
    %v2250 = vpop.f32.mrb[0].mxu0
    %v2251 = vadd.f32 0.0, %v2250
    %2252 = vdwg.mxu0
    %2253 = vmatprep.subr.mxu0 %v1870
    %2254 = vmatpush1.msra.mxu0 %v1869
    %2255 = vmatprep.subr.mxu0 %v1883
    %2256 = vmatpush1.msra.mxu0 %v1882
    %2257 = vmatprep.subr.mxu0 %v1896
    %2258 = vmatpush1.msra.mxu0 %v1895
    %2259 = vmatprep.subr.mxu0 %v1909
    %2260 = vmatpush1.msra.mxu0 %v1908
    %2261 = vmatprep.subr.mxu0 %v1922
    %2262 = vmatpush1.msra.mxu0 %v1921
    %2263 = vmatprep.subr.mxu0 %v1935
    %2264 = vmatpush1.msra.mxu0 %v1934
    %2265 = vmatprep.subr.mxu0 %v1948
    %2266 = vmatpush1.msra.mxu0 %v1947
    %2267 = vmatprep.subr.mxu0 %v1961
    %2268 = vmatpush1.msra.mxu0 %v1960
    %2269 = vmatprep.subr.mxu0 0.0
    %2270 = vmatpush1.msra.mxu0 0.0
    %2271 = vmatprep.subr.mxu0 0.0
    %2272 = vmatpush1.msra.mxu0 0.0
    %2273 = vmatprep.subr.mxu0 0.0
    %2274 = vmatpush1.msra.mxu0 0.0
    %2275 = vmatprep.subr.mxu0 0.0
    %2276 = vmatpush1.msra.mxu0 0.0
    %2277 = vmatprep.subr.mxu0 0.0
    %2278 = vmatpush1.msra.mxu0 0.0
    %2279 = vmatprep.subr.mxu0 0.0
    %2280 = vmatpush1.msra.mxu0 0.0
    %2281 = vmatprep.subr.mxu0 0.0
    %2282 = vmatpush1.msra.mxu0 0.0
    %2283 = vmatprep.subr.mxu0 0.0
    %2284 = vmatpush1.msra.mxu0 0.0
    %2285 = vmatprep.subr.mxu0 0.0
    %2286 = vmatpush1.msra.mxu0 0.0
    %2287 = vmatprep.subr.mxu0 0.0
    %2288 = vmatpush1.msra.mxu0 0.0
    %2289 = vmatprep.subr.mxu0 0.0
    %2290 = vmatpush1.msra.mxu0 0.0
    %2291 = vmatprep.subr.mxu0 0.0
    %2292 = vmatpush1.msra.mxu0 0.0
    %2293 = vmatprep.subr.mxu0 0.0
    %2294 = vmatpush1.msra.mxu0 0.0
    %2295 = vmatprep.subr.mxu0 0.0
    %2296 = vmatpush1.msra.mxu0 0.0
    %2297 = vmatprep.subr.mxu0 0.0
    %2298 = vmatpush1.msra.mxu0 0.0
    %2299 = vmatprep.subr.mxu0 0.0
    %2300 = vmatpush1.msra.mxu0 0.0
    %2301 = vmatprep.subr.mxu0 0.0
    %2302 = vmatpush1.msra.mxu0 0.0
    %2303 = vmatprep.subr.mxu0 0.0
    %2304 = vmatpush1.msra.mxu0 0.0
    %2305 = vmatprep.subr.mxu0 0.0
    %2306 = vmatpush1.msra.mxu0 0.0
    %2307 = vmatprep.subr.mxu0 0.0
    %2308 = vmatpush1.msra.mxu0 0.0
    %2309 = vmatprep.subr.mxu0 0.0
    %2310 = vmatpush1.msra.mxu0 0.0
    %2311 = vmatprep.subr.mxu0 0.0
    %2312 = vmatpush1.msra.mxu0 0.0
    %2313 = vmatprep.subr.mxu0 0.0
    %2314 = vmatpush1.msra.mxu0 0.0
    %2315 = vmatprep.subr.mxu0 0.0
    %2316 = vmatpush1.msra.mxu0 0.0
    %2317 = vmatprep.mubr.f32.mxu0 0.0
    %2318 = vmatmul.mubr.f32.gmra.mrb[0].mxu0 %v1967
    %v2319 = vpop.f32.mrb[0].mxu0
    %v2320 = vadd.f32 0.0, %v2319
    %v2321 = vpop.f32.mrb[0].mxu0
    %v2322 = vadd.f32 0.0, %v2321
    %2323 = vdwg.mxu0
    %2324 = vmatprep.subr.mxu0 %v1872
    %2325 = vmatpush1.msra.mxu0 %v1871
    %2326 = vmatprep.subr.mxu0 %v1885
    %2327 = vmatpush1.msra.mxu0 %v1884
    %2328 = vmatprep.subr.mxu0 %v1898
    %2329 = vmatpush1.msra.mxu0 %v1897
    %2330 = vmatprep.subr.mxu0 %v1911
    %2331 = vmatpush1.msra.mxu0 %v1910
    %2332 = vmatprep.subr.mxu0 %v1924
    %2333 = vmatpush1.msra.mxu0 %v1923
    %2334 = vmatprep.subr.mxu0 %v1937
    %2335 = vmatpush1.msra.mxu0 %v1936
    %2336 = vmatprep.subr.mxu0 %v1950
    %2337 = vmatpush1.msra.mxu0 %v1949
    %2338 = vmatprep.subr.mxu0 %v1963
    %2339 = vmatpush1.msra.mxu0 %v1962
    %2340 = vmatprep.subr.mxu0 0.0
    %2341 = vmatpush1.msra.mxu0 0.0
    %2342 = vmatprep.subr.mxu0 0.0
    %2343 = vmatpush1.msra.mxu0 0.0
    %2344 = vmatprep.subr.mxu0 0.0
    %2345 = vmatpush1.msra.mxu0 0.0
    %2346 = vmatprep.subr.mxu0 0.0
    %2347 = vmatpush1.msra.mxu0 0.0
    %2348 = vmatprep.subr.mxu0 0.0
    %2349 = vmatpush1.msra.mxu0 0.0
    %2350 = vmatprep.subr.mxu0 0.0
    %2351 = vmatpush1.msra.mxu0 0.0
    %2352 = vmatprep.subr.mxu0 0.0
    %2353 = vmatpush1.msra.mxu0 0.0
    %2354 = vmatprep.subr.mxu0 0.0
    %2355 = vmatpush1.msra.mxu0 0.0
    %2356 = vmatprep.subr.mxu0 0.0
    %2357 = vmatpush1.msra.mxu0 0.0
    %2358 = vmatprep.subr.mxu0 0.0
    %2359 = vmatpush1.msra.mxu0 0.0
    %2360 = vmatprep.subr.mxu0 0.0
    %2361 = vmatpush1.msra.mxu0 0.0
    %2362 = vmatprep.subr.mxu0 0.0
    %2363 = vmatpush1.msra.mxu0 0.0
    %2364 = vmatprep.subr.mxu0 0.0
    %2365 = vmatpush1.msra.mxu0 0.0
    %2366 = vmatprep.subr.mxu0 0.0
    %2367 = vmatpush1.msra.mxu0 0.0
    %2368 = vmatprep.subr.mxu0 0.0
    %2369 = vmatpush1.msra.mxu0 0.0
    %2370 = vmatprep.subr.mxu0 0.0
    %2371 = vmatpush1.msra.mxu0 0.0
    %2372 = vmatprep.subr.mxu0 0.0
    %2373 = vmatpush1.msra.mxu0 0.0
    %2374 = vmatprep.subr.mxu0 0.0
    %2375 = vmatpush1.msra.mxu0 0.0
    %2376 = vmatprep.subr.mxu0 0.0
    %2377 = vmatpush1.msra.mxu0 0.0
    %2378 = vmatprep.subr.mxu0 0.0
    %2379 = vmatpush1.msra.mxu0 0.0
    %2380 = vmatprep.subr.mxu0 0.0
    %2381 = vmatpush1.msra.mxu0 0.0
    %2382 = vmatprep.subr.mxu0 0.0
    %2383 = vmatpush1.msra.mxu0 0.0
    %2384 = vmatprep.subr.mxu0 0.0
    %2385 = vmatpush1.msra.mxu0 0.0
    %2386 = vmatprep.subr.mxu0 0.0
    %2387 = vmatpush1.msra.mxu0 0.0
    %2388 = vmatprep.mubr.f32.mxu0 0.0
    %2389 = vmatmul.mubr.f32.gmra.mrb[0].mxu0 %v1967
    %v2390 = vpop.f32.mrb[0].mxu0
    %v2391 = vadd.f32 0.0, %v2390
    %v2392 = vpop.f32.mrb[0].mxu0
    %v2393 = vadd.f32 0.0, %v2392
    %2394 = vdwg.mxu0
    %2395 = vmatprep.subr.mxu0 0.0
    %2396 = vmatpush1.msra.mxu0 %v1873
    %2397 = vmatprep.subr.mxu0 0.0
    %2398 = vmatpush1.msra.mxu0 %v1886
    %2399 = vmatprep.subr.mxu0 0.0
    %2400 = vmatpush1.msra.mxu0 %v1899
    %2401 = vmatprep.subr.mxu0 0.0
    %2402 = vmatpush1.msra.mxu0 %v1912
    %2403 = vmatprep.subr.mxu0 0.0
    %2404 = vmatpush1.msra.mxu0 %v1925
    %2405 = vmatprep.subr.mxu0 0.0
    %2406 = vmatpush1.msra.mxu0 %v1938
    %2407 = vmatprep.subr.mxu0 0.0
    %2408 = vmatpush1.msra.mxu0 %v1951
    %2409 = vmatprep.subr.mxu0 0.0
    %2410 = vmatpush1.msra.mxu0 %v1964
    %2411 = vmatprep.subr.mxu0 0.0
    %2412 = vmatpush1.msra.mxu0 0.0
    %2413 = vmatprep.subr.mxu0 0.0
    %2414 = vmatpush1.msra.mxu0 0.0
    %2415 = vmatprep.subr.mxu0 0.0
    %2416 = vmatpush1.msra.mxu0 0.0
    %2417 = vmatprep.subr.mxu0 0.0
    %2418 = vmatpush1.msra.mxu0 0.0
    %2419 = vmatprep.subr.mxu0 0.0
    %2420 = vmatpush1.msra.mxu0 0.0
    %2421 = vmatprep.subr.mxu0 0.0
    %2422 = vmatpush1.msra.mxu0 0.0
    %2423 = vmatprep.subr.mxu0 0.0
    %2424 = vmatpush1.msra.mxu0 0.0
    %2425 = vmatprep.subr.mxu0 0.0
    %2426 = vmatpush1.msra.mxu0 0.0
    %2427 = vmatprep.subr.mxu0 0.0
    %2428 = vmatpush1.msra.mxu0 0.0
    %2429 = vmatprep.subr.mxu0 0.0
    %2430 = vmatpush1.msra.mxu0 0.0
    %2431 = vmatprep.subr.mxu0 0.0
    %2432 = vmatpush1.msra.mxu0 0.0
    %2433 = vmatprep.subr.mxu0 0.0
    %2434 = vmatpush1.msra.mxu0 0.0
    %2435 = vmatprep.subr.mxu0 0.0
    %2436 = vmatpush1.msra.mxu0 0.0
    %2437 = vmatprep.subr.mxu0 0.0
    %2438 = vmatpush1.msra.mxu0 0.0
    %2439 = vmatprep.subr.mxu0 0.0
    %2440 = vmatpush1.msra.mxu0 0.0
    %2441 = vmatprep.subr.mxu0 0.0
    %2442 = vmatpush1.msra.mxu0 0.0
    %2443 = vmatprep.subr.mxu0 0.0
    %2444 = vmatpush1.msra.mxu0 0.0
    %2445 = vmatprep.subr.mxu0 0.0
    %2446 = vmatpush1.msra.mxu0 0.0
    %2447 = vmatprep.subr.mxu0 0.0
    %2448 = vmatpush1.msra.mxu0 0.0
    %2449 = vmatprep.subr.mxu0 0.0
    %2450 = vmatpush1.msra.mxu0 0.0
    %2451 = vmatprep.subr.mxu0 0.0
    %2452 = vmatpush1.msra.mxu0 0.0
    %2453 = vmatprep.subr.mxu0 0.0
    %2454 = vmatpush1.msra.mxu0 0.0
    %2455 = vmatprep.subr.mxu0 0.0
    %2456 = vmatpush1.msra.mxu0 0.0
    %2457 = vmatprep.subr.mxu0 0.0
    %2458 = vmatpush1.msra.mxu0 0.0
    %2459 = vmatprep.mubr.f32.mxu0 0.0
    %2460 = vmatmul.mubr.f32.gmra.mrb[0].mxu0 %v1967
    %v2461 = vpop.f32.mrb[0].mxu0
    %v2462 = vadd.f32 0.0, %v2461
    %v2463 = vpop.f32.mrb[0].mxu0
    %2464 = vdwg.mxu0
    %v2478 = vcombine.low %v2036, %v2038
    %v2479 = vcombine.low %v2107, %v2109
    %v2481 = vunpack.c.l.s4 1983009808
    %v2482 = vunpack.c.0.s8 %v2481
    %v2483 = vlaneseq
    %v2484 = vshrl.u32 %v2483, 7
    %v2485 = vsub.s32 %v2482, %v2484
    %v2486 = vrot.slane %v2478, %v2485
    %v2488 = vunpack.c.l.s4 1983009808
    %v2489 = vunpack.c.0.s8 %v2488
    %v2490 = vlaneseq
    %v2491 = vshrl.u32 %v2490, 7
    %v2492 = vsub.s32 %v2489, %v2491
    %v2493 = vrot.slane %v2479, %v2492
    %v2494 = vcombine.low %v2486, %v2493
    %v2495 = vcombine.low %v2178, %v2180
    %v2496 = vcombine.low %v2249, %v2251
    %v2498 = vunpack.c.l.s4 1983009808
    %v2499 = vunpack.c.0.s8 %v2498
    %v2500 = vlaneseq
    %v2501 = vshrl.u32 %v2500, 7
    %v2502 = vsub.s32 %v2499, %v2501
    %v2503 = vrot.slane %v2495, %v2502
    %v2505 = vunpack.c.l.s4 1983009808
    %v2506 = vunpack.c.0.s8 %v2505
    %v2507 = vlaneseq
    %v2508 = vshrl.u32 %v2507, 7
    %v2509 = vsub.s32 %v2506, %v2508
    %v2510 = vrot.slane %v2496, %v2509
    %v2511 = vcombine.low %v2503, %v2510
    %v2512 = vcombine.low %v2320, %v2322
    %v2513 = vcombine.low %v2391, %v2393
    %v2515 = vunpack.c.l.s4 1983009808
    %v2516 = vunpack.c.0.s8 %v2515
    %v2517 = vlaneseq
    %v2518 = vshrl.u32 %v2517, 7
    %v2519 = vsub.s32 %v2516, %v2518
    %v2520 = vrot.slane %v2512, %v2519
    %v2522 = vunpack.c.l.s4 1983009808
    %v2523 = vunpack.c.0.s8 %v2522
    %v2524 = vlaneseq
    %v2525 = vshrl.u32 %v2524, 7
    %v2526 = vsub.s32 %v2523, %v2525
    %v2527 = vrot.slane %v2513, %v2526
    %v2528 = vcombine.low %v2520, %v2527
    %v2530 = vunpack.c.l.s4 1983009808
    %v2531 = vunpack.c.0.s8 %v2530
    %v2532 = vlaneseq
    %v2533 = vshrl.u32 %v2532, 7
    %v2534 = vsub.s32 %v2531, %v2533
    %v2535 = vrot.slane %v2462, %v2534
    %2540 = vst [vmem:[#allocation14] sm:$0xff] %v2494
    %2541 = vst [vmem:[#allocation14 + $0x8] sm:$0xff] %v2511
    %2542 = vst [vmem:[#allocation14 + $0x10] sm:$0xff] %v2528
    %vm2543 = vcmask 517120
    %2544 = vst.msk [vmem:[#allocation14 + $0x18] sm:$0x3] %vm2543, %v2535
    // Predicated region
    $region54: #{tpu_custom_call.1} parent=1 // pred_check
      _
    $region55: #{tpu_custom_call.1} parent=1 // pred_check_branch
      %2546 = sbr.rel (0) target = $region57
    $region56: #{tpu_custom_call.1} parent=1 // pred_region
      %s2548 = ssub.s32 416, 416
      %2549 = vsyncadd [#allocation5], %s2548
      %s2551 = sshll.u32 [#allocation14], 4
      %s2552 = int_to_ptr.vmem [resolvable:$true] %s2551
      %2554 = dma.vmem_to_hbm [thread:$0]  %s2552, 416, %s7, [#allocation5]
    $region57: #{tpu_custom_call.1} parent=1 // pred_fallthru
      _
    // Predicated region
    $region58: #{tpu_custom_call.1} parent=1 // pred_check
      _
    $region59: #{tpu_custom_call.1} parent=1 // pred_check_branch
      %2556 = sbr.rel (0) target = $region61
    $region60: #{tpu_custom_call.1} parent=1 // pred_region
      %2557 = dma.done [#allocation5], 416
    $region61: #{tpu_custom_call.1} parent=1 // pred_fallthru
      _
    %2558 = vsyncpa [#allocation4], 1
    %2559 = vsyncpa [#allocation8], 1
    %2560 = vsyncpa [#allocation5], 1
    %2561 = vsyncpa [#allocation6], 1
    %2562 = vsyncpa [#allocation12], 1

</llo_original>
